<compile_context>
chip_gen: v7x
topology: tpu7x:2x2x1
jax: 0.10.0
libtpu: 0.0.40
codegen_flags: <defaults>
</compile_context>

<pallas_src>
import functools
import math

import jax
import jax.numpy as jnp
from jax.experimental import pallas as pl
from jax.experimental.pallas import tpu as pltpu

# ----------------------- config (scaled-down bert-base) -----------------------
VOCAB = 100
MAX_POS = 32
HIDDEN = 128          # bert-base: 768
NUM_HEADS = 4         # bert-base: 12
HEAD_DIM = HIDDEN // NUM_HEADS
INTERMEDIATE = 512    # bert-base: 3072
NUM_LAYERS = 2        # bert-base: 12
CLS_H = 50            # classifier hidden (from the module)
CLS_H_PAD = 64        # padded to a lane-friendly width (zero-padded weights)
CLS_OUT = 3           # num labels (from the module)
CLS_OUT_PAD = 128     # padded output lane width; wrapper slices [:, :3]
CLS_PAD_ROWS = 8      # sublane padding for the logits output block
LN_EPS = 1e-12


def _layernorm_f32(x, gamma, beta, eps):
    """LayerNorm over the last (lane) dim; all math in f32."""
    mu = jnp.mean(x, axis=-1, keepdims=True)
    var = jnp.mean(jnp.square(x - mu), axis=-1, keepdims=True)
    return (x - mu) * jax.lax.rsqrt(var + eps) * gamma + beta


# ------------------------------ fused kernel -----------------------------------
def _bert_fused_kernel(emb_ref, mask_ref, embln_ref,
                       wqkv_ref, wo_ref, w1_ref, w2_ref,
                       bqkv_ref, b1_ref, lnb_ref,
                       cls_w1_ref, cls_w2_ref, cls_b_ref,
                       out_ref,
                       *, num_layers, num_heads, head_dim, eps, scale):
    """One grid step = one full sequence: emb-LN -> L encoder layers -> classifier head.

    lnb_ref rows per layer: [0]=bo [1]=ln1_g [2]=ln1_b [3]=b2 [4]=ln2_g [5]=ln2_b
    """
    H = num_heads * head_dim
    x = emb_ref[...]                                   # (S, H) f32
    mask = mask_ref[...]                               # (1, S) f32 additive mask

    # embedding LayerNorm
    h = _layernorm_f32(x, embln_ref[0:1, :], embln_ref[1:2, :], eps)

    for l in range(num_layers):                        # static unroll; weights resident
        # ---------------- attention sub-layer ----------------
        # fused QKV projection: bf16 operands on the MXU, f32 accumulation
        qkv = jnp.dot(h.astype(jnp.bfloat16), wqkv_ref[l],
                      preferred_element_type=jnp.float32) + bqkv_ref[l]   # (S, 3H)

        # per-head attention on 2-D lane-slice views (no (NH,S,Dh) stack)
        ctx_parts = []
        for i in range(num_heads):
            qi = qkv[:, i * head_dim:(i + 1) * head_dim]                  # (S, Dh)
            ki = qkv[:, H + i * head_dim:H + (i + 1) * head_dim]
            vi = qkv[:, 2 * H + i * head_dim:2 * H + (i + 1) * head_dim]
            s = jnp.einsum("qd,kd->qk",
                           qi.astype(jnp.bfloat16), ki.astype(jnp.bfloat16),
                           preferred_element_type=jnp.float32) * scale + mask
            s = s - jnp.max(s, axis=-1, keepdims=True)
            e = jnp.exp(s)
            p = e * pl.reciprocal(jnp.sum(e, axis=-1, keepdims=True), approx=True)
            ctx_parts.append(jnp.dot(p.astype(jnp.bfloat16), vi.astype(jnp.bfloat16),
                                     preferred_element_type=jnp.float32))  # (S, Dh)
        ctx = jnp.concatenate(ctx_parts, axis=-1)                          # (S, H)

        # single K=128 output projection + residual + LN
        attn = jnp.dot(ctx.astype(jnp.bfloat16), wo_ref[l],
                       preferred_element_type=jnp.float32) + lnb_ref[l, 0:1, :]
        h = _layernorm_f32(h + attn, lnb_ref[l, 1:2, :], lnb_ref[l, 2:3, :], eps)

        # ---------------- FFN sub-layer ----------------
        t = jnp.dot(h.astype(jnp.bfloat16), w1_ref[l],
                    preferred_element_type=jnp.float32) + b1_ref[l]        # (S, I)
        # TODO(synk): HuggingFace BERT uses exact erf GELU; tanh approximation used here.
        t = jax.nn.gelu(t, approximate=True)
        y = jnp.dot(t.astype(jnp.bfloat16), w2_ref[l],
                    preferred_element_type=jnp.float32) + lnb_ref[l, 3:4, :]
        h = _layernorm_f32(h + y, lnb_ref[l, 4:5, :], lnb_ref[l, 5:6, :], eps)

    # ---------------- classifier head on the [CLS] token ----------------
    cls = h[0:1, :]                                                        # (1, H)
    t = jnp.dot(cls.astype(jnp.bfloat16), cls_w1_ref[...],
                preferred_element_type=jnp.float32) + cls_b_ref[0:1, :CLS_H_PAD]
    t = jnp.maximum(t, 0.0)
    # TODO(synk): nn.Dropout(0.5) is an inference-mode identity here (no RNG masking).
    logits = jnp.dot(t.astype(jnp.bfloat16), cls_w2_ref[...],
                     preferred_element_type=jnp.float32) + cls_b_ref[1:2, :]  # (1, 128)
    out_ref[...] = jnp.broadcast_to(logits, out_ref.shape)


# ------------------------------ parameters ------------------------------------
def init_params(key):
    keys = iter(jax.random.split(key, 64))

    def nrm(shape, dtype=jnp.float32):
        return (0.02 * jax.random.normal(next(keys), shape, jnp.float32)).astype(dtype)

    L, H, I = NUM_LAYERS, HIDDEN, INTERMEDIATE

    # H-wide per-layer f32 params packed: [bo, ln1_g, ln1_b, b2, ln2_g, ln2_b]
    lnb_one = jnp.stack([
        jnp.zeros((H,), jnp.float32),   # bo
        jnp.ones((H,), jnp.float32),    # ln1_g
        jnp.zeros((H,), jnp.float32),   # ln1_b
        jnp.zeros((H,), jnp.float32),   # b2
        jnp.ones((H,), jnp.float32),    # ln2_g
        jnp.zeros((H,), jnp.float32),   # ln2_b
    ], axis=0)                                                   # (6, H)
    lnb = jnp.broadcast_to(lnb_one, (L, 6, H)).astype(jnp.float32)

    # classifier weights padded to lane-friendly widths (zeros in the padding)
    cls_w1 = jnp.zeros((H, CLS_H_PAD), jnp.bfloat16)
    cls_w1 = cls_w1.at[:, :CLS_H].set(nrm((H, CLS_H), jnp.bfloat16))
    cls_w2 = jnp.zeros((CLS_H_PAD, CLS_OUT_PAD), jnp.bfloat16)
    cls_w2 = cls_w2.at[:CLS_H, :CLS_OUT].set(nrm((CLS_H, CLS_OUT), jnp.bfloat16))

    return {
        "word_emb": nrm((VOCAB, H)),
        "pos_emb": nrm((MAX_POS, H)),
        "type_emb": nrm((2, H)),
        "embln": jnp.stack([jnp.ones((H,), jnp.float32),
                            jnp.zeros((H,), jnp.float32)], axis=0),   # (2, H): gamma, beta
        # stacked per-layer weights (bf16 for the MXU)
        "wqkv": nrm((L, H, 3 * H), jnp.bfloat16),   # fused Wq|Wk|Wv
        "wo":   nrm((L, H, H), jnp.bfloat16),
        "w1":   nrm((L, H, I), jnp.bfloat16),
        "w2":   nrm((L, I, H), jnp.bfloat16),
        # stacked per-layer f32 bias slabs
        "bqkv": jnp.zeros((L, 1, 3 * H), jnp.float32),
        "b1":   jnp.zeros((L, 1, I), jnp.float32),
        "lnb":  lnb,
        # classifier head
        "cls_w1": cls_w1,
        "cls_w2": cls_w2,
        "cls_b": jnp.zeros((2, CLS_OUT_PAD), jnp.float32),   # row0=b1 (64 used), row1=b2 (3 used)
    }


# ------------------------------- forward pass ----------------------------------
def bert_classifier_forward(params, input_ids, attention_mask):
    """input_ids: (B, S) int32, attention_mask: (B, S) int -> logits (B, 3)."""
    B, S = input_ids.shape
    H, I, L = HIDDEN, INTERMEDIATE, NUM_LAYERS

    # ---- embeddings (gather is glue, plain JAX); token_type_ids == 0 ----
    emb = (jnp.take(params["word_emb"], input_ids, axis=0)
           + params["pos_emb"][None, :S, :]
           + params["type_emb"][0][None, None, :]).astype(jnp.float32)    # (B, S, H)

    # BERT additive mask: 0 where attended, -10000 where masked.
    add_mask = ((1.0 - attention_mask.astype(jnp.float32)) * -10000.0).reshape(B, 1, S)

    kernel = functools.partial(
        _bert_fused_kernel, num_layers=L, num_heads=NUM_HEADS,
        head_dim=HEAD_DIM, eps=LN_EPS, scale=1.0 / math.sqrt(HEAD_DIM))

    out = pl.pallas_call(
        kernel,
        out_shape=jax.ShapeDtypeStruct((B, CLS_PAD_ROWS, CLS_OUT_PAD), jnp.float32),
        grid=(B,),
        in_specs=[
            pl.BlockSpec((None, S, H), lambda b: (b, 0, 0)),          # embeddings (per batch)
            pl.BlockSpec((None, 1, S), lambda b: (b, 0, 0)),          # additive mask (per batch)
            pl.BlockSpec((2, H), lambda b: (0, 0)),                   # emb LN gamma/beta
            pl.BlockSpec((L, H, 3 * H), lambda b: (0, 0, 0)),         # stacked Wqkv (bf16)
            pl.BlockSpec((L, H, H), lambda b: (0, 0, 0)),             # stacked Wo (bf16)
            pl.BlockSpec((L, H, I), lambda b: (0, 0, 0)),             # stacked W1 (bf16)
            pl.BlockSpec((L, I, H), lambda b: (0, 0, 0)),             # stacked W2 (bf16)
            pl.BlockSpec((L, 1, 3 * H), lambda b: (0, 0, 0)),         # stacked bqkv
            pl.BlockSpec((L, 1, I), lambda b: (0, 0, 0)),             # stacked b1
            pl.BlockSpec((L, 6, H), lambda b: (0, 0, 0)),             # packed bo/LN/b2 params
            pl.BlockSpec((H, CLS_H_PAD), lambda b: (0, 0)),           # cls W1 (padded, bf16)
            pl.BlockSpec((CLS_H_PAD, CLS_OUT_PAD), lambda b: (0, 0)), # cls W2 (padded, bf16)
            pl.BlockSpec((2, CLS_OUT_PAD), lambda b: (0, 0)),         # cls biases (padded)
        ],
        out_specs=pl.BlockSpec((None, CLS_PAD_ROWS, CLS_OUT_PAD), lambda b: (b, 0, 0)),
        compiler_params=pltpu.CompilerParams(dimension_semantics=("parallel",)),
    )(emb, add_mask, params["embln"], params["wqkv"], params["wo"],
      params["w1"], params["w2"], params["bqkv"], params["b1"], params["lnb"],
      params["cls_w1"], params["cls_w2"], params["cls_b"])

    # TODO(synk): BertClassifier uses last_hidden_state[:, 0, :] directly (no pooler) —
    # that is exactly what the kernel computes.
    return out[:, 0, :CLS_OUT]                                           # (B, 3) f32


# ----------------------------------- main --------------------------------------
if __name__ == "__main__":
    key = jax.random.PRNGKey(0)
    pkey, ikey = jax.random.split(key)
    params = init_params(pkey)

    B, S = 2, 8
    input_ids = jax.random.randint(ikey, (B, S), 0, VOCAB, dtype=jnp.int32)
    attention_mask = jnp.ones((B, S), dtype=jnp.int32).at[1, 6:].set(0)

    logits = bert_classifier_forward(params, input_ids, attention_mask)
    logits = jax.block_until_ready(logits)
    assert logits.shape == (B, CLS_OUT) and logits.dtype == jnp.float32
    print("KERNEL_OK")
</pallas_src>

<mosaic_0001>
module attributes {stable_mosaic.version = 11 : i64} {
  func.func @_bert_fused_kernel(%arg0: i32, %arg1: memref<1x8x128xf32, #tpu.memory_space<vmem>>, %arg2: memref<1x1x8xf32, #tpu.memory_space<vmem>>, %arg3: memref<2x128xf32, #tpu.memory_space<vmem>>, %arg4: memref<2x128x384xbf16, #tpu.memory_space<vmem>>, %arg5: memref<2x128x128xbf16, #tpu.memory_space<vmem>>, %arg6: memref<2x128x512xbf16, #tpu.memory_space<vmem>>, %arg7: memref<2x512x128xbf16, #tpu.memory_space<vmem>>, %arg8: memref<2x1x384xf32, #tpu.memory_space<vmem>>, %arg9: memref<2x1x512xf32, #tpu.memory_space<vmem>>, %arg10: memref<2x6x128xf32, #tpu.memory_space<vmem>>, %arg11: memref<128x64xbf16, #tpu.memory_space<vmem>>, %arg12: memref<64x128xbf16, #tpu.memory_space<vmem>>, %arg13: memref<2x128xf32, #tpu.memory_space<vmem>>, %arg14: memref<1x8x128xf32, #tpu.memory_space<vmem>>) attributes {dimension_semantics = [#tpu.dimension_semantics<parallel>], iteration_bounds = array<i64: 2>, scalar_prefetch = 0 : i64, scratch_operands = 0 : i64, tpu.core_type = #tpu.core_type<tc>, window_params = [{transform_indices = @transform_0, window_bounds = array<i64: 1, 8, 128>}, {transform_indices = @transform_1, window_bounds = array<i64: 1, 1, 8>}, {pipeline_mode = #tpu.pipeline_mode<synchronous>, transform_indices = @transform_2, window_bounds = array<i64: 2, 128>}, {pipeline_mode = #tpu.pipeline_mode<synchronous>, transform_indices = @transform_3, window_bounds = array<i64: 2, 128, 384>}, {pipeline_mode = #tpu.pipeline_mode<synchronous>, transform_indices = @transform_4, window_bounds = array<i64: 2, 128, 128>}, {pipeline_mode = #tpu.pipeline_mode<synchronous>, transform_indices = @transform_5, window_bounds = array<i64: 2, 128, 512>}, {pipeline_mode = #tpu.pipeline_mode<synchronous>, transform_indices = @transform_6, window_bounds = array<i64: 2, 512, 128>}, {pipeline_mode = #tpu.pipeline_mode<synchronous>, transform_indices = @transform_7, window_bounds = array<i64: 2, 1, 384>}, {pipeline_mode = #tpu.pipeline_mode<synchronous>, transform_indices = @transform_8, window_bounds = array<i64: 2, 1, 512>}, {pipeline_mode = #tpu.pipeline_mode<synchronous>, transform_indices = @transform_9, window_bounds = array<i64: 2, 6, 128>}, {pipeline_mode = #tpu.pipeline_mode<synchronous>, transform_indices = @transform_10, window_bounds = array<i64: 128, 64>}, {pipeline_mode = #tpu.pipeline_mode<synchronous>, transform_indices = @transform_11, window_bounds = array<i64: 64, 128>}, {pipeline_mode = #tpu.pipeline_mode<synchronous>, transform_indices = @transform_12, window_bounds = array<i64: 2, 128>}, {transform_indices = @transform_13, window_bounds = array<i64: 1, 8, 128>}]} {
    %c0 = arith.constant 0 : index
    %c0_0 = arith.constant 0 : index
    %c0_1 = arith.constant 0 : index
    %0 = vector.load %arg1[%c0, %c0_0, %c0_1] : memref<1x8x128xf32, #tpu.memory_space<vmem>>, vector<1x8x128xf32>
    %1 = vector.shape_cast %0 : vector<1x8x128xf32> to vector<8x128xf32>
    %c0_2 = arith.constant 0 : index
    %c0_3 = arith.constant 0 : index
    %c0_4 = arith.constant 0 : index
    %2 = vector.load %arg2[%c0_2, %c0_3, %c0_4] : memref<1x1x8xf32, #tpu.memory_space<vmem>>, vector<1x1x8xf32>
    %3 = vector.shape_cast %2 : vector<1x1x8xf32> to vector<1x8xf32>
    %c0_5 = arith.constant 0 : index
    %c0_6 = arith.constant 0 : index
    %4 = vector.load %arg3[%c0_5, %c0_6] : memref<2x128xf32, #tpu.memory_space<vmem>>, vector<1x128xf32>
    %c1 = arith.constant 1 : index
    %c0_7 = arith.constant 0 : index
    %5 = vector.load %arg3[%c1, %c0_7] : memref<2x128xf32, #tpu.memory_space<vmem>>, vector<1x128xf32>
    %cst = arith.constant dense<0.000000e+00> : vector<8xf32>
    %6 = vector.multi_reduction <add>, %1, %cst [1] : vector<8x128xf32> to vector<8xf32>
    %7 = vector.shape_cast %6 : vector<8xf32> to vector<8x1xf32>
    %cst_8 = arith.constant 1.280000e+02 : f32
    %8 = vector.broadcast %cst_8 : f32 to vector<8x1xf32>
    %9 = arith.divf %7, %8 : vector<8x1xf32>
    %10 = vector.broadcast %9 : vector<8x1xf32> to vector<8x128xf32>
    %11 = arith.subf %1, %10 : vector<8x128xf32>
    %12 = arith.mulf %11, %11 : vector<8x128xf32>
    %cst_9 = arith.constant dense<0.000000e+00> : vector<8xf32>
    %13 = vector.multi_reduction <add>, %12, %cst_9 [1] : vector<8x128xf32> to vector<8xf32>
    %14 = vector.shape_cast %13 : vector<8xf32> to vector<8x1xf32>
    %cst_10 = arith.constant 1.280000e+02 : f32
    %15 = vector.broadcast %cst_10 : f32 to vector<8x1xf32>
    %16 = arith.divf %14, %15 : vector<8x1xf32>
    %17 = vector.broadcast %9 : vector<8x1xf32> to vector<8x128xf32>
    %18 = arith.subf %1, %17 : vector<8x128xf32>
    %cst_11 = arith.constant 9.99999996E-13 : f32
    %19 = vector.broadcast %cst_11 : f32 to vector<8x1xf32>
    %20 = arith.addf %16, %19 : vector<8x1xf32>
    %21 = math.rsqrt %20 : vector<8x1xf32>
    %22 = vector.broadcast %21 : vector<8x1xf32> to vector<8x128xf32>
    %23 = arith.mulf %18, %22 : vector<8x128xf32>
    %24 = vector.broadcast %4 : vector<1x128xf32> to vector<8x128xf32>
    %25 = arith.mulf %23, %24 : vector<8x128xf32>
    %26 = vector.broadcast %5 : vector<1x128xf32> to vector<8x128xf32>
    %27 = arith.addf %25, %26 : vector<8x128xf32>
    %28 = arith.truncf %27 : vector<8x128xf32> to vector<8x128xbf16>
    %c0_12 = arith.constant 0 : index
    %c0_13 = arith.constant 0 : index
    %c0_14 = arith.constant 0 : index
    %29 = vector.load %arg4[%c0_12, %c0_13, %c0_14] : memref<2x128x384xbf16, #tpu.memory_space<vmem>>, vector<1x128x384xbf16>
    %30 = vector.shape_cast %29 : vector<1x128x384xbf16> to vector<128x384xbf16>
    %cst_15 = arith.constant dense<0.000000e+00> : vector<8x384xf32>
    %31 = tpu.matmul %28, %30, %cst_15 {dimension_numbers = #tpu.dot_dimension_numbers<[1], [0], [0], [1], [0, 0, 1, 1], [], []>} : vector<8x128xbf16>, vector<128x384xbf16>, vector<8x384xf32> -> vector<8x384xf32>
    %c0_16 = arith.constant 0 : index
    %c0_17 = arith.constant 0 : index
    %c0_18 = arith.constant 0 : index
    %32 = vector.load %arg8[%c0_16, %c0_17, %c0_18] : memref<2x1x384xf32, #tpu.memory_space<vmem>>, vector<1x1x384xf32>
    %33 = vector.shape_cast %32 : vector<1x1x384xf32> to vector<1x384xf32>
    %34 = vector.broadcast %33 : vector<1x384xf32> to vector<8x384xf32>
    %35 = arith.addf %31, %34 : vector<8x384xf32>
    %36 = vector.extract_strided_slice %35 {offsets = [0, 0], sizes = [8, 32], strides = [1, 1]} : vector<8x384xf32> to vector<8x32xf32>
    %37 = vector.extract_strided_slice %35 {offsets = [0, 128], sizes = [8, 32], strides = [1, 1]} : vector<8x384xf32> to vector<8x32xf32>
    %38 = vector.extract_strided_slice %35 {offsets = [0, 256], sizes = [8, 32], strides = [1, 1]} : vector<8x384xf32> to vector<8x32xf32>
    %39 = arith.truncf %36 : vector<8x32xf32> to vector<8x32xbf16>
    %40 = arith.truncf %37 : vector<8x32xf32> to vector<8x32xbf16>
    "tpu.trace_start"() <{level = 10 : i32, message = "qd,kd->qk"}> : () -> ()
    %cst_19 = arith.constant dense<0.000000e+00> : vector<8x8xf32>
    %41 = tpu.matmul %39, %40, %cst_19 {dimension_numbers = #tpu.dot_dimension_numbers<[1], [1], [0], [0], [0, 0, 1, 0], [], []>} : vector<8x32xbf16>, vector<8x32xbf16>, vector<8x8xf32> -> vector<8x8xf32>
    "tpu.trace_stop"() : () -> ()
    %cst_20 = arith.constant 0.176776692 : f32
    %42 = vector.broadcast %cst_20 : f32 to vector<8x8xf32>
    %43 = arith.mulf %41, %42 : vector<8x8xf32>
    %44 = vector.broadcast %3 : vector<1x8xf32> to vector<8x8xf32>
    %45 = arith.addf %43, %44 : vector<8x8xf32>
    %cst_21 = arith.constant dense<0xFF800000> : vector<8xf32>
    %46 = vector.multi_reduction <maximumf>, %45, %cst_21 [1] : vector<8x8xf32> to vector<8xf32>
    %47 = vector.shape_cast %46 : vector<8xf32> to vector<8x1xf32>
    %48 = vector.broadcast %47 : vector<8x1xf32> to vector<8x8xf32>
    %49 = arith.subf %45, %48 : vector<8x8xf32>
    %50 = math.exp %49 : vector<8x8xf32>
    %cst_22 = arith.constant dense<0.000000e+00> : vector<8xf32>
    %51 = vector.multi_reduction <add>, %50, %cst_22 [1] : vector<8x8xf32> to vector<8xf32>
    %52 = vector.shape_cast %51 : vector<8xf32> to vector<8x1xf32>
    %53 = tpu.reciprocal %52 {approx = true} : vector<8x1xf32> -> vector<8x1xf32>
    %54 = vector.broadcast %53 : vector<8x1xf32> to vector<8x8xf32>
    %55 = arith.mulf %50, %54 : vector<8x8xf32>
    %56 = arith.truncf %55 : vector<8x8xf32> to vector<8x8xbf16>
    %57 = arith.truncf %38 : vector<8x32xf32> to vector<8x32xbf16>
    %cst_23 = arith.constant dense<0.000000e+00> : vector<8x32xf32>
    %58 = tpu.matmul %56, %57, %cst_23 {dimension_numbers = #tpu.dot_dimension_numbers<[1], [0], [0], [1], [0, 0, 1, 1], [], []>} : vector<8x8xbf16>, vector<8x32xbf16>, vector<8x32xf32> -> vector<8x32xf32>
    %59 = vector.extract_strided_slice %35 {offsets = [0, 32], sizes = [8, 32], strides = [1, 1]} : vector<8x384xf32> to vector<8x32xf32>
    %60 = vector.extract_strided_slice %35 {offsets = [0, 160], sizes = [8, 32], strides = [1, 1]} : vector<8x384xf32> to vector<8x32xf32>
    %61 = vector.extract_strided_slice %35 {offsets = [0, 288], sizes = [8, 32], strides = [1, 1]} : vector<8x384xf32> to vector<8x32xf32>
    %62 = arith.truncf %59 : vector<8x32xf32> to vector<8x32xbf16>
    %63 = arith.truncf %60 : vector<8x32xf32> to vector<8x32xbf16>
    "tpu.trace_start"() <{level = 10 : i32, message = "qd,kd->qk"}> : () -> ()
    %cst_24 = arith.constant dense<0.000000e+00> : vector<8x8xf32>
    %64 = tpu.matmul %62, %63, %cst_24 {dimension_numbers = #tpu.dot_dimension_numbers<[1], [1], [0], [0], [0, 0, 1, 0], [], []>} : vector<8x32xbf16>, vector<8x32xbf16>, vector<8x8xf32> -> vector<8x8xf32>
    "tpu.trace_stop"() : () -> ()
    %cst_25 = arith.constant 0.176776692 : f32
    %65 = vector.broadcast %cst_25 : f32 to vector<8x8xf32>
    %66 = arith.mulf %64, %65 : vector<8x8xf32>
    %67 = vector.broadcast %3 : vector<1x8xf32> to vector<8x8xf32>
    %68 = arith.addf %66, %67 : vector<8x8xf32>
    %cst_26 = arith.constant dense<0xFF800000> : vector<8xf32>
    %69 = vector.multi_reduction <maximumf>, %68, %cst_26 [1] : vector<8x8xf32> to vector<8xf32>
    %70 = vector.shape_cast %69 : vector<8xf32> to vector<8x1xf32>
    %71 = vector.broadcast %70 : vector<8x1xf32> to vector<8x8xf32>
    %72 = arith.subf %68, %71 : vector<8x8xf32>
    %73 = math.exp %72 : vector<8x8xf32>
    %cst_27 = arith.constant dense<0.000000e+00> : vector<8xf32>
    %74 = vector.multi_reduction <add>, %73, %cst_27 [1] : vector<8x8xf32> to vector<8xf32>
    %75 = vector.shape_cast %74 : vector<8xf32> to vector<8x1xf32>
    %76 = tpu.reciprocal %75 {approx = true} : vector<8x1xf32> -> vector<8x1xf32>
    %77 = vector.broadcast %76 : vector<8x1xf32> to vector<8x8xf32>
    %78 = arith.mulf %73, %77 : vector<8x8xf32>
    %79 = arith.truncf %78 : vector<8x8xf32> to vector<8x8xbf16>
    %80 = arith.truncf %61 : vector<8x32xf32> to vector<8x32xbf16>
    %cst_28 = arith.constant dense<0.000000e+00> : vector<8x32xf32>
    %81 = tpu.matmul %79, %80, %cst_28 {dimension_numbers = #tpu.dot_dimension_numbers<[1], [0], [0], [1], [0, 0, 1, 1], [], []>} : vector<8x8xbf16>, vector<8x32xbf16>, vector<8x32xf32> -> vector<8x32xf32>
    %82 = vector.extract_strided_slice %35 {offsets = [0, 64], sizes = [8, 32], strides = [1, 1]} : vector<8x384xf32> to vector<8x32xf32>
    %83 = vector.extract_strided_slice %35 {offsets = [0, 192], sizes = [8, 32], strides = [1, 1]} : vector<8x384xf32> to vector<8x32xf32>
    %84 = vector.extract_strided_slice %35 {offsets = [0, 320], sizes = [8, 32], strides = [1, 1]} : vector<8x384xf32> to vector<8x32xf32>
    %85 = arith.truncf %82 : vector<8x32xf32> to vector<8x32xbf16>
    %86 = arith.truncf %83 : vector<8x32xf32> to vector<8x32xbf16>
    "tpu.trace_start"() <{level = 10 : i32, message = "qd,kd->qk"}> : () -> ()
    %cst_29 = arith.constant dense<0.000000e+00> : vector<8x8xf32>
    %87 = tpu.matmul %85, %86, %cst_29 {dimension_numbers = #tpu.dot_dimension_numbers<[1], [1], [0], [0], [0, 0, 1, 0], [], []>} : vector<8x32xbf16>, vector<8x32xbf16>, vector<8x8xf32> -> vector<8x8xf32>
    "tpu.trace_stop"() : () -> ()
    %cst_30 = arith.constant 0.176776692 : f32
    %88 = vector.broadcast %cst_30 : f32 to vector<8x8xf32>
    %89 = arith.mulf %87, %88 : vector<8x8xf32>
    %90 = vector.broadcast %3 : vector<1x8xf32> to vector<8x8xf32>
    %91 = arith.addf %89, %90 : vector<8x8xf32>
    %cst_31 = arith.constant dense<0xFF800000> : vector<8xf32>
    %92 = vector.multi_reduction <maximumf>, %91, %cst_31 [1] : vector<8x8xf32> to vector<8xf32>
    %93 = vector.shape_cast %92 : vector<8xf32> to vector<8x1xf32>
    %94 = vector.broadcast %93 : vector<8x1xf32> to vector<8x8xf32>
    %95 = arith.subf %91, %94 : vector<8x8xf32>
    %96 = math.exp %95 : vector<8x8xf32>
    %cst_32 = arith.constant dense<0.000000e+00> : vector<8xf32>
    %97 = vector.multi_reduction <add>, %96, %cst_32 [1] : vector<8x8xf32> to vector<8xf32>
    %98 = vector.shape_cast %97 : vector<8xf32> to vector<8x1xf32>
    %99 = tpu.reciprocal %98 {approx = true} : vector<8x1xf32> -> vector<8x1xf32>
    %100 = vector.broadcast %99 : vector<8x1xf32> to vector<8x8xf32>
    %101 = arith.mulf %96, %100 : vector<8x8xf32>
    %102 = arith.truncf %101 : vector<8x8xf32> to vector<8x8xbf16>
    %103 = arith.truncf %84 : vector<8x32xf32> to vector<8x32xbf16>
    %cst_33 = arith.constant dense<0.000000e+00> : vector<8x32xf32>
    %104 = tpu.matmul %102, %103, %cst_33 {dimension_numbers = #tpu.dot_dimension_numbers<[1], [0], [0], [1], [0, 0, 1, 1], [], []>} : vector<8x8xbf16>, vector<8x32xbf16>, vector<8x32xf32> -> vector<8x32xf32>
    %105 = vector.extract_strided_slice %35 {offsets = [0, 96], sizes = [8, 32], strides = [1, 1]} : vector<8x384xf32> to vector<8x32xf32>
    %106 = vector.extract_strided_slice %35 {offsets = [0, 224], sizes = [8, 32], strides = [1, 1]} : vector<8x384xf32> to vector<8x32xf32>
    %107 = vector.extract_strided_slice %35 {offsets = [0, 352], sizes = [8, 32], strides = [1, 1]} : vector<8x384xf32> to vector<8x32xf32>
    %108 = arith.truncf %105 : vector<8x32xf32> to vector<8x32xbf16>
    %109 = arith.truncf %106 : vector<8x32xf32> to vector<8x32xbf16>
    "tpu.trace_start"() <{level = 10 : i32, message = "qd,kd->qk"}> : () -> ()
    %cst_34 = arith.constant dense<0.000000e+00> : vector<8x8xf32>
    %110 = tpu.matmul %108, %109, %cst_34 {dimension_numbers = #tpu.dot_dimension_numbers<[1], [1], [0], [0], [0, 0, 1, 0], [], []>} : vector<8x32xbf16>, vector<8x32xbf16>, vector<8x8xf32> -> vector<8x8xf32>
    "tpu.trace_stop"() : () -> ()
    %cst_35 = arith.constant 0.176776692 : f32
    %111 = vector.broadcast %cst_35 : f32 to vector<8x8xf32>
    %112 = arith.mulf %110, %111 : vector<8x8xf32>
    %113 = vector.broadcast %3 : vector<1x8xf32> to vector<8x8xf32>
    %114 = arith.addf %112, %113 : vector<8x8xf32>
    %cst_36 = arith.constant dense<0xFF800000> : vector<8xf32>
    %115 = vector.multi_reduction <maximumf>, %114, %cst_36 [1] : vector<8x8xf32> to vector<8xf32>
    %116 = vector.shape_cast %115 : vector<8xf32> to vector<8x1xf32>
    %117 = vector.broadcast %116 : vector<8x1xf32> to vector<8x8xf32>
    %118 = arith.subf %114, %117 : vector<8x8xf32>
    %119 = math.exp %118 : vector<8x8xf32>
    %cst_37 = arith.constant dense<0.000000e+00> : vector<8xf32>
    %120 = vector.multi_reduction <add>, %119, %cst_37 [1] : vector<8x8xf32> to vector<8xf32>
    %121 = vector.shape_cast %120 : vector<8xf32> to vector<8x1xf32>
    %122 = tpu.reciprocal %121 {approx = true} : vector<8x1xf32> -> vector<8x1xf32>
    %123 = vector.broadcast %122 : vector<8x1xf32> to vector<8x8xf32>
    %124 = arith.mulf %119, %123 : vector<8x8xf32>
    %125 = arith.truncf %124 : vector<8x8xf32> to vector<8x8xbf16>
    %126 = arith.truncf %107 : vector<8x32xf32> to vector<8x32xbf16>
    %cst_38 = arith.constant dense<0.000000e+00> : vector<8x32xf32>
    %127 = tpu.matmul %125, %126, %cst_38 {dimension_numbers = #tpu.dot_dimension_numbers<[1], [0], [0], [1], [0, 0, 1, 1], [], []>} : vector<8x8xbf16>, vector<8x32xbf16>, vector<8x32xf32> -> vector<8x32xf32>
    %128 = tpu.concatenate %58, %81, %104, %127 in 1 : vector<8x32xf32>, vector<8x32xf32>, vector<8x32xf32>, vector<8x32xf32> -> vector<8x128xf32>
    %129 = arith.truncf %128 : vector<8x128xf32> to vector<8x128xbf16>
    %c0_39 = arith.constant 0 : index
    %c0_40 = arith.constant 0 : index
    %c0_41 = arith.constant 0 : index
    %130 = vector.load %arg5[%c0_39, %c0_40, %c0_41] : memref<2x128x128xbf16, #tpu.memory_space<vmem>>, vector<1x128x128xbf16>
    %131 = vector.shape_cast %130 : vector<1x128x128xbf16> to vector<128x128xbf16>
    %cst_42 = arith.constant dense<0.000000e+00> : vector<8x128xf32>
    %132 = tpu.matmul %129, %131, %cst_42 {dimension_numbers = #tpu.dot_dimension_numbers<[1], [0], [0], [1], [0, 0, 1, 1], [], []>} : vector<8x128xbf16>, vector<128x128xbf16>, vector<8x128xf32> -> vector<8x128xf32>
    %c0_43 = arith.constant 0 : index
    %c0_44 = arith.constant 0 : index
    %c0_45 = arith.constant 0 : index
    %133 = vector.load %arg10[%c0_43, %c0_44, %c0_45] : memref<2x6x128xf32, #tpu.memory_space<vmem>>, vector<1x1x128xf32>
    %134 = vector.shape_cast %133 : vector<1x1x128xf32> to vector<1x128xf32>
    %135 = vector.broadcast %134 : vector<1x128xf32> to vector<8x128xf32>
    %136 = arith.addf %132, %135 : vector<8x128xf32>
    %137 = arith.addf %27, %136 : vector<8x128xf32>
    %c0_46 = arith.constant 0 : index
    %c1_47 = arith.constant 1 : index
    %c0_48 = arith.constant 0 : index
    %138 = vector.load %arg10[%c0_46, %c1_47, %c0_48] : memref<2x6x128xf32, #tpu.memory_space<vmem>>, vector<1x1x128xf32>
    %139 = vector.shape_cast %138 : vector<1x1x128xf32> to vector<1x128xf32>
    %c0_49 = arith.constant 0 : index
    %c2 = arith.constant 2 : index
    %c0_50 = arith.constant 0 : index
    %140 = vector.load %arg10[%c0_49, %c2, %c0_50] : memref<2x6x128xf32, #tpu.memory_space<vmem>>, vector<1x1x128xf32>
    %141 = vector.shape_cast %140 : vector<1x1x128xf32> to vector<1x128xf32>
    %cst_51 = arith.constant dense<0.000000e+00> : vector<8xf32>
    %142 = vector.multi_reduction <add>, %137, %cst_51 [1] : vector<8x128xf32> to vector<8xf32>
    %143 = vector.shape_cast %142 : vector<8xf32> to vector<8x1xf32>
    %cst_52 = arith.constant 1.280000e+02 : f32
    %144 = vector.broadcast %cst_52 : f32 to vector<8x1xf32>
    %145 = arith.divf %143, %144 : vector<8x1xf32>
    %146 = vector.broadcast %145 : vector<8x1xf32> to vector<8x128xf32>
    %147 = arith.subf %137, %146 : vector<8x128xf32>
    %148 = arith.mulf %147, %147 : vector<8x128xf32>
    %cst_53 = arith.constant dense<0.000000e+00> : vector<8xf32>
    %149 = vector.multi_reduction <add>, %148, %cst_53 [1] : vector<8x128xf32> to vector<8xf32>
    %150 = vector.shape_cast %149 : vector<8xf32> to vector<8x1xf32>
    %cst_54 = arith.constant 1.280000e+02 : f32
    %151 = vector.broadcast %cst_54 : f32 to vector<8x1xf32>
    %152 = arith.divf %150, %151 : vector<8x1xf32>
    %153 = vector.broadcast %145 : vector<8x1xf32> to vector<8x128xf32>
    %154 = arith.subf %137, %153 : vector<8x128xf32>
    %cst_55 = arith.constant 9.99999996E-13 : f32
    %155 = vector.broadcast %cst_55 : f32 to vector<8x1xf32>
    %156 = arith.addf %152, %155 : vector<8x1xf32>
    %157 = math.rsqrt %156 : vector<8x1xf32>
    %158 = vector.broadcast %157 : vector<8x1xf32> to vector<8x128xf32>
    %159 = arith.mulf %154, %158 : vector<8x128xf32>
    %160 = vector.broadcast %139 : vector<1x128xf32> to vector<8x128xf32>
    %161 = arith.mulf %159, %160 : vector<8x128xf32>
    %162 = vector.broadcast %141 : vector<1x128xf32> to vector<8x128xf32>
    %163 = arith.addf %161, %162 : vector<8x128xf32>
    %164 = arith.truncf %163 : vector<8x128xf32> to vector<8x128xbf16>
    %c0_56 = arith.constant 0 : index
    %c0_57 = arith.constant 0 : index
    %c0_58 = arith.constant 0 : index
    %165 = vector.load %arg6[%c0_56, %c0_57, %c0_58] : memref<2x128x512xbf16, #tpu.memory_space<vmem>>, vector<1x128x512xbf16>
    %166 = vector.shape_cast %165 : vector<1x128x512xbf16> to vector<128x512xbf16>
    %cst_59 = arith.constant dense<0.000000e+00> : vector<8x512xf32>
    %167 = tpu.matmul %164, %166, %cst_59 {dimension_numbers = #tpu.dot_dimension_numbers<[1], [0], [0], [1], [0, 0, 1, 1], [], []>} : vector<8x128xbf16>, vector<128x512xbf16>, vector<8x512xf32> -> vector<8x512xf32>
    %c0_60 = arith.constant 0 : index
    %c0_61 = arith.constant 0 : index
    %c0_62 = arith.constant 0 : index
    %168 = vector.load %arg9[%c0_60, %c0_61, %c0_62] : memref<2x1x512xf32, #tpu.memory_space<vmem>>, vector<1x1x512xf32>
    %169 = vector.shape_cast %168 : vector<1x1x512xf32> to vector<1x512xf32>
    %170 = vector.broadcast %169 : vector<1x512xf32> to vector<8x512xf32>
    %171 = arith.addf %167, %170 : vector<8x512xf32>
    %172 = arith.mulf %171, %171 : vector<8x512xf32>
    %173 = arith.mulf %171, %172 : vector<8x512xf32>
    %cst_63 = arith.constant 4.471500e-02 : f32
    %174 = vector.broadcast %cst_63 : f32 to vector<8x512xf32>
    %175 = arith.mulf %174, %173 : vector<8x512xf32>
    %176 = arith.addf %171, %175 : vector<8x512xf32>
    %cst_64 = arith.constant 0.797884583 : f32
    %177 = vector.broadcast %cst_64 : f32 to vector<8x512xf32>
    %178 = arith.mulf %177, %176 : vector<8x512xf32>
    %179 = math.tanh %178 : vector<8x512xf32>
    %cst_65 = arith.constant 1.000000e+00 : f32
    %180 = vector.broadcast %cst_65 : f32 to vector<8x512xf32>
    %181 = arith.addf %180, %179 : vector<8x512xf32>
    %cst_66 = arith.constant 5.000000e-01 : f32
    %182 = vector.broadcast %cst_66 : f32 to vector<8x512xf32>
    %183 = arith.mulf %182, %181 : vector<8x512xf32>
    %184 = arith.mulf %171, %183 : vector<8x512xf32>
    %185 = arith.truncf %184 : vector<8x512xf32> to vector<8x512xbf16>
    %c0_67 = arith.constant 0 : index
    %c0_68 = arith.constant 0 : index
    %c0_69 = arith.constant 0 : index
    %186 = vector.load %arg7[%c0_67, %c0_68, %c0_69] : memref<2x512x128xbf16, #tpu.memory_space<vmem>>, vector<1x512x128xbf16>
    %187 = vector.shape_cast %186 : vector<1x512x128xbf16> to vector<512x128xbf16>
    %cst_70 = arith.constant dense<0.000000e+00> : vector<8x128xf32>
    %188 = tpu.matmul %185, %187, %cst_70 {dimension_numbers = #tpu.dot_dimension_numbers<[1], [0], [0], [1], [0, 0, 1, 1], [], []>} : vector<8x512xbf16>, vector<512x128xbf16>, vector<8x128xf32> -> vector<8x128xf32>
    %c0_71 = arith.constant 0 : index
    %c3 = arith.constant 3 : index
    %c0_72 = arith.constant 0 : index
    %189 = vector.load %arg10[%c0_71, %c3, %c0_72] : memref<2x6x128xf32, #tpu.memory_space<vmem>>, vector<1x1x128xf32>
    %190 = vector.shape_cast %189 : vector<1x1x128xf32> to vector<1x128xf32>
    %191 = vector.broadcast %190 : vector<1x128xf32> to vector<8x128xf32>
    %192 = arith.addf %188, %191 : vector<8x128xf32>
    %193 = arith.addf %163, %192 : vector<8x128xf32>
    %c0_73 = arith.constant 0 : index
    %c4 = arith.constant 4 : index
    %c0_74 = arith.constant 0 : index
    %194 = vector.load %arg10[%c0_73, %c4, %c0_74] : memref<2x6x128xf32, #tpu.memory_space<vmem>>, vector<1x1x128xf32>
    %195 = vector.shape_cast %194 : vector<1x1x128xf32> to vector<1x128xf32>
    %c0_75 = arith.constant 0 : index
    %c5 = arith.constant 5 : index
    %c0_76 = arith.constant 0 : index
    %196 = vector.load %arg10[%c0_75, %c5, %c0_76] : memref<2x6x128xf32, #tpu.memory_space<vmem>>, vector<1x1x128xf32>
    %197 = vector.shape_cast %196 : vector<1x1x128xf32> to vector<1x128xf32>
    %cst_77 = arith.constant dense<0.000000e+00> : vector<8xf32>
    %198 = vector.multi_reduction <add>, %193, %cst_77 [1] : vector<8x128xf32> to vector<8xf32>
    %199 = vector.shape_cast %198 : vector<8xf32> to vector<8x1xf32>
    %cst_78 = arith.constant 1.280000e+02 : f32
    %200 = vector.broadcast %cst_78 : f32 to vector<8x1xf32>
    %201 = arith.divf %199, %200 : vector<8x1xf32>
    %202 = vector.broadcast %201 : vector<8x1xf32> to vector<8x128xf32>
    %203 = arith.subf %193, %202 : vector<8x128xf32>
    %204 = arith.mulf %203, %203 : vector<8x128xf32>
    %cst_79 = arith.constant dense<0.000000e+00> : vector<8xf32>
    %205 = vector.multi_reduction <add>, %204, %cst_79 [1] : vector<8x128xf32> to vector<8xf32>
    %206 = vector.shape_cast %205 : vector<8xf32> to vector<8x1xf32>
    %cst_80 = arith.constant 1.280000e+02 : f32
    %207 = vector.broadcast %cst_80 : f32 to vector<8x1xf32>
    %208 = arith.divf %206, %207 : vector<8x1xf32>
    %209 = vector.broadcast %201 : vector<8x1xf32> to vector<8x128xf32>
    %210 = arith.subf %193, %209 : vector<8x128xf32>
    %cst_81 = arith.constant 9.99999996E-13 : f32
    %211 = vector.broadcast %cst_81 : f32 to vector<8x1xf32>
    %212 = arith.addf %208, %211 : vector<8x1xf32>
    %213 = math.rsqrt %212 : vector<8x1xf32>
    %214 = vector.broadcast %213 : vector<8x1xf32> to vector<8x128xf32>
    %215 = arith.mulf %210, %214 : vector<8x128xf32>
    %216 = vector.broadcast %195 : vector<1x128xf32> to vector<8x128xf32>
    %217 = arith.mulf %215, %216 : vector<8x128xf32>
    %218 = vector.broadcast %197 : vector<1x128xf32> to vector<8x128xf32>
    %219 = arith.addf %217, %218 : vector<8x128xf32>
    %220 = arith.truncf %219 : vector<8x128xf32> to vector<8x128xbf16>
    %c1_82 = arith.constant 1 : index
    %c0_83 = arith.constant 0 : index
    %c0_84 = arith.constant 0 : index
    %221 = vector.load %arg4[%c1_82, %c0_83, %c0_84] : memref<2x128x384xbf16, #tpu.memory_space<vmem>>, vector<1x128x384xbf16>
    %222 = vector.shape_cast %221 : vector<1x128x384xbf16> to vector<128x384xbf16>
    %cst_85 = arith.constant dense<0.000000e+00> : vector<8x384xf32>
    %223 = tpu.matmul %220, %222, %cst_85 {dimension_numbers = #tpu.dot_dimension_numbers<[1], [0], [0], [1], [0, 0, 1, 1], [], []>} : vector<8x128xbf16>, vector<128x384xbf16>, vector<8x384xf32> -> vector<8x384xf32>
    %c1_86 = arith.constant 1 : index
    %c0_87 = arith.constant 0 : index
    %c0_88 = arith.constant 0 : index
    %224 = vector.load %arg8[%c1_86, %c0_87, %c0_88] : memref<2x1x384xf32, #tpu.memory_space<vmem>>, vector<1x1x384xf32>
    %225 = vector.shape_cast %224 : vector<1x1x384xf32> to vector<1x384xf32>
    %226 = vector.broadcast %225 : vector<1x384xf32> to vector<8x384xf32>
    %227 = arith.addf %223, %226 : vector<8x384xf32>
    %228 = vector.extract_strided_slice %227 {offsets = [0, 0], sizes = [8, 32], strides = [1, 1]} : vector<8x384xf32> to vector<8x32xf32>
    %229 = vector.extract_strided_slice %227 {offsets = [0, 128], sizes = [8, 32], strides = [1, 1]} : vector<8x384xf32> to vector<8x32xf32>
    %230 = vector.extract_strided_slice %227 {offsets = [0, 256], sizes = [8, 32], strides = [1, 1]} : vector<8x384xf32> to vector<8x32xf32>
    %231 = arith.truncf %228 : vector<8x32xf32> to vector<8x32xbf16>
    %232 = arith.truncf %229 : vector<8x32xf32> to vector<8x32xbf16>
    "tpu.trace_start"() <{level = 10 : i32, message = "qd,kd->qk"}> : () -> ()
    %cst_89 = arith.constant dense<0.000000e+00> : vector<8x8xf32>
    %233 = tpu.matmul %231, %232, %cst_89 {dimension_numbers = #tpu.dot_dimension_numbers<[1], [1], [0], [0], [0, 0, 1, 0], [], []>} : vector<8x32xbf16>, vector<8x32xbf16>, vector<8x8xf32> -> vector<8x8xf32>
    "tpu.trace_stop"() : () -> ()
    %cst_90 = arith.constant 0.176776692 : f32
    %234 = vector.broadcast %cst_90 : f32 to vector<8x8xf32>
    %235 = arith.mulf %233, %234 : vector<8x8xf32>
    %236 = vector.broadcast %3 : vector<1x8xf32> to vector<8x8xf32>
    %237 = arith.addf %235, %236 : vector<8x8xf32>
    %cst_91 = arith.constant dense<0xFF800000> : vector<8xf32>
    %238 = vector.multi_reduction <maximumf>, %237, %cst_91 [1] : vector<8x8xf32> to vector<8xf32>
    %239 = vector.shape_cast %238 : vector<8xf32> to vector<8x1xf32>
    %240 = vector.broadcast %239 : vector<8x1xf32> to vector<8x8xf32>
    %241 = arith.subf %237, %240 : vector<8x8xf32>
    %242 = math.exp %241 : vector<8x8xf32>
    %cst_92 = arith.constant dense<0.000000e+00> : vector<8xf32>
    %243 = vector.multi_reduction <add>, %242, %cst_92 [1] : vector<8x8xf32> to vector<8xf32>
    %244 = vector.shape_cast %243 : vector<8xf32> to vector<8x1xf32>
    %245 = tpu.reciprocal %244 {approx = true} : vector<8x1xf32> -> vector<8x1xf32>
    %246 = vector.broadcast %245 : vector<8x1xf32> to vector<8x8xf32>
    %247 = arith.mulf %242, %246 : vector<8x8xf32>
    %248 = arith.truncf %247 : vector<8x8xf32> to vector<8x8xbf16>
    %249 = arith.truncf %230 : vector<8x32xf32> to vector<8x32xbf16>
    %cst_93 = arith.constant dense<0.000000e+00> : vector<8x32xf32>
    %250 = tpu.matmul %248, %249, %cst_93 {dimension_numbers = #tpu.dot_dimension_numbers<[1], [0], [0], [1], [0, 0, 1, 1], [], []>} : vector<8x8xbf16>, vector<8x32xbf16>, vector<8x32xf32> -> vector<8x32xf32>
    %251 = vector.extract_strided_slice %227 {offsets = [0, 32], sizes = [8, 32], strides = [1, 1]} : vector<8x384xf32> to vector<8x32xf32>
    %252 = vector.extract_strided_slice %227 {offsets = [0, 160], sizes = [8, 32], strides = [1, 1]} : vector<8x384xf32> to vector<8x32xf32>
    %253 = vector.extract_strided_slice %227 {offsets = [0, 288], sizes = [8, 32], strides = [1, 1]} : vector<8x384xf32> to vector<8x32xf32>
    %254 = arith.truncf %251 : vector<8x32xf32> to vector<8x32xbf16>
    %255 = arith.truncf %252 : vector<8x32xf32> to vector<8x32xbf16>
    "tpu.trace_start"() <{level = 10 : i32, message = "qd,kd->qk"}> : () -> ()
    %cst_94 = arith.constant dense<0.000000e+00> : vector<8x8xf32>
    %256 = tpu.matmul %254, %255, %cst_94 {dimension_numbers = #tpu.dot_dimension_numbers<[1], [1], [0], [0], [0, 0, 1, 0], [], []>} : vector<8x32xbf16>, vector<8x32xbf16>, vector<8x8xf32> -> vector<8x8xf32>
    "tpu.trace_stop"() : () -> ()
    %cst_95 = arith.constant 0.176776692 : f32
    %257 = vector.broadcast %cst_95 : f32 to vector<8x8xf32>
    %258 = arith.mulf %256, %257 : vector<8x8xf32>
    %259 = vector.broadcast %3 : vector<1x8xf32> to vector<8x8xf32>
    %260 = arith.addf %258, %259 : vector<8x8xf32>
    %cst_96 = arith.constant dense<0xFF800000> : vector<8xf32>
    %261 = vector.multi_reduction <maximumf>, %260, %cst_96 [1] : vector<8x8xf32> to vector<8xf32>
    %262 = vector.shape_cast %261 : vector<8xf32> to vector<8x1xf32>
    %263 = vector.broadcast %262 : vector<8x1xf32> to vector<8x8xf32>
    %264 = arith.subf %260, %263 : vector<8x8xf32>
    %265 = math.exp %264 : vector<8x8xf32>
    %cst_97 = arith.constant dense<0.000000e+00> : vector<8xf32>
    %266 = vector.multi_reduction <add>, %265, %cst_97 [1] : vector<8x8xf32> to vector<8xf32>
    %267 = vector.shape_cast %266 : vector<8xf32> to vector<8x1xf32>
    %268 = tpu.reciprocal %267 {approx = true} : vector<8x1xf32> -> vector<8x1xf32>
    %269 = vector.broadcast %268 : vector<8x1xf32> to vector<8x8xf32>
    %270 = arith.mulf %265, %269 : vector<8x8xf32>
    %271 = arith.truncf %270 : vector<8x8xf32> to vector<8x8xbf16>
    %272 = arith.truncf %253 : vector<8x32xf32> to vector<8x32xbf16>
    %cst_98 = arith.constant dense<0.000000e+00> : vector<8x32xf32>
    %273 = tpu.matmul %271, %272, %cst_98 {dimension_numbers = #tpu.dot_dimension_numbers<[1], [0], [0], [1], [0, 0, 1, 1], [], []>} : vector<8x8xbf16>, vector<8x32xbf16>, vector<8x32xf32> -> vector<8x32xf32>
    %274 = vector.extract_strided_slice %227 {offsets = [0, 64], sizes = [8, 32], strides = [1, 1]} : vector<8x384xf32> to vector<8x32xf32>
    %275 = vector.extract_strided_slice %227 {offsets = [0, 192], sizes = [8, 32], strides = [1, 1]} : vector<8x384xf32> to vector<8x32xf32>
    %276 = vector.extract_strided_slice %227 {offsets = [0, 320], sizes = [8, 32], strides = [1, 1]} : vector<8x384xf32> to vector<8x32xf32>
    %277 = arith.truncf %274 : vector<8x32xf32> to vector<8x32xbf16>
    %278 = arith.truncf %275 : vector<8x32xf32> to vector<8x32xbf16>
    "tpu.trace_start"() <{level = 10 : i32, message = "qd,kd->qk"}> : () -> ()
    %cst_99 = arith.constant dense<0.000000e+00> : vector<8x8xf32>
    %279 = tpu.matmul %277, %278, %cst_99 {dimension_numbers = #tpu.dot_dimension_numbers<[1], [1], [0], [0], [0, 0, 1, 0], [], []>} : vector<8x32xbf16>, vector<8x32xbf16>, vector<8x8xf32> -> vector<8x8xf32>
    "tpu.trace_stop"() : () -> ()
    %cst_100 = arith.constant 0.176776692 : f32
    %280 = vector.broadcast %cst_100 : f32 to vector<8x8xf32>
    %281 = arith.mulf %279, %280 : vector<8x8xf32>
    %282 = vector.broadcast %3 : vector<1x8xf32> to vector<8x8xf32>
    %283 = arith.addf %281, %282 : vector<8x8xf32>
    %cst_101 = arith.constant dense<0xFF800000> : vector<8xf32>
    %284 = vector.multi_reduction <maximumf>, %283, %cst_101 [1] : vector<8x8xf32> to vector<8xf32>
    %285 = vector.shape_cast %284 : vector<8xf32> to vector<8x1xf32>
    %286 = vector.broadcast %285 : vector<8x1xf32> to vector<8x8xf32>
    %287 = arith.subf %283, %286 : vector<8x8xf32>
    %288 = math.exp %287 : vector<8x8xf32>
    %cst_102 = arith.constant dense<0.000000e+00> : vector<8xf32>
    %289 = vector.multi_reduction <add>, %288, %cst_102 [1] : vector<8x8xf32> to vector<8xf32>
    %290 = vector.shape_cast %289 : vector<8xf32> to vector<8x1xf32>
    %291 = tpu.reciprocal %290 {approx = true} : vector<8x1xf32> -> vector<8x1xf32>
    %292 = vector.broadcast %291 : vector<8x1xf32> to vector<8x8xf32>
    %293 = arith.mulf %288, %292 : vector<8x8xf32>
    %294 = arith.truncf %293 : vector<8x8xf32> to vector<8x8xbf16>
    %295 = arith.truncf %276 : vector<8x32xf32> to vector<8x32xbf16>
    %cst_103 = arith.constant dense<0.000000e+00> : vector<8x32xf32>
    %296 = tpu.matmul %294, %295, %cst_103 {dimension_numbers = #tpu.dot_dimension_numbers<[1], [0], [0], [1], [0, 0, 1, 1], [], []>} : vector<8x8xbf16>, vector<8x32xbf16>, vector<8x32xf32> -> vector<8x32xf32>
    %297 = vector.extract_strided_slice %227 {offsets = [0, 96], sizes = [8, 32], strides = [1, 1]} : vector<8x384xf32> to vector<8x32xf32>
    %298 = vector.extract_strided_slice %227 {offsets = [0, 224], sizes = [8, 32], strides = [1, 1]} : vector<8x384xf32> to vector<8x32xf32>
    %299 = vector.extract_strided_slice %227 {offsets = [0, 352], sizes = [8, 32], strides = [1, 1]} : vector<8x384xf32> to vector<8x32xf32>
    %300 = arith.truncf %297 : vector<8x32xf32> to vector<8x32xbf16>
    %301 = arith.truncf %298 : vector<8x32xf32> to vector<8x32xbf16>
    "tpu.trace_start"() <{level = 10 : i32, message = "qd,kd->qk"}> : () -> ()
    %cst_104 = arith.constant dense<0.000000e+00> : vector<8x8xf32>
    %302 = tpu.matmul %300, %301, %cst_104 {dimension_numbers = #tpu.dot_dimension_numbers<[1], [1], [0], [0], [0, 0, 1, 0], [], []>} : vector<8x32xbf16>, vector<8x32xbf16>, vector<8x8xf32> -> vector<8x8xf32>
    "tpu.trace_stop"() : () -> ()
    %cst_105 = arith.constant 0.176776692 : f32
    %303 = vector.broadcast %cst_105 : f32 to vector<8x8xf32>
    %304 = arith.mulf %302, %303 : vector<8x8xf32>
    %305 = vector.broadcast %3 : vector<1x8xf32> to vector<8x8xf32>
    %306 = arith.addf %304, %305 : vector<8x8xf32>
    %cst_106 = arith.constant dense<0xFF800000> : vector<8xf32>
    %307 = vector.multi_reduction <maximumf>, %306, %cst_106 [1] : vector<8x8xf32> to vector<8xf32>
    %308 = vector.shape_cast %307 : vector<8xf32> to vector<8x1xf32>
    %309 = vector.broadcast %308 : vector<8x1xf32> to vector<8x8xf32>
    %310 = arith.subf %306, %309 : vector<8x8xf32>
    %311 = math.exp %310 : vector<8x8xf32>
    %cst_107 = arith.constant dense<0.000000e+00> : vector<8xf32>
    %312 = vector.multi_reduction <add>, %311, %cst_107 [1] : vector<8x8xf32> to vector<8xf32>
    %313 = vector.shape_cast %312 : vector<8xf32> to vector<8x1xf32>
    %314 = tpu.reciprocal %313 {approx = true} : vector<8x1xf32> -> vector<8x1xf32>
    %315 = vector.broadcast %314 : vector<8x1xf32> to vector<8x8xf32>
    %316 = arith.mulf %311, %315 : vector<8x8xf32>
    %317 = arith.truncf %316 : vector<8x8xf32> to vector<8x8xbf16>
    %318 = arith.truncf %299 : vector<8x32xf32> to vector<8x32xbf16>
    %cst_108 = arith.constant dense<0.000000e+00> : vector<8x32xf32>
    %319 = tpu.matmul %317, %318, %cst_108 {dimension_numbers = #tpu.dot_dimension_numbers<[1], [0], [0], [1], [0, 0, 1, 1], [], []>} : vector<8x8xbf16>, vector<8x32xbf16>, vector<8x32xf32> -> vector<8x32xf32>
    %320 = tpu.concatenate %250, %273, %296, %319 in 1 : vector<8x32xf32>, vector<8x32xf32>, vector<8x32xf32>, vector<8x32xf32> -> vector<8x128xf32>
    %321 = arith.truncf %320 : vector<8x128xf32> to vector<8x128xbf16>
    %c1_109 = arith.constant 1 : index
    %c0_110 = arith.constant 0 : index
    %c0_111 = arith.constant 0 : index
    %322 = vector.load %arg5[%c1_109, %c0_110, %c0_111] : memref<2x128x128xbf16, #tpu.memory_space<vmem>>, vector<1x128x128xbf16>
    %323 = vector.shape_cast %322 : vector<1x128x128xbf16> to vector<128x128xbf16>
    %cst_112 = arith.constant dense<0.000000e+00> : vector<8x128xf32>
    %324 = tpu.matmul %321, %323, %cst_112 {dimension_numbers = #tpu.dot_dimension_numbers<[1], [0], [0], [1], [0, 0, 1, 1], [], []>} : vector<8x128xbf16>, vector<128x128xbf16>, vector<8x128xf32> -> vector<8x128xf32>
    %c1_113 = arith.constant 1 : index
    %c0_114 = arith.constant 0 : index
    %c0_115 = arith.constant 0 : index
    %325 = vector.load %arg10[%c1_113, %c0_114, %c0_115] : memref<2x6x128xf32, #tpu.memory_space<vmem>>, vector<1x1x128xf32>
    %326 = vector.shape_cast %325 : vector<1x1x128xf32> to vector<1x128xf32>
    %327 = vector.broadcast %326 : vector<1x128xf32> to vector<8x128xf32>
    %328 = arith.addf %324, %327 : vector<8x128xf32>
    %329 = arith.addf %219, %328 : vector<8x128xf32>
    %c1_116 = arith.constant 1 : index
    %c1_117 = arith.constant 1 : index
    %c0_118 = arith.constant 0 : index
    %330 = vector.load %arg10[%c1_116, %c1_117, %c0_118] : memref<2x6x128xf32, #tpu.memory_space<vmem>>, vector<1x1x128xf32>
    %331 = vector.shape_cast %330 : vector<1x1x128xf32> to vector<1x128xf32>
    %c1_119 = arith.constant 1 : index
    %c2_120 = arith.constant 2 : index
    %c0_121 = arith.constant 0 : index
    %332 = vector.load %arg10[%c1_119, %c2_120, %c0_121] : memref<2x6x128xf32, #tpu.memory_space<vmem>>, vector<1x1x128xf32>
    %333 = vector.shape_cast %332 : vector<1x1x128xf32> to vector<1x128xf32>
    %cst_122 = arith.constant dense<0.000000e+00> : vector<8xf32>
    %334 = vector.multi_reduction <add>, %329, %cst_122 [1] : vector<8x128xf32> to vector<8xf32>
    %335 = vector.shape_cast %334 : vector<8xf32> to vector<8x1xf32>
    %cst_123 = arith.constant 1.280000e+02 : f32
    %336 = vector.broadcast %cst_123 : f32 to vector<8x1xf32>
    %337 = arith.divf %335, %336 : vector<8x1xf32>
    %338 = vector.broadcast %337 : vector<8x1xf32> to vector<8x128xf32>
    %339 = arith.subf %329, %338 : vector<8x128xf32>
    %340 = arith.mulf %339, %339 : vector<8x128xf32>
    %cst_124 = arith.constant dense<0.000000e+00> : vector<8xf32>
    %341 = vector.multi_reduction <add>, %340, %cst_124 [1] : vector<8x128xf32> to vector<8xf32>
    %342 = vector.shape_cast %341 : vector<8xf32> to vector<8x1xf32>
    %cst_125 = arith.constant 1.280000e+02 : f32
    %343 = vector.broadcast %cst_125 : f32 to vector<8x1xf32>
    %344 = arith.divf %342, %343 : vector<8x1xf32>
    %345 = vector.broadcast %337 : vector<8x1xf32> to vector<8x128xf32>
    %346 = arith.subf %329, %345 : vector<8x128xf32>
    %cst_126 = arith.constant 9.99999996E-13 : f32
    %347 = vector.broadcast %cst_126 : f32 to vector<8x1xf32>
    %348 = arith.addf %344, %347 : vector<8x1xf32>
    %349 = math.rsqrt %348 : vector<8x1xf32>
    %350 = vector.broadcast %349 : vector<8x1xf32> to vector<8x128xf32>
    %351 = arith.mulf %346, %350 : vector<8x128xf32>
    %352 = vector.broadcast %331 : vector<1x128xf32> to vector<8x128xf32>
    %353 = arith.mulf %351, %352 : vector<8x128xf32>
    %354 = vector.broadcast %333 : vector<1x128xf32> to vector<8x128xf32>
    %355 = arith.addf %353, %354 : vector<8x128xf32>
    %356 = arith.truncf %355 : vector<8x128xf32> to vector<8x128xbf16>
    %c1_127 = arith.constant 1 : index
    %c0_128 = arith.constant 0 : index
    %c0_129 = arith.constant 0 : index
    %357 = vector.load %arg6[%c1_127, %c0_128, %c0_129] : memref<2x128x512xbf16, #tpu.memory_space<vmem>>, vector<1x128x512xbf16>
    %358 = vector.shape_cast %357 : vector<1x128x512xbf16> to vector<128x512xbf16>
    %cst_130 = arith.constant dense<0.000000e+00> : vector<8x512xf32>
    %359 = tpu.matmul %356, %358, %cst_130 {dimension_numbers = #tpu.dot_dimension_numbers<[1], [0], [0], [1], [0, 0, 1, 1], [], []>} : vector<8x128xbf16>, vector<128x512xbf16>, vector<8x512xf32> -> vector<8x512xf32>
    %c1_131 = arith.constant 1 : index
    %c0_132 = arith.constant 0 : index
    %c0_133 = arith.constant 0 : index
    %360 = vector.load %arg9[%c1_131, %c0_132, %c0_133] : memref<2x1x512xf32, #tpu.memory_space<vmem>>, vector<1x1x512xf32>
    %361 = vector.shape_cast %360 : vector<1x1x512xf32> to vector<1x512xf32>
    %362 = vector.broadcast %361 : vector<1x512xf32> to vector<8x512xf32>
    %363 = arith.addf %359, %362 : vector<8x512xf32>
    %364 = arith.mulf %363, %363 : vector<8x512xf32>
    %365 = arith.mulf %363, %364 : vector<8x512xf32>
    %cst_134 = arith.constant 4.471500e-02 : f32
    %366 = vector.broadcast %cst_134 : f32 to vector<8x512xf32>
    %367 = arith.mulf %366, %365 : vector<8x512xf32>
    %368 = arith.addf %363, %367 : vector<8x512xf32>
    %cst_135 = arith.constant 0.797884583 : f32
    %369 = vector.broadcast %cst_135 : f32 to vector<8x512xf32>
    %370 = arith.mulf %369, %368 : vector<8x512xf32>
    %371 = math.tanh %370 : vector<8x512xf32>
    %cst_136 = arith.constant 1.000000e+00 : f32
    %372 = vector.broadcast %cst_136 : f32 to vector<8x512xf32>
    %373 = arith.addf %372, %371 : vector<8x512xf32>
    %cst_137 = arith.constant 5.000000e-01 : f32
    %374 = vector.broadcast %cst_137 : f32 to vector<8x512xf32>
    %375 = arith.mulf %374, %373 : vector<8x512xf32>
    %376 = arith.mulf %363, %375 : vector<8x512xf32>
    %377 = arith.truncf %376 : vector<8x512xf32> to vector<8x512xbf16>
    %c1_138 = arith.constant 1 : index
    %c0_139 = arith.constant 0 : index
    %c0_140 = arith.constant 0 : index
    %378 = vector.load %arg7[%c1_138, %c0_139, %c0_140] : memref<2x512x128xbf16, #tpu.memory_space<vmem>>, vector<1x512x128xbf16>
    %379 = vector.shape_cast %378 : vector<1x512x128xbf16> to vector<512x128xbf16>
    %cst_141 = arith.constant dense<0.000000e+00> : vector<8x128xf32>
    %380 = tpu.matmul %377, %379, %cst_141 {dimension_numbers = #tpu.dot_dimension_numbers<[1], [0], [0], [1], [0, 0, 1, 1], [], []>} : vector<8x512xbf16>, vector<512x128xbf16>, vector<8x128xf32> -> vector<8x128xf32>
    %c1_142 = arith.constant 1 : index
    %c3_143 = arith.constant 3 : index
    %c0_144 = arith.constant 0 : index
    %381 = vector.load %arg10[%c1_142, %c3_143, %c0_144] : memref<2x6x128xf32, #tpu.memory_space<vmem>>, vector<1x1x128xf32>
    %382 = vector.shape_cast %381 : vector<1x1x128xf32> to vector<1x128xf32>
    %383 = vector.broadcast %382 : vector<1x128xf32> to vector<8x128xf32>
    %384 = arith.addf %380, %383 : vector<8x128xf32>
    %385 = arith.addf %355, %384 : vector<8x128xf32>
    %c1_145 = arith.constant 1 : index
    %c4_146 = arith.constant 4 : index
    %c0_147 = arith.constant 0 : index
    %386 = vector.load %arg10[%c1_145, %c4_146, %c0_147] : memref<2x6x128xf32, #tpu.memory_space<vmem>>, vector<1x1x128xf32>
    %387 = vector.shape_cast %386 : vector<1x1x128xf32> to vector<1x128xf32>
    %c1_148 = arith.constant 1 : index
    %c5_149 = arith.constant 5 : index
    %c0_150 = arith.constant 0 : index
    %388 = vector.load %arg10[%c1_148, %c5_149, %c0_150] : memref<2x6x128xf32, #tpu.memory_space<vmem>>, vector<1x1x128xf32>
    %389 = vector.shape_cast %388 : vector<1x1x128xf32> to vector<1x128xf32>
    %cst_151 = arith.constant dense<0.000000e+00> : vector<8xf32>
    %390 = vector.multi_reduction <add>, %385, %cst_151 [1] : vector<8x128xf32> to vector<8xf32>
    %391 = vector.shape_cast %390 : vector<8xf32> to vector<8x1xf32>
    %cst_152 = arith.constant 1.280000e+02 : f32
    %392 = vector.broadcast %cst_152 : f32 to vector<8x1xf32>
    %393 = arith.divf %391, %392 : vector<8x1xf32>
    %394 = vector.broadcast %393 : vector<8x1xf32> to vector<8x128xf32>
    %395 = arith.subf %385, %394 : vector<8x128xf32>
    %396 = arith.mulf %395, %395 : vector<8x128xf32>
    %cst_153 = arith.constant dense<0.000000e+00> : vector<8xf32>
    %397 = vector.multi_reduction <add>, %396, %cst_153 [1] : vector<8x128xf32> to vector<8xf32>
    %398 = vector.shape_cast %397 : vector<8xf32> to vector<8x1xf32>
    %cst_154 = arith.constant 1.280000e+02 : f32
    %399 = vector.broadcast %cst_154 : f32 to vector<8x1xf32>
    %400 = arith.divf %398, %399 : vector<8x1xf32>
    %401 = vector.broadcast %393 : vector<8x1xf32> to vector<8x128xf32>
    %402 = arith.subf %385, %401 : vector<8x128xf32>
    %cst_155 = arith.constant 9.99999996E-13 : f32
    %403 = vector.broadcast %cst_155 : f32 to vector<8x1xf32>
    %404 = arith.addf %400, %403 : vector<8x1xf32>
    %405 = math.rsqrt %404 : vector<8x1xf32>
    %406 = vector.broadcast %405 : vector<8x1xf32> to vector<8x128xf32>
    %407 = arith.mulf %402, %406 : vector<8x128xf32>
    %408 = vector.broadcast %387 : vector<1x128xf32> to vector<8x128xf32>
    %409 = arith.mulf %407, %408 : vector<8x128xf32>
    %410 = vector.broadcast %389 : vector<1x128xf32> to vector<8x128xf32>
    %411 = arith.addf %409, %410 : vector<8x128xf32>
    %412 = vector.extract_strided_slice %411 {offsets = [0, 0], sizes = [1, 128], strides = [1, 1]} : vector<8x128xf32> to vector<1x128xf32>
    %413 = arith.truncf %412 : vector<1x128xf32> to vector<1x128xbf16>
    %c0_156 = arith.constant 0 : index
    %c0_157 = arith.constant 0 : index
    %414 = vector.load %arg11[%c0_156, %c0_157] : memref<128x64xbf16, #tpu.memory_space<vmem>>, vector<128x64xbf16>
    %cst_158 = arith.constant dense<0.000000e+00> : vector<1x64xf32>
    %415 = tpu.matmul %413, %414, %cst_158 {dimension_numbers = #tpu.dot_dimension_numbers<[1], [0], [0], [1], [0, 0, 1, 1], [], []>} : vector<1x128xbf16>, vector<128x64xbf16>, vector<1x64xf32> -> vector<1x64xf32>
    %c0_159 = arith.constant 0 : index
    %c0_160 = arith.constant 0 : index
    %416 = vector.load %arg13[%c0_159, %c0_160] : memref<2x128xf32, #tpu.memory_space<vmem>>, vector<1x64xf32>
    %417 = arith.addf %415, %416 : vector<1x64xf32>
    %cst_161 = arith.constant 0.000000e+00 : f32
    %418 = vector.broadcast %cst_161 : f32 to vector<1x64xf32>
    %419 = arith.maximumf %417, %418 : vector<1x64xf32>
    %420 = arith.truncf %419 : vector<1x64xf32> to vector<1x64xbf16>
    %c0_162 = arith.constant 0 : index
    %c0_163 = arith.constant 0 : index
    %421 = vector.load %arg12[%c0_162, %c0_163] : memref<64x128xbf16, #tpu.memory_space<vmem>>, vector<64x128xbf16>
    %cst_164 = arith.constant dense<0.000000e+00> : vector<1x128xf32>
    %422 = tpu.matmul %420, %421, %cst_164 {dimension_numbers = #tpu.dot_dimension_numbers<[1], [0], [0], [1], [0, 0, 1, 1], [], []>} : vector<1x64xbf16>, vector<64x128xbf16>, vector<1x128xf32> -> vector<1x128xf32>
    %c1_165 = arith.constant 1 : index
    %c0_166 = arith.constant 0 : index
    %423 = vector.load %arg13[%c1_165, %c0_166] : memref<2x128xf32, #tpu.memory_space<vmem>>, vector<1x128xf32>
    %424 = arith.addf %422, %423 : vector<1x128xf32>
    %425 = vector.shape_cast %424 : vector<1x128xf32> to vector<1x128xf32>
    %426 = vector.broadcast %425 : vector<1x128xf32> to vector<8x128xf32>
    %c0_167 = arith.constant 0 : index
    %c0_168 = arith.constant 0 : index
    %c0_169 = arith.constant 0 : index
    %427 = vector.load %arg14[%c0_167, %c0_168, %c0_169] : memref<1x8x128xf32, #tpu.memory_space<vmem>>, vector<1x8x128xf32>
    %428 = vector.shape_cast %427 : vector<1x8x128xf32> to vector<8x128xf32>
    %429 = vector.shape_cast %426 : vector<8x128xf32> to vector<1x8x128xf32>
    tpu.vector_store %arg14[%c0_167, %c0_168, %c0_169], %429 {strides = array<i32>} : memref<1x8x128xf32, #tpu.memory_space<vmem>>, vector<1x8x128xf32>,
    return
  }
  func.func @transform_0(%arg0: i32) -> (i32, i32, i32) {
    %c0_i32 = arith.constant 0 : i32
    %c0_i32_0 = arith.constant 0 : i32
    %c0_i32_1 = arith.constant 0 : i32
    return %arg0, %c0_i32, %c0_i32_0 : i32, i32, i32
  }
  func.func @transform_1(%arg0: i32) -> (i32, i32, i32) {
    %c0_i32 = arith.constant 0 : i32
    %c0_i32_0 = arith.constant 0 : i32
    %c0_i32_1 = arith.constant 0 : i32
    return %arg0, %c0_i32, %c0_i32_0 : i32, i32, i32
  }
  func.func @transform_2(%arg0: i32) -> (i32, i32) {
    %c0_i32 = arith.constant 0 : i32
    %c0_i32_0 = arith.constant 0 : i32
    %c0_i32_1 = arith.constant 0 : i32
    return %c0_i32, %c0_i32_0 : i32, i32
  }
  func.func @transform_3(%arg0: i32) -> (i32, i32, i32) {
    %c0_i32 = arith.constant 0 : i32
    %c0_i32_0 = arith.constant 0 : i32
    %c0_i32_1 = arith.constant 0 : i32
    %c0_i32_2 = arith.constant 0 : i32
    return %c0_i32, %c0_i32_0, %c0_i32_1 : i32, i32, i32
  }
  func.func @transform_4(%arg0: i32) -> (i32, i32, i32) {
    %c0_i32 = arith.constant 0 : i32
    %c0_i32_0 = arith.constant 0 : i32
    %c0_i32_1 = arith.constant 0 : i32
    %c0_i32_2 = arith.constant 0 : i32
    return %c0_i32, %c0_i32_0, %c0_i32_1 : i32, i32, i32
  }
  func.func @transform_5(%arg0: i32) -> (i32, i32, i32) {
    %c0_i32 = arith.constant 0 : i32
    %c0_i32_0 = arith.constant 0 : i32
    %c0_i32_1 = arith.constant 0 : i32
    %c0_i32_2 = arith.constant 0 : i32
    return %c0_i32, %c0_i32_0, %c0_i32_1 : i32, i32, i32
  }
  func.func @transform_6(%arg0: i32) -> (i32, i32, i32) {
    %c0_i32 = arith.constant 0 : i32
    %c0_i32_0 = arith.constant 0 : i32
    %c0_i32_1 = arith.constant 0 : i32
    %c0_i32_2 = arith.constant 0 : i32
    return %c0_i32, %c0_i32_0, %c0_i32_1 : i32, i32, i32
  }
  func.func @transform_7(%arg0: i32) -> (i32, i32, i32) {
    %c0_i32 = arith.constant 0 : i32
    %c0_i32_0 = arith.constant 0 : i32
    %c0_i32_1 = arith.constant 0 : i32
    %c0_i32_2 = arith.constant 0 : i32
    return %c0_i32, %c0_i32_0, %c0_i32_1 : i32, i32, i32
  }
  func.func @transform_8(%arg0: i32) -> (i32, i32, i32) {
    %c0_i32 = arith.constant 0 : i32
    %c0_i32_0 = arith.constant 0 : i32
    %c0_i32_1 = arith.constant 0 : i32
    %c0_i32_2 = arith.constant 0 : i32
    return %c0_i32, %c0_i32_0, %c0_i32_1 : i32, i32, i32
  }
  func.func @transform_9(%arg0: i32) -> (i32, i32, i32) {
    %c0_i32 = arith.constant 0 : i32
    %c0_i32_0 = arith.constant 0 : i32
    %c0_i32_1 = arith.constant 0 : i32
    %c0_i32_2 = arith.constant 0 : i32
    return %c0_i32, %c0_i32_0, %c0_i32_1 : i32, i32, i32
  }
  func.func @transform_10(%arg0: i32) -> (i32, i32) {
    %c0_i32 = arith.constant 0 : i32
    %c0_i32_0 = arith.constant 0 : i32
    %c0_i32_1 = arith.constant 0 : i32
    return %c0_i32, %c0_i32_0 : i32, i32
  }
  func.func @transform_11(%arg0: i32) -> (i32, i32) {
    %c0_i32 = arith.constant 0 : i32
    %c0_i32_0 = arith.constant 0 : i32
    %c0_i32_1 = arith.constant 0 : i32
    return %c0_i32, %c0_i32_0 : i32, i32
  }
  func.func @transform_12(%arg0: i32) -> (i32, i32) {
    %c0_i32 = arith.constant 0 : i32
    %c0_i32_0 = arith.constant 0 : i32
    %c0_i32_1 = arith.constant 0 : i32
    return %c0_i32, %c0_i32_0 : i32, i32
  }
  func.func @transform_13(%arg0: i32) -> (i32, i32, i32) {
    %c0_i32 = arith.constant 0 : i32
    %c0_i32_0 = arith.constant 0 : i32
    %c0_i32_1 = arith.constant 0 : i32
    return %arg0, %c0_i32, %c0_i32_0 : i32, i32, i32
  }
}

</mosaic_0001>

<llo_original>
// kernel: tpu_custom_call.1
$region0: #{tpu_custom_call.1}
  #allocation0 [shape = 'u32[]', space=smem, size = 0x4, offset = 0x4, fixed_abs, tag = 'smem constant byte address 0x4 - core index']
  #allocation1 [shape = 'u32[144,128]{1,0:T(1,128)}', space=vmem, size = 0x12000, scoped, tag = 'internal scratch']
  %s0 = inlined_call_operand.hbm [shape: f32[2,8,128], index: 0, kind: input, shape index: {}]
  %s1 = inlined_call_operand.hbm [shape: f32[2,1,8], index: 1, kind: input, shape index: {}]
  %s2 = inlined_call_operand.hbm [shape: f32[2,128], index: 2, kind: input, shape index: {}]
  %s3 = inlined_call_operand.hbm [shape: bf16[2,128,384], index: 3, kind: input, shape index: {}]
  %s4 = inlined_call_operand.vmem [shape: bf16[2,128,128], index: 4, kind: input, shape index: {}]
  %s5 = inlined_call_operand.hbm [shape: bf16[2,128,512], index: 5, kind: input, shape index: {}]
  %s6 = inlined_call_operand.hbm [shape: bf16[2,512,128], index: 6, kind: input, shape index: {}]
  %s7 = inlined_call_operand.hbm [shape: f32[2,1,384], index: 7, kind: input, shape index: {}]
  %s8 = inlined_call_operand.hbm [shape: f32[2,1,512], index: 8, kind: input, shape index: {}]
  %s9 = inlined_call_operand.vmem [shape: f32[2,6,128], index: 9, kind: input, shape index: {}]
  %s10 = inlined_call_operand.vmem [shape: bf16[128,64], index: 10, kind: input, shape index: {}]
  %s11 = inlined_call_operand.hbm [shape: bf16[64,128], index: 11, kind: input, shape index: {}]
  %s12 = inlined_call_operand.vmem [shape: f32[2,128], index: 12, kind: input, shape index: {}]
  %s13 = inlined_call_operand.hbm [shape: f32[2,8,128], index: 13, kind: output, shape index: {}]
  %s14 = sld [smem:[#allocation0]]
  $region121: #{tpu_custom_call.1} parent=0
    _
  %s16 = ssub.s32 1, %s14
  %s17 = scalar_select 0, %s16, %s14
  $region1: #{tpu_custom_call.1} parent=0
    #allocation2 [shape = 'u8[8192]{0}', space=vmem, size = 0x2000, scoped, tag = 'input window, operand 0']
    #allocation3 [shape = 's32[2]{0}', space=sflag, size = 0x8, scoped, tag = 'scoped memory for tpu_custom_call.1']
    #allocation4 [shape = 's32[2]{0}', space=sflag, size = 0x8, scoped, tag = 'scoped memory for tpu_custom_call.1']
    #allocation5 [shape = 'u8[1024]{0}', space=vmem, size = 0x400, scoped, tag = 'input window, operand 1']
    #allocation6 [shape = 's32[2]{0}', space=sflag, size = 0x8, scoped, tag = 'scoped memory for tpu_custom_call.1']
    #allocation7 [shape = 'u8[1024]{0}', space=vmem, size = 0x400, scoped, tag = 'input window, operand 2, single buffered']
    #allocation8 [shape = 'u8[196608]{0}', space=vmem, size = 0x30000, scoped, tag = 'input window, operand 3, single buffered']
    #allocation9 [shape = 's32[1]{0}', space=sflag, size = 0x4, scoped, tag = 'scoped memory for tpu_custom_call.1']
    #allocation10 [shape = 'u8[262144]{0}', space=vmem, size = 0x40000, scoped, tag = 'input window, operand 5, single buffered']
    #allocation11 [shape = 'u8[262144]{0}', space=vmem, size = 0x40000, scoped, tag = 'input window, operand 6, single buffered']
    #allocation12 [shape = 's32[1]{0}', space=sflag, size = 0x4, scoped, tag = 'scoped memory for tpu_custom_call.1']
    #allocation13 [shape = 'u8[3072]{0}', space=vmem, size = 0xc00, scoped, tag = 'input window, operand 7, single buffered']
    #allocation14 [shape = 'u8[4096]{0}', space=vmem, size = 0x1000, scoped, tag = 'input window, operand 8, single buffered']
    #allocation15 [shape = 's32[1]{0}', space=sflag, size = 0x4, scoped, tag = 'scoped memory for tpu_custom_call.1']
    #allocation16 [shape = 'u8[16384]{0}', space=vmem, size = 0x4000, scoped, tag = 'input window, operand 11, single buffered']
    #allocation17 [shape = 'u8[8192]{0}', space=vmem, size = 0x2000, scoped, tag = 'output window, operand 0']
    %18 = vsyncpa [#allocation3], 0
    %s19 = scalar_lea.sflag [#allocation3], 1
    %20 = vsyncpa %s19, 0
    %21 = vsyncpa [#allocation6], 0
    %s22 = scalar_lea.sflag [#allocation6], 1
    %23 = vsyncpa %s22, 0
    %24 = vsyncpa [#allocation9], 0
    %25 = vsyncpa [#allocation12], 0
    %26 = vsyncpa [#allocation15], 0
    %27 = vsyncpa [#allocation4], 0
    %s28 = scalar_lea.sflag [#allocation4], 1
    %29 = vsyncpa %s28, 0
    loop: start=0, step=1, limit=4
    $region2: #{tpu_custom_call.1} parent=1 // loop_pre_header
      _
    $region3: #{tpu_custom_call.1} parent=1 // loop_header
      %s31 = sphi 0, %s35
      %p32 = scmp.ge.s32.totalorder %s31, 4
      %s41 = sphi 0, %s43
      %s44 = sphi 0, %s41
      %s45 = sphi 0, %s44
      %s61 = sphi 0, %s45
      %s67 = sphi 0, %s69
      %s70 = sphi 0, %s67
      %s71 = sphi 0, %s70
      %s87 = sphi 0, %s71
      %s91 = sphi 0, %s91
      %s93 = sphi 0, %s91
      %s94 = sphi 0, %s93
      %s108 = sphi 0, %s94
      %s112 = sphi 0, %s112
      %s114 = sphi 0, %s112
      %s115 = sphi 0, %s114
      %s129 = sphi 0, %s115
      %s133 = sphi 0, %s133
      %s135 = sphi 0, %s133
      %s136 = sphi 0, %s135
      %s150 = sphi 0, %s136
      %s154 = sphi 0, %s154
      %s156 = sphi 0, %s154
      %s157 = sphi 0, %s156
      %s171 = sphi 0, %s157
      %s175 = sphi 0, %s175
      %s177 = sphi 0, %s175
      %s178 = sphi 0, %s177
      %s192 = sphi 0, %s178
      %s196 = sphi 0, %s196
      %s198 = sphi 0, %s196
      %s199 = sphi 0, %s198
      %s213 = sphi 0, %s199
      %s217 = sphi 0, %s217
      %s219 = sphi 0, %s217
      %s220 = sphi 0, %s219
      %s234 = sphi 0, %s220
      %s238 = sphi 0, %s238
      %s240 = sphi 0, %s238
      %s241 = sphi 0, %s240
      %s255 = sphi 0, %s241
      %s259 = sphi 0, %s259
      %s261 = sphi 0, %s259
      %s262 = sphi 0, %s261
      %s276 = sphi 0, %s262
      %s280 = sphi 0, %s280
      %s282 = sphi 0, %s280
      %s283 = sphi 0, %s282
      %s297 = sphi 0, %s283
      %s301 = sphi 0, %s301
      %s303 = sphi 0, %s301
      %s304 = sphi 0, %s303
      %s318 = sphi 0, %s304
      %s324 = sphi 0, %s326
      %s327 = sphi 0, %s324
      %s328 = sphi 0, %s327
      %s344 = sphi 0, %s328
    $region4: #{tpu_custom_call.1} parent=1 // loop_header_branch
      %34 = sbr.rel (%p32) target = $region8
    $region5: #{tpu_custom_call.1} parent=1 // loop_body
      %s36 = ssub.s32 %s31, 1
      %s37 = ssub.s32 %s31, 2
      %s38 = sadd.s32 %s31, 1
      %s39 = ssub.s32 %s31, %s38
      %p40 = scmp.eq.s32.totalorder %s39, 0
      %s42 = sadd.s32 %s41, 1
      %s43 = scalar_select %p40, %s41, %s42
      %p46 = pneg %p40
      %p47 = scmp.eq.s32.totalorder %s31, 1
      %p48 = por %p46, %p47
      %p49 = scmp.ne.s32.totalorder %s41, %s44
      %p50 = scmp.eq.s32.totalorder %s31, 0
      %p51 = por %p49, %p50
      %p52 = scmp.ne.s32.totalorder %s41, %s44
      %p53 = scmp.eq.s32.totalorder %s36, 1
      %p54 = por %p52, %p53
      %p55 = scmp.ne.s32.totalorder %s44, %s45
      %p56 = scmp.eq.s32.totalorder %s36, 0
      %p57 = por %p55, %p56
      %p58 = scmp.ne.s32.totalorder %s44, %s45
      %p59 = scmp.eq.s32.totalorder %s37, 1
      %p60 = por %p58, %p59
      %p62 = scmp.ne.s32.totalorder %s45, %s61
      %p63 = scmp.eq.s32.totalorder %s37, 0
      %p64 = por %p62, %p63
      %s65 = ssub.s32 %s31, %s38
      %p66 = scmp.eq.s32.totalorder %s65, 0
      %s68 = sadd.s32 %s67, 1
      %s69 = scalar_select %p66, %s67, %s68
      %p72 = pneg %p66
      %p73 = scmp.eq.s32.totalorder %s31, 1
      %p74 = por %p72, %p73
      %p75 = scmp.ne.s32.totalorder %s67, %s70
      %p76 = scmp.eq.s32.totalorder %s31, 0
      %p77 = por %p75, %p76
      %p78 = scmp.ne.s32.totalorder %s67, %s70
      %p79 = scmp.eq.s32.totalorder %s36, 1
      %p80 = por %p78, %p79
      %p81 = scmp.ne.s32.totalorder %s70, %s71
      %p82 = scmp.eq.s32.totalorder %s36, 0
      %p83 = por %p81, %p82
      %p84 = scmp.ne.s32.totalorder %s70, %s71
      %p85 = scmp.eq.s32.totalorder %s37, 1
      %p86 = por %p84, %p85
      %p88 = scmp.ne.s32.totalorder %s71, %s87
      %p89 = scmp.eq.s32.totalorder %s37, 0
      %p90 = por %p88, %p89
      %s92 = sadd.s32 %s91, 1
      %p95 = scmp.eq.s32.totalorder %s31, 1
      %p96 = scmp.ne.s32.totalorder %s91, %s93
      %p97 = scmp.eq.s32.totalorder %s31, 0
      %p98 = por %p96, %p97
      %p99 = scmp.ne.s32.totalorder %s91, %s93
      %p100 = scmp.eq.s32.totalorder %s36, 1
      %p101 = por %p99, %p100
      %p102 = scmp.ne.s32.totalorder %s93, %s94
      %p103 = scmp.eq.s32.totalorder %s36, 0
      %p104 = por %p102, %p103
      %p105 = scmp.ne.s32.totalorder %s93, %s94
      %p106 = scmp.eq.s32.totalorder %s37, 1
      %p107 = por %p105, %p106
      %p109 = scmp.ne.s32.totalorder %s94, %s108
      %p110 = scmp.eq.s32.totalorder %s37, 0
      %p111 = por %p109, %p110
      %s113 = sadd.s32 %s112, 1
      %p116 = scmp.eq.s32.totalorder %s31, 1
      %p117 = scmp.ne.s32.totalorder %s112, %s114
      %p118 = scmp.eq.s32.totalorder %s31, 0
      %p119 = por %p117, %p118
      %p120 = scmp.ne.s32.totalorder %s112, %s114
      %p121 = scmp.eq.s32.totalorder %s36, 1
      %p122 = por %p120, %p121
      %p123 = scmp.ne.s32.totalorder %s114, %s115
      %p124 = scmp.eq.s32.totalorder %s36, 0
      %p125 = por %p123, %p124
      %p126 = scmp.ne.s32.totalorder %s114, %s115
      %p127 = scmp.eq.s32.totalorder %s37, 1
      %p128 = por %p126, %p127
      %p130 = scmp.ne.s32.totalorder %s115, %s129
      %p131 = scmp.eq.s32.totalorder %s37, 0
      %p132 = por %p130, %p131
      %s134 = sadd.s32 %s133, 1
      %p137 = scmp.eq.s32.totalorder %s31, 1
      %p138 = scmp.ne.s32.totalorder %s133, %s135
      %p139 = scmp.eq.s32.totalorder %s31, 0
      %p140 = por %p138, %p139
      %p141 = scmp.ne.s32.totalorder %s133, %s135
      %p142 = scmp.eq.s32.totalorder %s36, 1
      %p143 = por %p141, %p142
      %p144 = scmp.ne.s32.totalorder %s135, %s136
      %p145 = scmp.eq.s32.totalorder %s36, 0
      %p146 = por %p144, %p145
      %p147 = scmp.ne.s32.totalorder %s135, %s136
      %p148 = scmp.eq.s32.totalorder %s37, 1
      %p149 = por %p147, %p148
      %p151 = scmp.ne.s32.totalorder %s136, %s150
      %p152 = scmp.eq.s32.totalorder %s37, 0
      %p153 = por %p151, %p152
      %s155 = sadd.s32 %s154, 1
      %p158 = scmp.eq.s32.totalorder %s31, 1
      %p159 = scmp.ne.s32.totalorder %s154, %s156
      %p160 = scmp.eq.s32.totalorder %s31, 0
      %p161 = por %p159, %p160
      %p162 = scmp.ne.s32.totalorder %s154, %s156
      %p163 = scmp.eq.s32.totalorder %s36, 1
      %p164 = por %p162, %p163
      %p165 = scmp.ne.s32.totalorder %s156, %s157
      %p166 = scmp.eq.s32.totalorder %s36, 0
      %p167 = por %p165, %p166
      %p168 = scmp.ne.s32.totalorder %s156, %s157
      %p169 = scmp.eq.s32.totalorder %s37, 1
      %p170 = por %p168, %p169
      %p172 = scmp.ne.s32.totalorder %s157, %s171
      %p173 = scmp.eq.s32.totalorder %s37, 0
      %p174 = por %p172, %p173
      %s176 = sadd.s32 %s175, 1
      %p179 = scmp.eq.s32.totalorder %s31, 1
      %p180 = scmp.ne.s32.totalorder %s175, %s177
      %p181 = scmp.eq.s32.totalorder %s31, 0
      %p182 = por %p180, %p181
      %p183 = scmp.ne.s32.totalorder %s175, %s177
      %p184 = scmp.eq.s32.totalorder %s36, 1
      %p185 = por %p183, %p184
      %p186 = scmp.ne.s32.totalorder %s177, %s178
      %p187 = scmp.eq.s32.totalorder %s36, 0
      %p188 = por %p186, %p187
      %p189 = scmp.ne.s32.totalorder %s177, %s178
      %p190 = scmp.eq.s32.totalorder %s37, 1
      %p191 = por %p189, %p190
      %p193 = scmp.ne.s32.totalorder %s178, %s192
      %p194 = scmp.eq.s32.totalorder %s37, 0
      %p195 = por %p193, %p194
      %s197 = sadd.s32 %s196, 1
      %p200 = scmp.eq.s32.totalorder %s31, 1
      %p201 = scmp.ne.s32.totalorder %s196, %s198
      %p202 = scmp.eq.s32.totalorder %s31, 0
      %p203 = por %p201, %p202
      %p204 = scmp.ne.s32.totalorder %s196, %s198
      %p205 = scmp.eq.s32.totalorder %s36, 1
      %p206 = por %p204, %p205
      %p207 = scmp.ne.s32.totalorder %s198, %s199
      %p208 = scmp.eq.s32.totalorder %s36, 0
      %p209 = por %p207, %p208
      %p210 = scmp.ne.s32.totalorder %s198, %s199
      %p211 = scmp.eq.s32.totalorder %s37, 1
      %p212 = por %p210, %p211
      %p214 = scmp.ne.s32.totalorder %s199, %s213
      %p215 = scmp.eq.s32.totalorder %s37, 0
      %p216 = por %p214, %p215
      %s218 = sadd.s32 %s217, 1
      %p221 = scmp.eq.s32.totalorder %s31, 1
      %p222 = scmp.ne.s32.totalorder %s217, %s219
      %p223 = scmp.eq.s32.totalorder %s31, 0
      %p224 = por %p222, %p223
      %p225 = scmp.ne.s32.totalorder %s217, %s219
      %p226 = scmp.eq.s32.totalorder %s36, 1
      %p227 = por %p225, %p226
      %p228 = scmp.ne.s32.totalorder %s219, %s220
      %p229 = scmp.eq.s32.totalorder %s36, 0
      %p230 = por %p228, %p229
      %p231 = scmp.ne.s32.totalorder %s219, %s220
      %p232 = scmp.eq.s32.totalorder %s37, 1
      %p233 = por %p231, %p232
      %p235 = scmp.ne.s32.totalorder %s220, %s234
      %p236 = scmp.eq.s32.totalorder %s37, 0
      %p237 = por %p235, %p236
      %s239 = sadd.s32 %s238, 1
      %p242 = scmp.eq.s32.totalorder %s31, 1
      %p243 = scmp.ne.s32.totalorder %s238, %s240
      %p244 = scmp.eq.s32.totalorder %s31, 0
      %p245 = por %p243, %p244
      %p246 = scmp.ne.s32.totalorder %s238, %s240
      %p247 = scmp.eq.s32.totalorder %s36, 1
      %p248 = por %p246, %p247
      %p249 = scmp.ne.s32.totalorder %s240, %s241
      %p250 = scmp.eq.s32.totalorder %s36, 0
      %p251 = por %p249, %p250
      %p252 = scmp.ne.s32.totalorder %s240, %s241
      %p253 = scmp.eq.s32.totalorder %s37, 1
      %p254 = por %p252, %p253
      %p256 = scmp.ne.s32.totalorder %s241, %s255
      %p257 = scmp.eq.s32.totalorder %s37, 0
      %p258 = por %p256, %p257
      %s260 = sadd.s32 %s259, 1
      %p263 = scmp.eq.s32.totalorder %s31, 1
      %p264 = scmp.ne.s32.totalorder %s259, %s261
      %p265 = scmp.eq.s32.totalorder %s31, 0
      %p266 = por %p264, %p265
      %p267 = scmp.ne.s32.totalorder %s259, %s261
      %p268 = scmp.eq.s32.totalorder %s36, 1
      %p269 = por %p267, %p268
      %p270 = scmp.ne.s32.totalorder %s261, %s262
      %p271 = scmp.eq.s32.totalorder %s36, 0
      %p272 = por %p270, %p271
      %p273 = scmp.ne.s32.totalorder %s261, %s262
      %p274 = scmp.eq.s32.totalorder %s37, 1
      %p275 = por %p273, %p274
      %p277 = scmp.ne.s32.totalorder %s262, %s276
      %p278 = scmp.eq.s32.totalorder %s37, 0
      %p279 = por %p277, %p278
      %s281 = sadd.s32 %s280, 1
      %p284 = scmp.eq.s32.totalorder %s31, 1
      %p285 = scmp.ne.s32.totalorder %s280, %s282
      %p286 = scmp.eq.s32.totalorder %s31, 0
      %p287 = por %p285, %p286
      %p288 = scmp.ne.s32.totalorder %s280, %s282
      %p289 = scmp.eq.s32.totalorder %s36, 1
      %p290 = por %p288, %p289
      %p291 = scmp.ne.s32.totalorder %s282, %s283
      %p292 = scmp.eq.s32.totalorder %s36, 0
      %p293 = por %p291, %p292
      %p294 = scmp.ne.s32.totalorder %s282, %s283
      %p295 = scmp.eq.s32.totalorder %s37, 1
      %p296 = por %p294, %p295
      %p298 = scmp.ne.s32.totalorder %s283, %s297
      %p299 = scmp.eq.s32.totalorder %s37, 0
      %p300 = por %p298, %p299
      %s302 = sadd.s32 %s301, 1
      %p305 = scmp.eq.s32.totalorder %s31, 1
      %p306 = scmp.ne.s32.totalorder %s301, %s303
      %p307 = scmp.eq.s32.totalorder %s31, 0
      %p308 = por %p306, %p307
      %p309 = scmp.ne.s32.totalorder %s301, %s303
      %p310 = scmp.eq.s32.totalorder %s36, 1
      %p311 = por %p309, %p310
      %p312 = scmp.ne.s32.totalorder %s303, %s304
      %p313 = scmp.eq.s32.totalorder %s36, 0
      %p314 = por %p312, %p313
      %p315 = scmp.ne.s32.totalorder %s303, %s304
      %p316 = scmp.eq.s32.totalorder %s37, 1
      %p317 = por %p315, %p316
      %p319 = scmp.ne.s32.totalorder %s304, %s318
      %p320 = scmp.eq.s32.totalorder %s37, 0
      %p321 = por %p319, %p320
      %s322 = ssub.s32 %s31, %s38
      %p323 = scmp.eq.s32.totalorder %s322, 0
      %s325 = sadd.s32 %s324, 1
      %s326 = scalar_select %p323, %s324, %s325
      %p329 = pneg %p323
      %p330 = scmp.eq.s32.totalorder %s31, 1
      %p331 = por %p329, %p330
      %p332 = scmp.ne.s32.totalorder %s324, %s327
      %p333 = scmp.eq.s32.totalorder %s31, 0
      %p334 = por %p332, %p333
      %p335 = scmp.ne.s32.totalorder %s324, %s327
      %p336 = scmp.eq.s32.totalorder %s36, 1
      %p337 = por %p335, %p336
      %p338 = scmp.ne.s32.totalorder %s327, %s328
      %p339 = scmp.eq.s32.totalorder %s36, 0
      %p340 = por %p338, %p339
      %p341 = scmp.ne.s32.totalorder %s327, %s328
      %p342 = scmp.eq.s32.totalorder %s37, 1
      %p343 = por %p341, %p342
      %p345 = scmp.ne.s32.totalorder %s328, %s344
      %p346 = scmp.eq.s32.totalorder %s37, 0
      %p347 = por %p345, %p346
      %p348 = scmp.le.s32.totalorder 1, %s31
      %p349 = scmp.lt.s32.totalorder %s31, 3
      %p350 = pnand %p348, %p349
      %p351 = pneg %p350
      // Predicated region
      $region9: #{tpu_custom_call.1} parent=5 // pred_check
        _
      $region10: #{tpu_custom_call.1} parent=5 // pred_check_branch
        %353 = sbr.rel (%p350) target = $region12
      $region11: #{tpu_custom_call.1} parent=5 // pred_region
        %s354 = ssub.s32 %s31, 1
        // Predicated region
        $region13: #{tpu_custom_call.1} parent=11 // pred_check
          %p355 = pneg %p104
        $region14: #{tpu_custom_call.1} parent=11 // pred_check_branch
          %357 = sbr.rel (%p355) target = $region16
        $region15: #{tpu_custom_call.1} parent=11 // pred_region
          %s359 = ssub.s32 32, 32
          %360 = vsyncadd [#allocation6], %s359
          %s362 = sshll.u32 [#allocation7], 4
          %s363 = int_to_ptr.vmem [resolvable:$true] %s362
          %365 = dma.hbm_to_vmem [thread:$0]  %s2, 32, %s363, [#allocation6]
        $region16: #{tpu_custom_call.1} parent=11 // pred_fallthru
          _
        // Predicated region
        $region17: #{tpu_custom_call.1} parent=11 // pred_check
          %p366 = pneg %p125
        $region18: #{tpu_custom_call.1} parent=11 // pred_check_branch
          %368 = sbr.rel (%p366) target = $region20
        $region19: #{tpu_custom_call.1} parent=11 // pred_region
          %s370 = ssub.s32 6144, 6144
          %371 = vsyncadd [#allocation9], %s370
          %s372 = sshll.u32 [#allocation8], 4
          %s373 = int_to_ptr.vmem [resolvable:$true] %s372
          %378 = dma.hbm_to_vmem [thread:$0]  %s3, 6144, %s373, [#allocation9], 192, 192, 12
        $region20: #{tpu_custom_call.1} parent=11 // pred_fallthru
          _
        // Predicated region
        $region21: #{tpu_custom_call.1} parent=11 // pred_check
          %p379 = pneg %p146
        $region22: #{tpu_custom_call.1} parent=11 // pred_check_branch
          %381 = sbr.rel (%p379) target = $region24
        $region23: #{tpu_custom_call.1} parent=11 // pred_region
          _
        $region24: #{tpu_custom_call.1} parent=11 // pred_fallthru
          _
        // Predicated region
        $region25: #{tpu_custom_call.1} parent=11 // pred_check
          %p382 = pneg %p167
        $region26: #{tpu_custom_call.1} parent=11 // pred_check_branch
          %384 = sbr.rel (%p382) target = $region28
        $region27: #{tpu_custom_call.1} parent=11 // pred_region
          %s386 = ssub.s32 8192, 8192
          %387 = vsyncadd [#allocation9], %s386
          %s388 = sshll.u32 [#allocation10], 4
          %s389 = int_to_ptr.vmem [resolvable:$true] %s388
          %394 = dma.hbm_to_vmem [thread:$0]  %s5, 8192, %s389, [#allocation9], 256, 256, 16
        $region28: #{tpu_custom_call.1} parent=11 // pred_fallthru
          _
        // Predicated region
        $region29: #{tpu_custom_call.1} parent=11 // pred_check
          %p395 = pneg %p188
        $region30: #{tpu_custom_call.1} parent=11 // pred_check_branch
          %397 = sbr.rel (%p395) target = $region32
        $region31: #{tpu_custom_call.1} parent=11 // pred_region
          %s399 = ssub.s32 8192, 8192
          %400 = vsyncadd [#allocation12], %s399
          %s401 = sshll.u32 [#allocation11], 4
          %s402 = int_to_ptr.vmem [resolvable:$true] %s401
          %407 = dma.hbm_to_vmem [thread:$0]  %s6, 8192, %s402, [#allocation12], 64, 64, 4
        $region32: #{tpu_custom_call.1} parent=11 // pred_fallthru
          _
        // Predicated region
        $region33: #{tpu_custom_call.1} parent=11 // pred_check
          %p408 = pneg %p209
        $region34: #{tpu_custom_call.1} parent=11 // pred_check_branch
          %410 = sbr.rel (%p408) target = $region36
        $region35: #{tpu_custom_call.1} parent=11 // pred_region
          %s412 = ssub.s32 96, 96
          %413 = vsyncadd [#allocation12], %s412
          %s414 = sshll.u32 [#allocation13], 4
          %s415 = int_to_ptr.vmem [resolvable:$true] %s414
          %420 = dma.hbm_to_vmem [thread:$0]  %s7, 96, %s415, [#allocation12], 48, 48, 3
        $region36: #{tpu_custom_call.1} parent=11 // pred_fallthru
          _
        // Predicated region
        $region37: #{tpu_custom_call.1} parent=11 // pred_check
          %p421 = pneg %p230
        $region38: #{tpu_custom_call.1} parent=11 // pred_check_branch
          %423 = sbr.rel (%p421) target = $region40
        $region39: #{tpu_custom_call.1} parent=11 // pred_region
          %s425 = ssub.s32 128, 128
          %426 = vsyncadd [#allocation15], %s425
          %s427 = sshll.u32 [#allocation14], 4
          %s428 = int_to_ptr.vmem [resolvable:$true] %s427
          %433 = dma.hbm_to_vmem [thread:$0]  %s8, 128, %s428, [#allocation15], 64, 64, 4
        $region40: #{tpu_custom_call.1} parent=11 // pred_fallthru
          _
        // Predicated region
        $region41: #{tpu_custom_call.1} parent=11 // pred_check
          %p434 = pneg %p251
        $region42: #{tpu_custom_call.1} parent=11 // pred_check_branch
          %436 = sbr.rel (%p434) target = $region44
        $region43: #{tpu_custom_call.1} parent=11 // pred_region
          _
        $region44: #{tpu_custom_call.1} parent=11 // pred_fallthru
          _
        // Predicated region
        $region45: #{tpu_custom_call.1} parent=11 // pred_check
          %p437 = pneg %p272
        $region46: #{tpu_custom_call.1} parent=11 // pred_check_branch
          %439 = sbr.rel (%p437) target = $region48
        $region47: #{tpu_custom_call.1} parent=11 // pred_region
          _
        $region48: #{tpu_custom_call.1} parent=11 // pred_fallthru
          _
        // Predicated region
        $region49: #{tpu_custom_call.1} parent=11 // pred_check
          %p440 = pneg %p293
        $region50: #{tpu_custom_call.1} parent=11 // pred_check_branch
          %442 = sbr.rel (%p440) target = $region52
        $region51: #{tpu_custom_call.1} parent=11 // pred_region
          %s444 = ssub.s32 512, 512
          %445 = vsyncadd [#allocation15], %s444
          %s446 = sshll.u32 [#allocation16], 4
          %s447 = int_to_ptr.vmem [resolvable:$true] %s446
          %452 = dma.hbm_to_vmem [thread:$0]  %s11, 512, %s447, [#allocation15], 64, 64, 4
        $region52: #{tpu_custom_call.1} parent=11 // pred_fallthru
          _
        // Predicated region
        $region53: #{tpu_custom_call.1} parent=11 // pred_check
          %p453 = pneg %p314
        $region54: #{tpu_custom_call.1} parent=11 // pred_check_branch
          %455 = sbr.rel (%p453) target = $region56
        $region55: #{tpu_custom_call.1} parent=11 // pred_region
          _
        $region56: #{tpu_custom_call.1} parent=11 // pred_fallthru
          _
      $region12: #{tpu_custom_call.1} parent=5 // pred_fallthru
        _
      %p456 = scmp.lt.s32.totalorder %s31, 2
      // Predicated region
      $region57: #{tpu_custom_call.1} parent=5 // pred_check
        %p457 = pneg %p456
      $region58: #{tpu_custom_call.1} parent=5 // pred_check_branch
        %459 = sbr.rel (%p457) target = $region60
      $region59: #{tpu_custom_call.1} parent=5 // pred_region
        // Predicated region
        $region61: #{tpu_custom_call.1} parent=59 // pred_check
          %p460 = pneg %p51
        $region62: #{tpu_custom_call.1} parent=59 // pred_check_branch
          %462 = sbr.rel (%p460) target = $region64
        $region63: #{tpu_custom_call.1} parent=59 // pred_region
          %s463 = sand.u32 %s41, 1
          %s464 = scalar_lea.sflag [#allocation3], %s463
          %s465 = sand.u32 %s41, 1
          %s466 = smul.addr %s465, 8
          %s467 = scalar_lea.vmem [#allocation2], %s466
          %s469 = ssub.s32 128, 128
          %470 = vsyncadd %s464, %s469
          %s471 = smul.addr %s31, 128
          %s472 = scalar_lea.hbm %s0, %s471
          %s474 = sshll.u32 %s467, 4
          %s475 = int_to_ptr.vmem [resolvable:$true] %s474
          %477 = dma.hbm_to_vmem [thread:$0]  %s472, 128, %s475, %s464
        $region64: #{tpu_custom_call.1} parent=59 // pred_fallthru
          _
        // Predicated region
        $region65: #{tpu_custom_call.1} parent=59 // pred_check
          %p478 = pneg %p77
        $region66: #{tpu_custom_call.1} parent=59 // pred_check_branch
          %480 = sbr.rel (%p478) target = $region68
        $region67: #{tpu_custom_call.1} parent=59 // pred_region
          %s481 = sand.u32 %s31, 1
          %s482 = scalar_lea.sflag [#allocation6], %s481
          %s483 = sand.u32 %s67, 1
          %s484 = scalar_lea.vmem [#allocation5], %s483
          %s486 = ssub.s32 16, 16
          %487 = vsyncadd %s482, %s486
          %s488 = smul.addr %s31, 16
          %s489 = scalar_lea.hbm %s1, %s488
          %s491 = sshll.u32 %s484, 4
          %s492 = int_to_ptr.vmem [resolvable:$true] %s491
          %494 = dma.hbm_to_vmem [thread:$0]  %s489, 16, %s492, %s482
        $region68: #{tpu_custom_call.1} parent=59 // pred_fallthru
          _
      $region60: #{tpu_custom_call.1} parent=5 // pred_fallthru
        _
      %p495 = scmp.le.s32.totalorder 1, %s31
      %p496 = scmp.lt.s32.totalorder %s31, 3
      %p497 = pnand %p495, %p496
      %p498 = pneg %p497
      // Predicated region
      $region69: #{tpu_custom_call.1} parent=5 // pred_check
        _
      $region70: #{tpu_custom_call.1} parent=5 // pred_check_branch
        %500 = sbr.rel (%p497) target = $region72
      $region71: #{tpu_custom_call.1} parent=5 // pred_region
        %s501 = ssub.s32 %s31, 1
        %s502 = sand.u32 %s44, 1
        %s503 = scalar_lea.sflag [#allocation3], %s502
        %s504 = sand.u32 %s44, 1
        %s505 = smul.addr %s504, 8
        %s506 = scalar_lea.vmem [#allocation2], %s505
        // Predicated region
        $region73: #{tpu_custom_call.1} parent=71 // pred_check
          %p507 = pneg %p57
        $region74: #{tpu_custom_call.1} parent=71 // pred_check_branch
          %509 = sbr.rel (%p507) target = $region76
        $region75: #{tpu_custom_call.1} parent=71 // pred_region
          %510 = dma.done %s503, 128
        $region76: #{tpu_custom_call.1} parent=71 // pred_fallthru
          _
        %s511 = sand.u32 %s36, 1
        %s512 = scalar_lea.sflag [#allocation6], %s511
        %s513 = sand.u32 %s70, 1
        %s514 = scalar_lea.vmem [#allocation5], %s513
        // Predicated region
        $region77: #{tpu_custom_call.1} parent=71 // pred_check
          %p515 = pneg %p83
        $region78: #{tpu_custom_call.1} parent=71 // pred_check_branch
          %517 = sbr.rel (%p515) target = $region80
        $region79: #{tpu_custom_call.1} parent=71 // pred_region
          %518 = dma.done %s512, 16
        $region80: #{tpu_custom_call.1} parent=71 // pred_fallthru
          _
        // Predicated region
        $region81: #{tpu_custom_call.1} parent=71 // pred_check
          %p519 = pneg %p104
        $region82: #{tpu_custom_call.1} parent=71 // pred_check_branch
          %521 = sbr.rel (%p519) target = $region84
        $region83: #{tpu_custom_call.1} parent=71 // pred_region
          %522 = dma.done [#allocation6], 32
        $region84: #{tpu_custom_call.1} parent=71 // pred_fallthru
          _
        // Predicated region
        $region85: #{tpu_custom_call.1} parent=71 // pred_check
          %p523 = pneg %p125
        $region86: #{tpu_custom_call.1} parent=71 // pred_check_branch
          %525 = sbr.rel (%p523) target = $region88
        $region87: #{tpu_custom_call.1} parent=71 // pred_region
          %526 = dma.done [#allocation9], 6144
        $region88: #{tpu_custom_call.1} parent=71 // pred_fallthru
          _
        // Predicated region
        $region89: #{tpu_custom_call.1} parent=71 // pred_check
          %p527 = pneg %p167
        $region90: #{tpu_custom_call.1} parent=71 // pred_check_branch
          %529 = sbr.rel (%p527) target = $region92
        $region91: #{tpu_custom_call.1} parent=71 // pred_region
          %530 = dma.done [#allocation9], 8192
        $region92: #{tpu_custom_call.1} parent=71 // pred_fallthru
          _
        // Predicated region
        $region93: #{tpu_custom_call.1} parent=71 // pred_check
          %p531 = pneg %p188
        $region94: #{tpu_custom_call.1} parent=71 // pred_check_branch
          %533 = sbr.rel (%p531) target = $region96
        $region95: #{tpu_custom_call.1} parent=71 // pred_region
          %534 = dma.done [#allocation12], 8192
        $region96: #{tpu_custom_call.1} parent=71 // pred_fallthru
          _
        // Predicated region
        $region97: #{tpu_custom_call.1} parent=71 // pred_check
          %p535 = pneg %p209
        $region98: #{tpu_custom_call.1} parent=71 // pred_check_branch
          %537 = sbr.rel (%p535) target = $region100
        $region99: #{tpu_custom_call.1} parent=71 // pred_region
          %538 = dma.done [#allocation12], 96
        $region100: #{tpu_custom_call.1} parent=71 // pred_fallthru
          _
        // Predicated region
        $region101: #{tpu_custom_call.1} parent=71 // pred_check
          %p539 = pneg %p230
        $region102: #{tpu_custom_call.1} parent=71 // pred_check_branch
          %541 = sbr.rel (%p539) target = $region104
        $region103: #{tpu_custom_call.1} parent=71 // pred_region
          %542 = dma.done [#allocation15], 128
        $region104: #{tpu_custom_call.1} parent=71 // pred_fallthru
          _
        // Predicated region
        $region105: #{tpu_custom_call.1} parent=71 // pred_check
          %p543 = pneg %p293
        $region106: #{tpu_custom_call.1} parent=71 // pred_check_branch
          %545 = sbr.rel (%p543) target = $region108
        $region107: #{tpu_custom_call.1} parent=71 // pred_region
          %546 = dma.done [#allocation15], 512
        $region108: #{tpu_custom_call.1} parent=71 // pred_fallthru
          _
        %s547 = sand.u32 %s44, 1
        %s548 = scalar_lea.sflag [#allocation3], %s547
        %s549 = sand.u32 %s44, 1
        %s550 = smul.addr %s549, 8
        %s551 = scalar_lea.vmem [#allocation2], %s550
        %p552 = pneg %p57
        %p553 = pneg %p54
        %s554 = sand.u32 %s36, 1
        %s555 = scalar_lea.sflag [#allocation6], %s554
        %s556 = sand.u32 %s70, 1
        %s557 = scalar_lea.vmem [#allocation5], %s556
        %p558 = pneg %p83
        %p559 = pneg %p80
        %p560 = pneg %p104
        %p561 = pneg %p101
        %p562 = pneg %p125
        %p563 = pneg %p122
        %p564 = pneg %p146
        %p565 = pneg %p143
        %p566 = pneg %p167
        %p567 = pneg %p164
        %p568 = pneg %p188
        %p569 = pneg %p185
        %p570 = pneg %p209
        %p571 = pneg %p206
        %p572 = pneg %p230
        %p573 = pneg %p227
        %p574 = pneg %p251
        %p575 = pneg %p248
        %p576 = pneg %p272
        %p577 = pneg %p269
        %p578 = pneg %p293
        %p579 = pneg %p290
        %p580 = pneg %p314
        %p581 = pneg %p311
        %p582 = pneg %p340
        %p583 = pneg %p337
        %s584 = sand.u32 %s327, 1
        %s585 = scalar_lea.sflag [#allocation4], %s584
        %s586 = sand.u32 %s327, 1
        %s587 = smul.addr %s586, 8
        %s588 = scalar_lea.vmem [#allocation17], %s587
        %v590 = vld [vmem:[%s506] sm:$0xff]
        %v591 = vld [vmem:[%s514] sm:$0x1]
        %v592 = vld [vmem:[#allocation7] sm:$0x1]
        %v593 = vld [vmem:[#allocation7 + $0x1] sm:$0x1]
        %594 = vadd.xlane.f32.xlu0 %v590
        %v595 = vpop.xlane.xlu0 %594
        %v596 = vrcp.pop 128.0
        %v597 = vmul.f32 %v595, %v596
        %v598 = vsub.f32 %v590, %v597
        %v599 = vmul.f32 %v598, %v598
        %600 = vadd.xlane.f32.xlu0 %v599
        %v601 = vpop.xlane.xlu0 %600
        %v602 = vmul.f32 %v601, %v596
        %v603 = vadd.f32 %v602, 1e-12
        %v604 = vrsqrt.pop %v603
        %v605 = vmul.f32 %v598, %v604
        %v606 = vlaneseq
        %v607 = vshrl.u32 %v606, 7
        %v608 = vsub.s32 0, %v607
        %v609 = vrot.slane %v592, %v608
        %v610 = vmul.f32 %v605, %v609
        %v611 = vlaneseq
        %v612 = vshrl.u32 %v611, 7
        %v613 = vsub.s32 0, %v612
        %v614 = vrot.slane %v593, %v613
        %v615 = vadd.f32 %v610, %v614
        %v616 = vpack.c.bf16 %v615, %v615
        %v617 = vld [vmem:[#allocation8] sm:$0xff]
        %v618 = vld [vmem:[#allocation8 + $0x8] sm:$0xf]
        %v619 = vld [vmem:[#allocation8 + $0xc] sm:$0xff]
        %v620 = vld [vmem:[#allocation8 + $0x14] sm:$0xf]
        %v621 = vld [vmem:[#allocation8 + $0x18] sm:$0xff]
        %v622 = vld [vmem:[#allocation8 + $0x20] sm:$0xf]
        %v623 = vld [vmem:[#allocation8 + $0x24] sm:$0xff]
        %v624 = vld [vmem:[#allocation8 + $0x2c] sm:$0xf]
        %v625 = vld [vmem:[#allocation8 + $0x30] sm:$0xff]
        %v626 = vld [vmem:[#allocation8 + $0x38] sm:$0xf]
        %v627 = vld [vmem:[#allocation8 + $0x3c] sm:$0xff]
        %v628 = vld [vmem:[#allocation8 + $0x44] sm:$0xf]
        %v629 = vld [vmem:[#allocation8 + $0x48] sm:$0xff]
        %v630 = vld [vmem:[#allocation8 + $0x50] sm:$0xf]
        %v631 = vld [vmem:[#allocation8 + $0x54] sm:$0xff]
        %v632 = vld [vmem:[#allocation8 + $0x5c] sm:$0xf]
        %v633 = vld [vmem:[#allocation8 + $0x60] sm:$0xff]
        %v634 = vld [vmem:[#allocation8 + $0x68] sm:$0xf]
        %v635 = vld [vmem:[#allocation8 + $0x6c] sm:$0xff]
        %v636 = vld [vmem:[#allocation8 + $0x74] sm:$0xf]
        %v637 = vld [vmem:[#allocation8 + $0x78] sm:$0xff]
        %v638 = vld [vmem:[#allocation8 + $0x80] sm:$0xf]
        %v639 = vld [vmem:[#allocation8 + $0x84] sm:$0xff]
        %v640 = vld [vmem:[#allocation8 + $0x8c] sm:$0xf]
        %v641 = vld [vmem:[#allocation8 + $0x90] sm:$0xff]
        %v642 = vld [vmem:[#allocation8 + $0x98] sm:$0xf]
        %v643 = vld [vmem:[#allocation8 + $0x9c] sm:$0xff]
        %v644 = vld [vmem:[#allocation8 + $0xa4] sm:$0xf]
        %v645 = vld [vmem:[#allocation8 + $0xa8] sm:$0xff]
        %v646 = vld [vmem:[#allocation8 + $0xb0] sm:$0xf]
        %v647 = vld [vmem:[#allocation8 + $0xb4] sm:$0xff]
        %v648 = vld [vmem:[#allocation8 + $0xbc] sm:$0xf]
        %v649 = vld [vmem:[#allocation13] sm:$0x7]
        %v651 = vlaneseq
        %v652 = vshrl.u32 %v651, 7
        %v653 = vsub.s32 0, %v652
        %v654 = vrot.slane %v649, %v653
        %v655 = vlaneseq
        %v656 = vshrl.u32 %v655, 7
        %v657 = vsub.s32 1, %v656
        %v658 = vrot.slane %v649, %v657
        %v659 = vlaneseq
        %v660 = vshrl.u32 %v659, 7
        %v661 = vsub.s32 2, %v660
        %v662 = vrot.slane %v649, %v661
        %v698 = vunpack.c.l.b16 %v617
        %v699 = vunpack.c.h.b16 %v617
        %v700 = vunpack.c.l.b16 %v618
        %v701 = vunpack.c.l.b16 %v619
        %v702 = vunpack.c.h.b16 %v619
        %v703 = vunpack.c.l.b16 %v620
        %v704 = vunpack.c.l.b16 %v621
        %v705 = vunpack.c.h.b16 %v621
        %v706 = vunpack.c.l.b16 %v622
        %v707 = vunpack.c.l.b16 %v623
        %v708 = vunpack.c.h.b16 %v623
        %v709 = vunpack.c.l.b16 %v624
        %v710 = vunpack.c.l.b16 %v625
        %v711 = vunpack.c.h.b16 %v625
        %v712 = vunpack.c.l.b16 %v626
        %v713 = vunpack.c.l.b16 %v627
        %v714 = vunpack.c.h.b16 %v627
        %v715 = vunpack.c.l.b16 %v628
        %v716 = vunpack.c.l.b16 %v629
        %v717 = vunpack.c.h.b16 %v629
        %v718 = vunpack.c.l.b16 %v630
        %v719 = vunpack.c.l.b16 %v631
        %v720 = vunpack.c.h.b16 %v631
        %v721 = vunpack.c.l.b16 %v632
        %v722 = vunpack.c.l.b16 %v633
        %v723 = vunpack.c.h.b16 %v633
        %v724 = vunpack.c.l.b16 %v634
        %v725 = vunpack.c.l.b16 %v635
        %v726 = vunpack.c.h.b16 %v635
        %v727 = vunpack.c.l.b16 %v636
        %v728 = vunpack.c.l.b16 %v637
        %v729 = vunpack.c.h.b16 %v637
        %v730 = vunpack.c.l.b16 %v638
        %v731 = vunpack.c.l.b16 %v639
        %v732 = vunpack.c.h.b16 %v639
        %v733 = vunpack.c.l.b16 %v640
        %v734 = vunpack.c.l.b16 %v641
        %v735 = vunpack.c.h.b16 %v641
        %v736 = vunpack.c.l.b16 %v642
        %v737 = vunpack.c.l.b16 %v643
        %v738 = vunpack.c.h.b16 %v643
        %v739 = vunpack.c.l.b16 %v644
        %v740 = vunpack.c.l.b16 %v645
        %v741 = vunpack.c.h.b16 %v645
        %v742 = vunpack.c.l.b16 %v646
        %v743 = vunpack.c.l.b16 %v647
        %v744 = vunpack.c.h.b16 %v647
        %v745 = vunpack.c.l.b16 %v648
        %v746 = vpack.c.b16 %v701, %v698
        %v747 = vpack.c.b16 %v702, %v699
        %v748 = vpack.c.b16 %v703, %v700
        %v749 = vpack.c.b16 %v707, %v704
        %v750 = vpack.c.b16 %v708, %v705
        %v751 = vpack.c.b16 %v709, %v706
        %v752 = vpack.c.b16 %v713, %v710
        %v753 = vpack.c.b16 %v714, %v711
        %v754 = vpack.c.b16 %v715, %v712
        %v755 = vpack.c.b16 %v719, %v716
        %v756 = vpack.c.b16 %v720, %v717
        %v757 = vpack.c.b16 %v721, %v718
        %v758 = vpack.c.b16 %v725, %v722
        %v759 = vpack.c.b16 %v726, %v723
        %v760 = vpack.c.b16 %v727, %v724
        %v761 = vpack.c.b16 %v731, %v728
        %v762 = vpack.c.b16 %v732, %v729
        %v763 = vpack.c.b16 %v733, %v730
        %v764 = vpack.c.b16 %v737, %v734
        %v765 = vpack.c.b16 %v738, %v735
        %v766 = vpack.c.b16 %v739, %v736
        %v767 = vpack.c.b16 %v743, %v740
        %v768 = vpack.c.b16 %v744, %v741
        %v769 = vpack.c.b16 %v745, %v742
        %794 = vmatprep.subr.bf16.mxu0 %v747
        %795 = vmatpush1.bf16.msra.mxu0 %v746
        %796 = vmatprep.subr.bf16.mxu0 %v750
        %797 = vmatpush1.bf16.msra.mxu0 %v749
        %798 = vmatprep.subr.bf16.mxu0 %v753
        %799 = vmatpush1.bf16.msra.mxu0 %v752
        %800 = vmatprep.subr.bf16.mxu0 %v756
        %801 = vmatpush1.bf16.msra.mxu0 %v755
        %802 = vmatprep.subr.bf16.mxu0 %v759
        %803 = vmatpush1.bf16.msra.mxu0 %v758
        %804 = vmatprep.subr.bf16.mxu0 %v762
        %805 = vmatpush1.bf16.msra.mxu0 %v761
        %806 = vmatprep.subr.bf16.mxu0 %v765
        %807 = vmatpush1.bf16.msra.mxu0 %v764
        %808 = vmatprep.subr.bf16.mxu0 %v768
        %809 = vmatpush1.bf16.msra.mxu0 %v767
        %810 = vmatprep.subr.bf16.mxu0 0
        %811 = vmatpush1.bf16.msra.mxu0 0
        %812 = vmatprep.subr.bf16.mxu0 0
        %813 = vmatpush1.bf16.msra.mxu0 0
        %814 = vmatprep.subr.bf16.mxu0 0
        %815 = vmatpush1.bf16.msra.mxu0 0
        %816 = vmatprep.subr.bf16.mxu0 0
        %817 = vmatpush1.bf16.msra.mxu0 0
        %818 = vmatprep.subr.bf16.mxu0 0
        %819 = vmatpush1.bf16.msra.mxu0 0
        %820 = vmatprep.subr.bf16.mxu0 0
        %821 = vmatpush1.bf16.msra.mxu0 0
        %822 = vmatprep.subr.bf16.mxu0 0
        %823 = vmatpush1.bf16.msra.mxu0 0
        %824 = vmatprep.subr.bf16.mxu0 0
        %825 = vmatpush1.bf16.msra.mxu0 0
        %826 = vmatprep.mubr.bf16.mxu0 0
        %827 = vmatmul.mubr.bf16.gmra.mrb[0].mxu0 %v616
        %v828 = vpop.f32.mrb[0].mxu0
        %v829 = vadd.f32 %v654, %v828
        %v830 = vpop.f32.mrb[0].mxu0
        %v831 = vadd.f32 %v658, %v830
        %v832 = vpop.f32.mrb[0].mxu0
        %v833 = vpop.f32.mrb[0].mxu0
        %834 = vdwg.mxu0
        %835 = vmatprep.subr.bf16.mxu0 0
        %836 = vmatpush1.bf16.msra.mxu0 %v748
        %837 = vmatprep.subr.bf16.mxu0 0
        %838 = vmatpush1.bf16.msra.mxu0 %v751
        %839 = vmatprep.subr.bf16.mxu0 0
        %840 = vmatpush1.bf16.msra.mxu0 %v754
        %841 = vmatprep.subr.bf16.mxu0 0
        %842 = vmatpush1.bf16.msra.mxu0 %v757
        %843 = vmatprep.subr.bf16.mxu0 0
        %844 = vmatpush1.bf16.msra.mxu0 %v760
        %845 = vmatprep.subr.bf16.mxu0 0
        %846 = vmatpush1.bf16.msra.mxu0 %v763
        %847 = vmatprep.subr.bf16.mxu0 0
        %848 = vmatpush1.bf16.msra.mxu0 %v766
        %849 = vmatprep.subr.bf16.mxu0 0
        %850 = vmatpush1.bf16.msra.mxu0 %v769
        %851 = vmatprep.subr.bf16.mxu0 0
        %852 = vmatpush1.bf16.msra.mxu0 0
        %853 = vmatprep.subr.bf16.mxu0 0
        %854 = vmatpush1.bf16.msra.mxu0 0
        %855 = vmatprep.subr.bf16.mxu0 0
        %856 = vmatpush1.bf16.msra.mxu0 0
        %857 = vmatprep.subr.bf16.mxu0 0
        %858 = vmatpush1.bf16.msra.mxu0 0
        %859 = vmatprep.subr.bf16.mxu0 0
        %860 = vmatpush1.bf16.msra.mxu0 0
        %861 = vmatprep.subr.bf16.mxu0 0
        %862 = vmatpush1.bf16.msra.mxu0 0
        %863 = vmatprep.subr.bf16.mxu0 0
        %864 = vmatpush1.bf16.msra.mxu0 0
        %865 = vmatprep.subr.bf16.mxu0 0
        %866 = vmatpush1.bf16.msra.mxu0 0
        %867 = vmatprep.mubr.bf16.mxu0 0
        %868 = vmatmul.mubr.bf16.gmra.mrb[0].mxu0 %v616
        %v869 = vpop.f32.mrb[0].mxu0
        %v870 = vadd.f32 %v662, %v869
        %v871 = vpop.f32.mrb[0].mxu0
        %v872 = vpop.f32.mrb[0].mxu0
        %v873 = vpop.f32.mrb[0].mxu0
        %874 = vdwg.mxu0
        %v875 = vpack.c.bf16 %v829, %v829
        %v876 = vpack.c.bf16 %v831, %v831
        %vm877 = vcmask 261120
        %v879 = vsel %vm877, %v875, 0
        %v882 = vsel %vm877, %v876, 0
        %884 = vmatprep.subr.bf16.mxu0 0
        %885 = vmatpush1.bf16.xpose.msra.mxu0 %v882
        %886 = vmatprep.subr.bf16.mxu0 0
        %887 = vmatpush1.bf16.xpose.msra.mxu0 0
        %888 = vmatprep.subr.bf16.mxu0 0
        %889 = vmatpush1.bf16.xpose.msra.mxu0 0
        %890 = vmatprep.subr.bf16.mxu0 0
        %891 = vmatpush1.bf16.xpose.msra.mxu0 0
        %892 = vmatprep.subr.bf16.mxu0 0
        %893 = vmatpush1.bf16.xpose.msra.mxu0 0
        %894 = vmatprep.subr.bf16.mxu0 0
        %895 = vmatpush1.bf16.xpose.msra.mxu0 0
        %896 = vmatprep.subr.bf16.mxu0 0
        %897 = vmatpush1.bf16.xpose.msra.mxu0 0
        %898 = vmatprep.subr.bf16.mxu0 0
        %899 = vmatpush1.bf16.xpose.msra.mxu0 0
        %900 = vmatprep.subr.bf16.mxu0 0
        %901 = vmatpush1.bf16.xpose.msra.mxu0 0
        %902 = vmatprep.subr.bf16.mxu0 0
        %903 = vmatpush1.bf16.xpose.msra.mxu0 0
        %904 = vmatprep.subr.bf16.mxu0 0
        %905 = vmatpush1.bf16.xpose.msra.mxu0 0
        %906 = vmatprep.subr.bf16.mxu0 0
        %907 = vmatpush1.bf16.xpose.msra.mxu0 0
        %908 = vmatprep.subr.bf16.mxu0 0
        %909 = vmatpush1.bf16.xpose.msra.mxu0 0
        %910 = vmatprep.subr.bf16.mxu0 0
        %911 = vmatpush1.bf16.xpose.msra.mxu0 0
        %912 = vmatprep.subr.bf16.mxu0 0
        %913 = vmatpush1.bf16.xpose.msra.mxu0 0
        %914 = vmatprep.subr.bf16.mxu0 0
        %915 = vmatpush1.bf16.xpose.msra.mxu0 0
        %916 = vmatprep.mubr.bf16.mxu0 0
        %917 = vmatmul.mubr.bf16.gmra.mrb[0].mxu0 %v879
        %v918 = vpop.f32.mrb[0].mxu0
        %v919 = vadd.f32 0.0, %v918
        %v920 = vpop.f32.mrb[0].mxu0
        %v921 = vpop.f32.mrb[0].mxu0
        %v922 = vpop.f32.mrb[0].mxu0
        %923 = vdwg.mxu0
        %v924 = vmul.f32 %v919, 0.17677669
        %v926 = vlaneseq
        %v927 = vshrl.u32 %v926, 7
        %v928 = vsub.s32 0, %v927
        %v929 = vrot.slane %v591, %v928
        %v931 = vadd.f32 %v924, %v929
        %vm932 = vcmask 64512
        %v933 = vsel %vm932, %v931, -inf
        %934 = vmax.xlane.f32.xlu0 %v933
        %v935 = vpop.xlane.xlu0 %934
        %v936 = vsub.f32 %v931, %v935
        %v937 = vmul.f32 %v936, 1.442695
        %v938 = vpow.pop %v937
        %v939 = vsel %vm932, %v938, 0.0
        %940 = vadd.xlane.f32.xlu0 %v939
        %v941 = vpop.xlane.xlu0 %940
        %v942 = vrcp.pop %v941
        %v943 = vmul.f32 %v938, %v942
        %v944 = vpack.c.bf16 %v943, %v943
        %v945 = vpack.c.bf16 %v870, %v870
        %v947 = vsel %vm932, %v944, 0
        %vm949 = vcmask 1043456
        %v951 = vsel %vm949, %v945, 0
        %953 = vmatprep.subr.bf16.mxu0 0
        %954 = vmatpush1.bf16.msra.mxu0 %v951
        %955 = vmatprep.subr.bf16.mxu0 0
        %956 = vmatpush1.bf16.msra.mxu0 0
        %957 = vmatprep.subr.bf16.mxu0 0
        %958 = vmatpush1.bf16.msra.mxu0 0
        %959 = vmatprep.subr.bf16.mxu0 0
        %960 = vmatpush1.bf16.msra.mxu0 0
        %961 = vmatprep.subr.bf16.mxu0 0
        %962 = vmatpush1.bf16.msra.mxu0 0
        %963 = vmatprep.subr.bf16.mxu0 0
        %964 = vmatpush1.bf16.msra.mxu0 0
        %965 = vmatprep.subr.bf16.mxu0 0
        %966 = vmatpush1.bf16.msra.mxu0 0
        %967 = vmatprep.subr.bf16.mxu0 0
        %968 = vmatpush1.bf16.msra.mxu0 0
        %969 = vmatprep.subr.bf16.mxu0 0
        %970 = vmatpush1.bf16.msra.mxu0 0
        %971 = vmatprep.subr.bf16.mxu0 0
        %972 = vmatpush1.bf16.msra.mxu0 0
        %973 = vmatprep.subr.bf16.mxu0 0
        %974 = vmatpush1.bf16.msra.mxu0 0
        %975 = vmatprep.subr.bf16.mxu0 0
        %976 = vmatpush1.bf16.msra.mxu0 0
        %977 = vmatprep.subr.bf16.mxu0 0
        %978 = vmatpush1.bf16.msra.mxu0 0
        %979 = vmatprep.subr.bf16.mxu0 0
        %980 = vmatpush1.bf16.msra.mxu0 0
        %981 = vmatprep.subr.bf16.mxu0 0
        %982 = vmatpush1.bf16.msra.mxu0 0
        %983 = vmatprep.subr.bf16.mxu0 0
        %984 = vmatpush1.bf16.msra.mxu0 0
        %985 = vmatprep.mubr.bf16.mxu0 0
        %986 = vmatmul.mubr.bf16.gmra.mrb[0].mxu0 %v947
        %v987 = vpop.f32.mrb[0].mxu0
        %v988 = vadd.f32 0.0, %v987
        %v989 = vpop.f32.mrb[0].mxu0
        %v990 = vpop.f32.mrb[0].mxu0
        %v991 = vpop.f32.mrb[0].mxu0
        %992 = vdwg.mxu0
        %994 = vrot.lane.b32.xlu0 %v875, 96
        %v995 = vpop.permute.xlu0 %994
        %997 = vrot.lane.b32.xlu0 %v876, 96
        %v998 = vpop.permute.xlu0 %997
        %v1000 = vsel %vm877, %v995, 0
        %v1003 = vsel %vm877, %v998, 0
        %1005 = vmatprep.subr.bf16.mxu0 0
        %1006 = vmatpush1.bf16.xpose.msra.mxu0 %v1003
        %1007 = vmatprep.subr.bf16.mxu0 0
        %1008 = vmatpush1.bf16.xpose.msra.mxu0 0
        %1009 = vmatprep.subr.bf16.mxu0 0
        %1010 = vmatpush1.bf16.xpose.msra.mxu0 0
        %1011 = vmatprep.subr.bf16.mxu0 0
        %1012 = vmatpush1.bf16.xpose.msra.mxu0 0
        %1013 = vmatprep.subr.bf16.mxu0 0
        %1014 = vmatpush1.bf16.xpose.msra.mxu0 0
        %1015 = vmatprep.subr.bf16.mxu0 0
        %1016 = vmatpush1.bf16.xpose.msra.mxu0 0
        %1017 = vmatprep.subr.bf16.mxu0 0
        %1018 = vmatpush1.bf16.xpose.msra.mxu0 0
        %1019 = vmatprep.subr.bf16.mxu0 0
        %1020 = vmatpush1.bf16.xpose.msra.mxu0 0
        %1021 = vmatprep.subr.bf16.mxu0 0
        %1022 = vmatpush1.bf16.xpose.msra.mxu0 0
        %1023 = vmatprep.subr.bf16.mxu0 0
        %1024 = vmatpush1.bf16.xpose.msra.mxu0 0
        %1025 = vmatprep.subr.bf16.mxu0 0
        %1026 = vmatpush1.bf16.xpose.msra.mxu0 0
        %1027 = vmatprep.subr.bf16.mxu0 0
        %1028 = vmatpush1.bf16.xpose.msra.mxu0 0
        %1029 = vmatprep.subr.bf16.mxu0 0
        %1030 = vmatpush1.bf16.xpose.msra.mxu0 0
        %1031 = vmatprep.subr.bf16.mxu0 0
        %1032 = vmatpush1.bf16.xpose.msra.mxu0 0
        %1033 = vmatprep.subr.bf16.mxu0 0
        %1034 = vmatpush1.bf16.xpose.msra.mxu0 0
        %1035 = vmatprep.subr.bf16.mxu0 0
        %1036 = vmatpush1.bf16.xpose.msra.mxu0 0
        %1037 = vmatprep.mubr.bf16.mxu0 0
        %1038 = vmatmul.mubr.bf16.gmra.mrb[0].mxu0 %v1000
        %v1039 = vpop.f32.mrb[0].mxu0
        %v1040 = vadd.f32 0.0, %v1039
        %v1041 = vpop.f32.mrb[0].mxu0
        %v1042 = vpop.f32.mrb[0].mxu0
        %v1043 = vpop.f32.mrb[0].mxu0
        %1044 = vdwg.mxu0
        %v1045 = vmul.f32 %v1040, 0.17677669
        %v1046 = vadd.f32 %v1045, %v929
        %v1047 = vsel %vm932, %v1046, -inf
        %1048 = vmax.xlane.f32.xlu0 %v1047
        %v1049 = vpop.xlane.xlu0 %1048
        %v1050 = vsub.f32 %v1046, %v1049
        %v1051 = vmul.f32 %v1050, 1.442695
        %v1052 = vpow.pop %v1051
        %v1053 = vsel %vm932, %v1052, 0.0
        %1054 = vadd.xlane.f32.xlu0 %v1053
        %v1055 = vpop.xlane.xlu0 %1054
        %v1056 = vrcp.pop %v1055
        %v1057 = vmul.f32 %v1052, %v1056
        %v1058 = vpack.c.bf16 %v1057, %v1057
        %1060 = vrot.lane.b32.xlu0 %v945, 96
        %v1061 = vpop.permute.xlu0 %1060
        %v1063 = vsel %vm932, %v1058, 0
        %v1066 = vsel %vm949, %v1061, 0
        %1068 = vmatprep.subr.bf16.mxu0 0
        %1069 = vmatpush1.bf16.msra.mxu0 %v1066
        %1070 = vmatprep.subr.bf16.mxu0 0
        %1071 = vmatpush1.bf16.msra.mxu0 0
        %1072 = vmatprep.subr.bf16.mxu0 0
        %1073 = vmatpush1.bf16.msra.mxu0 0
        %1074 = vmatprep.subr.bf16.mxu0 0
        %1075 = vmatpush1.bf16.msra.mxu0 0
        %1076 = vmatprep.subr.bf16.mxu0 0
        %1077 = vmatpush1.bf16.msra.mxu0 0
        %1078 = vmatprep.subr.bf16.mxu0 0
        %1079 = vmatpush1.bf16.msra.mxu0 0
        %1080 = vmatprep.subr.bf16.mxu0 0
        %1081 = vmatpush1.bf16.msra.mxu0 0
        %1082 = vmatprep.subr.bf16.mxu0 0
        %1083 = vmatpush1.bf16.msra.mxu0 0
        %1084 = vmatprep.subr.bf16.mxu0 0
        %1085 = vmatpush1.bf16.msra.mxu0 0
        %1086 = vmatprep.subr.bf16.mxu0 0
        %1087 = vmatpush1.bf16.msra.mxu0 0
        %1088 = vmatprep.subr.bf16.mxu0 0
        %1089 = vmatpush1.bf16.msra.mxu0 0
        %1090 = vmatprep.subr.bf16.mxu0 0
        %1091 = vmatpush1.bf16.msra.mxu0 0
        %1092 = vmatprep.subr.bf16.mxu0 0
        %1093 = vmatpush1.bf16.msra.mxu0 0
        %1094 = vmatprep.subr.bf16.mxu0 0
        %1095 = vmatpush1.bf16.msra.mxu0 0
        %1096 = vmatprep.subr.bf16.mxu0 0
        %1097 = vmatpush1.bf16.msra.mxu0 0
        %1098 = vmatprep.subr.bf16.mxu0 0
        %1099 = vmatpush1.bf16.msra.mxu0 0
        %1100 = vmatprep.mubr.bf16.mxu0 0
        %1101 = vmatmul.mubr.bf16.gmra.mrb[0].mxu0 %v1063
        %v1102 = vpop.f32.mrb[0].mxu0
        %v1103 = vadd.f32 0.0, %v1102
        %v1104 = vpop.f32.mrb[0].mxu0
        %v1105 = vpop.f32.mrb[0].mxu0
        %v1106 = vpop.f32.mrb[0].mxu0
        %1107 = vdwg.mxu0
        %1108 = vrot.lane.b32.xlu0 %v875, 64
        %v1109 = vpop.permute.xlu0 %1108
        %1110 = vrot.lane.b32.xlu0 %v876, 64
        %v1111 = vpop.permute.xlu0 %1110
        %v1113 = vsel %vm877, %v1109, 0
        %v1116 = vsel %vm877, %v1111, 0
        %1118 = vmatprep.subr.bf16.mxu0 0
        %1119 = vmatpush1.bf16.xpose.msra.mxu0 %v1116
        %1120 = vmatprep.subr.bf16.mxu0 0
        %1121 = vmatpush1.bf16.xpose.msra.mxu0 0
        %1122 = vmatprep.subr.bf16.mxu0 0
        %1123 = vmatpush1.bf16.xpose.msra.mxu0 0
        %1124 = vmatprep.subr.bf16.mxu0 0
        %1125 = vmatpush1.bf16.xpose.msra.mxu0 0
        %1126 = vmatprep.subr.bf16.mxu0 0
        %1127 = vmatpush1.bf16.xpose.msra.mxu0 0
        %1128 = vmatprep.subr.bf16.mxu0 0
        %1129 = vmatpush1.bf16.xpose.msra.mxu0 0
        %1130 = vmatprep.subr.bf16.mxu0 0
        %1131 = vmatpush1.bf16.xpose.msra.mxu0 0
        %1132 = vmatprep.subr.bf16.mxu0 0
        %1133 = vmatpush1.bf16.xpose.msra.mxu0 0
        %1134 = vmatprep.subr.bf16.mxu0 0
        %1135 = vmatpush1.bf16.xpose.msra.mxu0 0
        %1136 = vmatprep.subr.bf16.mxu0 0
        %1137 = vmatpush1.bf16.xpose.msra.mxu0 0
        %1138 = vmatprep.subr.bf16.mxu0 0
        %1139 = vmatpush1.bf16.xpose.msra.mxu0 0
        %1140 = vmatprep.subr.bf16.mxu0 0
        %1141 = vmatpush1.bf16.xpose.msra.mxu0 0
        %1142 = vmatprep.subr.bf16.mxu0 0
        %1143 = vmatpush1.bf16.xpose.msra.mxu0 0
        %1144 = vmatprep.subr.bf16.mxu0 0
        %1145 = vmatpush1.bf16.xpose.msra.mxu0 0
        %1146 = vmatprep.subr.bf16.mxu0 0
        %1147 = vmatpush1.bf16.xpose.msra.mxu0 0
        %1148 = vmatprep.subr.bf16.mxu0 0
        %1149 = vmatpush1.bf16.xpose.msra.mxu0 0
        %1150 = vmatprep.mubr.bf16.mxu0 0
        %1151 = vmatmul.mubr.bf16.gmra.mrb[0].mxu0 %v1113
        %v1152 = vpop.f32.mrb[0].mxu0
        %v1153 = vadd.f32 0.0, %v1152
        %v1154 = vpop.f32.mrb[0].mxu0
        %v1155 = vpop.f32.mrb[0].mxu0
        %v1156 = vpop.f32.mrb[0].mxu0
        %1157 = vdwg.mxu0
        %v1158 = vmul.f32 %v1153, 0.17677669
        %v1159 = vadd.f32 %v1158, %v929
        %v1160 = vsel %vm932, %v1159, -inf
        %1161 = vmax.xlane.f32.xlu0 %v1160
        %v1162 = vpop.xlane.xlu0 %1161
        %v1163 = vsub.f32 %v1159, %v1162
        %v1164 = vmul.f32 %v1163, 1.442695
        %v1165 = vpow.pop %v1164
        %v1166 = vsel %vm932, %v1165, 0.0
        %1167 = vadd.xlane.f32.xlu0 %v1166
        %v1168 = vpop.xlane.xlu0 %1167
        %v1169 = vrcp.pop %v1168
        %v1170 = vmul.f32 %v1165, %v1169
        %v1171 = vpack.c.bf16 %v1170, %v1170
        %1172 = vrot.lane.b32.xlu0 %v945, 64
        %v1173 = vpop.permute.xlu0 %1172
        %v1175 = vsel %vm932, %v1171, 0
        %v1178 = vsel %vm949, %v1173, 0
        %1180 = vmatprep.subr.bf16.mxu0 0
        %1181 = vmatpush1.bf16.msra.mxu0 %v1178
        %1182 = vmatprep.subr.bf16.mxu0 0
        %1183 = vmatpush1.bf16.msra.mxu0 0
        %1184 = vmatprep.subr.bf16.mxu0 0
        %1185 = vmatpush1.bf16.msra.mxu0 0
        %1186 = vmatprep.subr.bf16.mxu0 0
        %1187 = vmatpush1.bf16.msra.mxu0 0
        %1188 = vmatprep.subr.bf16.mxu0 0
        %1189 = vmatpush1.bf16.msra.mxu0 0
        %1190 = vmatprep.subr.bf16.mxu0 0
        %1191 = vmatpush1.bf16.msra.mxu0 0
        %1192 = vmatprep.subr.bf16.mxu0 0
        %1193 = vmatpush1.bf16.msra.mxu0 0
        %1194 = vmatprep.subr.bf16.mxu0 0
        %1195 = vmatpush1.bf16.msra.mxu0 0
        %1196 = vmatprep.subr.bf16.mxu0 0
        %1197 = vmatpush1.bf16.msra.mxu0 0
        %1198 = vmatprep.subr.bf16.mxu0 0
        %1199 = vmatpush1.bf16.msra.mxu0 0
        %1200 = vmatprep.subr.bf16.mxu0 0
        %1201 = vmatpush1.bf16.msra.mxu0 0
        %1202 = vmatprep.subr.bf16.mxu0 0
        %1203 = vmatpush1.bf16.msra.mxu0 0
        %1204 = vmatprep.subr.bf16.mxu0 0
        %1205 = vmatpush1.bf16.msra.mxu0 0
        %1206 = vmatprep.subr.bf16.mxu0 0
        %1207 = vmatpush1.bf16.msra.mxu0 0
        %1208 = vmatprep.subr.bf16.mxu0 0
        %1209 = vmatpush1.bf16.msra.mxu0 0
        %1210 = vmatprep.subr.bf16.mxu0 0
        %1211 = vmatpush1.bf16.msra.mxu0 0
        %1212 = vmatprep.mubr.bf16.mxu0 0
        %1213 = vmatmul.mubr.bf16.gmra.mrb[0].mxu0 %v1175
        %v1214 = vpop.f32.mrb[0].mxu0
        %v1215 = vadd.f32 0.0, %v1214
        %v1216 = vpop.f32.mrb[0].mxu0
        %v1217 = vpop.f32.mrb[0].mxu0
        %v1218 = vpop.f32.mrb[0].mxu0
        %1219 = vdwg.mxu0
        %1220 = vrot.lane.b32.xlu0 %v875, 32
        %v1221 = vpop.permute.xlu0 %1220
        %1222 = vrot.lane.b32.xlu0 %v876, 32
        %v1223 = vpop.permute.xlu0 %1222
        %v1225 = vsel %vm877, %v1221, 0
        %v1228 = vsel %vm877, %v1223, 0
        %1230 = vmatprep.subr.bf16.mxu0 0
        %1231 = vmatpush1.bf16.xpose.msra.mxu0 %v1228
        %1232 = vmatprep.subr.bf16.mxu0 0
        %1233 = vmatpush1.bf16.xpose.msra.mxu0 0
        %1234 = vmatprep.subr.bf16.mxu0 0
        %1235 = vmatpush1.bf16.xpose.msra.mxu0 0
        %1236 = vmatprep.subr.bf16.mxu0 0
        %1237 = vmatpush1.bf16.xpose.msra.mxu0 0
        %1238 = vmatprep.subr.bf16.mxu0 0
        %1239 = vmatpush1.bf16.xpose.msra.mxu0 0
        %1240 = vmatprep.subr.bf16.mxu0 0
        %1241 = vmatpush1.bf16.xpose.msra.mxu0 0
        %1242 = vmatprep.subr.bf16.mxu0 0
        %1243 = vmatpush1.bf16.xpose.msra.mxu0 0
        %1244 = vmatprep.subr.bf16.mxu0 0
        %1245 = vmatpush1.bf16.xpose.msra.mxu0 0
        %1246 = vmatprep.subr.bf16.mxu0 0
        %1247 = vmatpush1.bf16.xpose.msra.mxu0 0
        %1248 = vmatprep.subr.bf16.mxu0 0
        %1249 = vmatpush1.bf16.xpose.msra.mxu0 0
        %1250 = vmatprep.subr.bf16.mxu0 0
        %1251 = vmatpush1.bf16.xpose.msra.mxu0 0
        %1252 = vmatprep.subr.bf16.mxu0 0
        %1253 = vmatpush1.bf16.xpose.msra.mxu0 0
        %1254 = vmatprep.subr.bf16.mxu0 0
        %1255 = vmatpush1.bf16.xpose.msra.mxu0 0
        %1256 = vmatprep.subr.bf16.mxu0 0
        %1257 = vmatpush1.bf16.xpose.msra.mxu0 0
        %1258 = vmatprep.subr.bf16.mxu0 0
        %1259 = vmatpush1.bf16.xpose.msra.mxu0 0
        %1260 = vmatprep.subr.bf16.mxu0 0
        %1261 = vmatpush1.bf16.xpose.msra.mxu0 0
        %1262 = vmatprep.mubr.bf16.mxu0 0
        %1263 = vmatmul.mubr.bf16.gmra.mrb[0].mxu0 %v1225
        %v1264 = vpop.f32.mrb[0].mxu0
        %v1265 = vadd.f32 0.0, %v1264
        %v1266 = vpop.f32.mrb[0].mxu0
        %v1267 = vpop.f32.mrb[0].mxu0
        %v1268 = vpop.f32.mrb[0].mxu0
        %1269 = vdwg.mxu0
        %v1270 = vmul.f32 %v1265, 0.17677669
        %v1271 = vadd.f32 %v1270, %v929
        %v1272 = vsel %vm932, %v1271, -inf
        %1273 = vmax.xlane.f32.xlu0 %v1272
        %v1274 = vpop.xlane.xlu0 %1273
        %v1275 = vsub.f32 %v1271, %v1274
        %v1276 = vmul.f32 %v1275, 1.442695
        %v1277 = vpow.pop %v1276
        %v1278 = vsel %vm932, %v1277, 0.0
        %1279 = vadd.xlane.f32.xlu0 %v1278
        %v1280 = vpop.xlane.xlu0 %1279
        %v1281 = vrcp.pop %v1280
        %v1282 = vmul.f32 %v1277, %v1281
        %v1283 = vpack.c.bf16 %v1282, %v1282
        %1284 = vrot.lane.b32.xlu0 %v945, 32
        %v1285 = vpop.permute.xlu0 %1284
        %v1287 = vsel %vm932, %v1283, 0
        %v1290 = vsel %vm949, %v1285, 0
        %1292 = vmatprep.subr.bf16.mxu0 0
        %1293 = vmatpush1.bf16.msra.mxu0 %v1290
        %1294 = vmatprep.subr.bf16.mxu0 0
        %1295 = vmatpush1.bf16.msra.mxu0 0
        %1296 = vmatprep.subr.bf16.mxu0 0
        %1297 = vmatpush1.bf16.msra.mxu0 0
        %1298 = vmatprep.subr.bf16.mxu0 0
        %1299 = vmatpush1.bf16.msra.mxu0 0
        %1300 = vmatprep.subr.bf16.mxu0 0
        %1301 = vmatpush1.bf16.msra.mxu0 0
        %1302 = vmatprep.subr.bf16.mxu0 0
        %1303 = vmatpush1.bf16.msra.mxu0 0
        %1304 = vmatprep.subr.bf16.mxu0 0
        %1305 = vmatpush1.bf16.msra.mxu0 0
        %1306 = vmatprep.subr.bf16.mxu0 0
        %1307 = vmatpush1.bf16.msra.mxu0 0
        %1308 = vmatprep.subr.bf16.mxu0 0
        %1309 = vmatpush1.bf16.msra.mxu0 0
        %1310 = vmatprep.subr.bf16.mxu0 0
        %1311 = vmatpush1.bf16.msra.mxu0 0
        %1312 = vmatprep.subr.bf16.mxu0 0
        %1313 = vmatpush1.bf16.msra.mxu0 0
        %1314 = vmatprep.subr.bf16.mxu0 0
        %1315 = vmatpush1.bf16.msra.mxu0 0
        %1316 = vmatprep.subr.bf16.mxu0 0
        %1317 = vmatpush1.bf16.msra.mxu0 0
        %1318 = vmatprep.subr.bf16.mxu0 0
        %1319 = vmatpush1.bf16.msra.mxu0 0
        %1320 = vmatprep.subr.bf16.mxu0 0
        %1321 = vmatpush1.bf16.msra.mxu0 0
        %1322 = vmatprep.subr.bf16.mxu0 0
        %1323 = vmatpush1.bf16.msra.mxu0 0
        %1324 = vmatprep.mubr.bf16.mxu0 0
        %1325 = vmatmul.mubr.bf16.gmra.mrb[0].mxu0 %v1287
        %v1326 = vpop.f32.mrb[0].mxu0
        %v1327 = vadd.f32 0.0, %v1326
        %v1328 = vpop.f32.mrb[0].mxu0
        %v1329 = vpop.f32.mrb[0].mxu0
        %v1330 = vpop.f32.mrb[0].mxu0
        %1331 = vdwg.mxu0
        %1333 = vrot.lane.b32.xlu0 %v1103, 32
        %v1334 = vpop.permute.xlu0 %1333
        %1337 = vrot.lane.b32.xlu0 %v1215, 64
        %v1338 = vpop.permute.xlu0 %1337
        %1341 = vrot.lane.b32.xlu0 %v1327, 96
        %v1342 = vpop.permute.xlu0 %1341
        %v1344 = vsel %vm877, %v988, %v1334
        %vm1345 = vcmask 523264
        %v1346 = vsel %vm1345, %v1344, %v1338
        %vm1347 = vcmask 785408
        %v1348 = vsel %vm1347, %v1346, %v1342
        %v1349 = vpack.c.bf16 %v1348, %v1348
        %v1350 = vld [vmem:[%s4] sm:$0xf]
        %v1351 = vld [vmem:[%s4 + $0x4] sm:$0xf]
        %v1352 = vld [vmem:[%s4 + $0x8] sm:$0xf]
        %v1353 = vld [vmem:[%s4 + $0xc] sm:$0xf]
        %v1354 = vld [vmem:[%s4 + $0x10] sm:$0xf]
        %v1355 = vld [vmem:[%s4 + $0x14] sm:$0xf]
        %v1356 = vld [vmem:[%s4 + $0x18] sm:$0xf]
        %v1357 = vld [vmem:[%s4 + $0x1c] sm:$0xf]
        %v1358 = vld [vmem:[%s4 + $0x20] sm:$0xf]
        %v1359 = vld [vmem:[%s4 + $0x24] sm:$0xf]
        %v1360 = vld [vmem:[%s4 + $0x28] sm:$0xf]
        %v1361 = vld [vmem:[%s4 + $0x2c] sm:$0xf]
        %v1362 = vld [vmem:[%s4 + $0x30] sm:$0xf]
        %v1363 = vld [vmem:[%s4 + $0x34] sm:$0xf]
        %v1364 = vld [vmem:[%s4 + $0x38] sm:$0xf]
        %v1365 = vld [vmem:[%s4 + $0x3c] sm:$0xf]
        %v1366 = vld [vmem:[%s9] sm:$0x1]
        %v1367 = vlaneseq
        %v1368 = vshrl.u32 %v1367, 7
        %v1369 = vsub.s32 0, %v1368
        %v1370 = vrot.slane %v1366, %v1369
        %v1387 = vunpack.c.l.b16 %v1350
        %v1388 = vunpack.c.l.b16 %v1351
        %v1389 = vunpack.c.l.b16 %v1352
        %v1390 = vunpack.c.l.b16 %v1353
        %v1391 = vunpack.c.l.b16 %v1354
        %v1392 = vunpack.c.l.b16 %v1355
        %v1393 = vunpack.c.l.b16 %v1356
        %v1394 = vunpack.c.l.b16 %v1357
        %v1395 = vunpack.c.l.b16 %v1358
        %v1396 = vunpack.c.l.b16 %v1359
        %v1397 = vunpack.c.l.b16 %v1360
        %v1398 = vunpack.c.l.b16 %v1361
        %v1399 = vunpack.c.l.b16 %v1362
        %v1400 = vunpack.c.l.b16 %v1363
        %v1401 = vunpack.c.l.b16 %v1364
        %v1402 = vunpack.c.l.b16 %v1365
        %v1403 = vpack.c.b16 %v1388, %v1387
        %v1404 = vpack.c.b16 %v1390, %v1389
        %v1405 = vpack.c.b16 %v1392, %v1391
        %v1406 = vpack.c.b16 %v1394, %v1393
        %v1407 = vpack.c.b16 %v1396, %v1395
        %v1408 = vpack.c.b16 %v1398, %v1397
        %v1409 = vpack.c.b16 %v1400, %v1399
        %v1410 = vpack.c.b16 %v1402, %v1401
        %1419 = vmatprep.subr.bf16.mxu0 0
        %1420 = vmatpush1.bf16.msra.mxu0 %v1403
        %1421 = vmatprep.subr.bf16.mxu0 0
        %1422 = vmatpush1.bf16.msra.mxu0 %v1404
        %1423 = vmatprep.subr.bf16.mxu0 0
        %1424 = vmatpush1.bf16.msra.mxu0 %v1405
        %1425 = vmatprep.subr.bf16.mxu0 0
        %1426 = vmatpush1.bf16.msra.mxu0 %v1406
        %1427 = vmatprep.subr.bf16.mxu0 0
        %1428 = vmatpush1.bf16.msra.mxu0 %v1407
        %1429 = vmatprep.subr.bf16.mxu0 0
        %1430 = vmatpush1.bf16.msra.mxu0 %v1408
        %1431 = vmatprep.subr.bf16.mxu0 0
        %1432 = vmatpush1.bf16.msra.mxu0 %v1409
        %1433 = vmatprep.subr.bf16.mxu0 0
        %1434 = vmatpush1.bf16.msra.mxu0 %v1410
        %1435 = vmatprep.subr.bf16.mxu0 0
        %1436 = vmatpush1.bf16.msra.mxu0 0
        %1437 = vmatprep.subr.bf16.mxu0 0
        %1438 = vmatpush1.bf16.msra.mxu0 0
        %1439 = vmatprep.subr.bf16.mxu0 0
        %1440 = vmatpush1.bf16.msra.mxu0 0
        %1441 = vmatprep.subr.bf16.mxu0 0
        %1442 = vmatpush1.bf16.msra.mxu0 0
        %1443 = vmatprep.subr.bf16.mxu0 0
        %1444 = vmatpush1.bf16.msra.mxu0 0
        %1445 = vmatprep.subr.bf16.mxu0 0
        %1446 = vmatpush1.bf16.msra.mxu0 0
        %1447 = vmatprep.subr.bf16.mxu0 0
        %1448 = vmatpush1.bf16.msra.mxu0 0
        %1449 = vmatprep.subr.bf16.mxu0 0
        %1450 = vmatpush1.bf16.msra.mxu0 0
        %1451 = vmatprep.mubr.bf16.mxu0 0
        %1452 = vmatmul.mubr.bf16.gmra.mrb[0].mxu0 %v1349
        %v1453 = vpop.f32.mrb[0].mxu0
        %v1454 = vadd.f32 %v1370, %v1453
        %v1455 = vpop.f32.mrb[0].mxu0
        %v1456 = vpop.f32.mrb[0].mxu0
        %v1457 = vpop.f32.mrb[0].mxu0
        %1458 = vdwg.mxu0
        %v1459 = vadd.f32 %v615, %v1454
        %v1460 = vld [vmem:[%s9 + $0x1] sm:$0x1]
        %v1461 = vld [vmem:[%s9 + $0x2] sm:$0x1]
        %1462 = vadd.xlane.f32.xlu0 %v1459
        %v1463 = vpop.xlane.xlu0 %1462
        %v1464 = vmul.f32 %v1463, %v596
        %v1465 = vsub.f32 %v1459, %v1464
        %v1466 = vmul.f32 %v1465, %v1465
        %1467 = vadd.xlane.f32.xlu0 %v1466
        %v1468 = vpop.xlane.xlu0 %1467
        %v1469 = vmul.f32 %v1468, %v596
        %v1470 = vadd.f32 %v1469, 1e-12
        %v1471 = vrsqrt.pop %v1470
        %v1472 = vmul.f32 %v1465, %v1471
        %v1473 = vlaneseq
        %v1474 = vshrl.u32 %v1473, 7
        %v1475 = vsub.s32 0, %v1474
        %v1476 = vrot.slane %v1460, %v1475
        %v1477 = vmul.f32 %v1472, %v1476
        %v1478 = vlaneseq
        %v1479 = vshrl.u32 %v1478, 7
        %v1480 = vsub.s32 0, %v1479
        %v1481 = vrot.slane %v1461, %v1480
        %v1482 = vadd.f32 %v1477, %v1481
        %v1483 = vpack.c.bf16 %v1482, %v1482
        %v1484 = vld [vmem:[#allocation10] sm:$0xff]
        %v1485 = vld [vmem:[#allocation10 + $0x8] sm:$0xff]
        %v1486 = vld [vmem:[#allocation10 + $0x10] sm:$0xff]
        %v1487 = vld [vmem:[#allocation10 + $0x18] sm:$0xff]
        %v1488 = vld [vmem:[#allocation10 + $0x20] sm:$0xff]
        %v1489 = vld [vmem:[#allocation10 + $0x28] sm:$0xff]
        %v1490 = vld [vmem:[#allocation10 + $0x30] sm:$0xff]
        %v1491 = vld [vmem:[#allocation10 + $0x38] sm:$0xff]
        %v1492 = vld [vmem:[#allocation10 + $0x40] sm:$0xff]
        %v1493 = vld [vmem:[#allocation10 + $0x48] sm:$0xff]
        %v1494 = vld [vmem:[#allocation10 + $0x50] sm:$0xff]
        %v1495 = vld [vmem:[#allocation10 + $0x58] sm:$0xff]
        %v1496 = vld [vmem:[#allocation10 + $0x60] sm:$0xff]
        %v1497 = vld [vmem:[#allocation10 + $0x68] sm:$0xff]
        %v1498 = vld [vmem:[#allocation10 + $0x70] sm:$0xff]
        %v1499 = vld [vmem:[#allocation10 + $0x78] sm:$0xff]
        %v1500 = vld [vmem:[#allocation10 + $0x80] sm:$0xff]
        %v1501 = vld [vmem:[#allocation10 + $0x88] sm:$0xff]
        %v1502 = vld [vmem:[#allocation10 + $0x90] sm:$0xff]
        %v1503 = vld [vmem:[#allocation10 + $0x98] sm:$0xff]
        %v1504 = vld [vmem:[#allocation10 + $0xa0] sm:$0xff]
        %v1505 = vld [vmem:[#allocation10 + $0xa8] sm:$0xff]
        %v1506 = vld [vmem:[#allocation10 + $0xb0] sm:$0xff]
        %v1507 = vld [vmem:[#allocation10 + $0xb8] sm:$0xff]
        %v1508 = vld [vmem:[#allocation10 + $0xc0] sm:$0xff]
        %v1509 = vld [vmem:[#allocation10 + $0xc8] sm:$0xff]
        %v1510 = vld [vmem:[#allocation10 + $0xd0] sm:$0xff]
        %v1511 = vld [vmem:[#allocation10 + $0xd8] sm:$0xff]
        %v1512 = vld [vmem:[#allocation10 + $0xe0] sm:$0xff]
        %v1513 = vld [vmem:[#allocation10 + $0xe8] sm:$0xff]
        %v1514 = vld [vmem:[#allocation10 + $0xf0] sm:$0xff]
        %v1515 = vld [vmem:[#allocation10 + $0xf8] sm:$0xff]
        %v1516 = vld [vmem:[#allocation14] sm:$0xf]
        %v1518 = vlaneseq
        %v1519 = vshrl.u32 %v1518, 7
        %v1520 = vsub.s32 0, %v1519
        %v1521 = vrot.slane %v1516, %v1520
        %v1522 = vlaneseq
        %v1523 = vshrl.u32 %v1522, 7
        %v1524 = vsub.s32 1, %v1523
        %v1525 = vrot.slane %v1516, %v1524
        %v1526 = vlaneseq
        %v1527 = vshrl.u32 %v1526, 7
        %v1528 = vsub.s32 2, %v1527
        %v1529 = vrot.slane %v1516, %v1528
        %v1530 = vlaneseq
        %v1531 = vshrl.u32 %v1530, 7
        %v1532 = vsub.s32 3, %v1531
        %v1533 = vrot.slane %v1516, %v1532
        %v1570 = vunpack.c.l.b16 %v1484
        %v1571 = vunpack.c.h.b16 %v1484
        %v1572 = vunpack.c.l.b16 %v1485
        %v1573 = vunpack.c.h.b16 %v1485
        %v1574 = vunpack.c.l.b16 %v1486
        %v1575 = vunpack.c.h.b16 %v1486
        %v1576 = vunpack.c.l.b16 %v1487
        %v1577 = vunpack.c.h.b16 %v1487
        %v1578 = vunpack.c.l.b16 %v1488
        %v1579 = vunpack.c.h.b16 %v1488
        %v1580 = vunpack.c.l.b16 %v1489
        %v1581 = vunpack.c.h.b16 %v1489
        %v1582 = vunpack.c.l.b16 %v1490
        %v1583 = vunpack.c.h.b16 %v1490
        %v1584 = vunpack.c.l.b16 %v1491
        %v1585 = vunpack.c.h.b16 %v1491
        %v1586 = vunpack.c.l.b16 %v1492
        %v1587 = vunpack.c.h.b16 %v1492
        %v1588 = vunpack.c.l.b16 %v1493
        %v1589 = vunpack.c.h.b16 %v1493
        %v1590 = vunpack.c.l.b16 %v1494
        %v1591 = vunpack.c.h.b16 %v1494
        %v1592 = vunpack.c.l.b16 %v1495
        %v1593 = vunpack.c.h.b16 %v1495
        %v1594 = vunpack.c.l.b16 %v1496
        %v1595 = vunpack.c.h.b16 %v1496
        %v1596 = vunpack.c.l.b16 %v1497
        %v1597 = vunpack.c.h.b16 %v1497
        %v1598 = vunpack.c.l.b16 %v1498
        %v1599 = vunpack.c.h.b16 %v1498
        %v1600 = vunpack.c.l.b16 %v1499
        %v1601 = vunpack.c.h.b16 %v1499
        %v1602 = vunpack.c.l.b16 %v1500
        %v1603 = vunpack.c.h.b16 %v1500
        %v1604 = vunpack.c.l.b16 %v1501
        %v1605 = vunpack.c.h.b16 %v1501
        %v1606 = vunpack.c.l.b16 %v1502
        %v1607 = vunpack.c.h.b16 %v1502
        %v1608 = vunpack.c.l.b16 %v1503
        %v1609 = vunpack.c.h.b16 %v1503
        %v1610 = vunpack.c.l.b16 %v1504
        %v1611 = vunpack.c.h.b16 %v1504
        %v1612 = vunpack.c.l.b16 %v1505
        %v1613 = vunpack.c.h.b16 %v1505
        %v1614 = vunpack.c.l.b16 %v1506
        %v1615 = vunpack.c.h.b16 %v1506
        %v1616 = vunpack.c.l.b16 %v1507
        %v1617 = vunpack.c.h.b16 %v1507
        %v1618 = vunpack.c.l.b16 %v1508
        %v1619 = vunpack.c.h.b16 %v1508
        %v1620 = vunpack.c.l.b16 %v1509
        %v1621 = vunpack.c.h.b16 %v1509
        %v1622 = vunpack.c.l.b16 %v1510
        %v1623 = vunpack.c.h.b16 %v1510
        %v1624 = vunpack.c.l.b16 %v1511
        %v1625 = vunpack.c.h.b16 %v1511
        %v1626 = vunpack.c.l.b16 %v1512
        %v1627 = vunpack.c.h.b16 %v1512
        %v1628 = vunpack.c.l.b16 %v1513
        %v1629 = vunpack.c.h.b16 %v1513
        %v1630 = vunpack.c.l.b16 %v1514
        %v1631 = vunpack.c.h.b16 %v1514
        %v1632 = vunpack.c.l.b16 %v1515
        %v1633 = vunpack.c.h.b16 %v1515
        %v1634 = vpack.c.b16 %v1574, %v1570
        %v1635 = vpack.c.b16 %v1575, %v1571
        %v1636 = vpack.c.b16 %v1576, %v1572
        %v1637 = vpack.c.b16 %v1577, %v1573
        %v1638 = vpack.c.b16 %v1582, %v1578
        %v1639 = vpack.c.b16 %v1583, %v1579
        %v1640 = vpack.c.b16 %v1584, %v1580
        %v1641 = vpack.c.b16 %v1585, %v1581
        %v1642 = vpack.c.b16 %v1590, %v1586
        %v1643 = vpack.c.b16 %v1591, %v1587
        %v1644 = vpack.c.b16 %v1592, %v1588
        %v1645 = vpack.c.b16 %v1593, %v1589
        %v1646 = vpack.c.b16 %v1598, %v1594
        %v1647 = vpack.c.b16 %v1599, %v1595
        %v1648 = vpack.c.b16 %v1600, %v1596
        %v1649 = vpack.c.b16 %v1601, %v1597
        %v1650 = vpack.c.b16 %v1606, %v1602
        %v1651 = vpack.c.b16 %v1607, %v1603
        %v1652 = vpack.c.b16 %v1608, %v1604
        %v1653 = vpack.c.b16 %v1609, %v1605
        %v1654 = vpack.c.b16 %v1614, %v1610
        %v1655 = vpack.c.b16 %v1615, %v1611
        %v1656 = vpack.c.b16 %v1616, %v1612
        %v1657 = vpack.c.b16 %v1617, %v1613
        %v1658 = vpack.c.b16 %v1622, %v1618
        %v1659 = vpack.c.b16 %v1623, %v1619
        %v1660 = vpack.c.b16 %v1624, %v1620
        %v1661 = vpack.c.b16 %v1625, %v1621
        %v1662 = vpack.c.b16 %v1630, %v1626
        %v1663 = vpack.c.b16 %v1631, %v1627
        %v1664 = vpack.c.b16 %v1632, %v1628
        %v1665 = vpack.c.b16 %v1633, %v1629
        %1698 = vmatprep.subr.bf16.mxu0 %v1635
        %1699 = vmatpush1.bf16.msra.mxu0 %v1634
        %1700 = vmatprep.subr.bf16.mxu0 %v1639
        %1701 = vmatpush1.bf16.msra.mxu0 %v1638
        %1702 = vmatprep.subr.bf16.mxu0 %v1643
        %1703 = vmatpush1.bf16.msra.mxu0 %v1642
        %1704 = vmatprep.subr.bf16.mxu0 %v1647
        %1705 = vmatpush1.bf16.msra.mxu0 %v1646
        %1706 = vmatprep.subr.bf16.mxu0 %v1651
        %1707 = vmatpush1.bf16.msra.mxu0 %v1650
        %1708 = vmatprep.subr.bf16.mxu0 %v1655
        %1709 = vmatpush1.bf16.msra.mxu0 %v1654
        %1710 = vmatprep.subr.bf16.mxu0 %v1659
        %1711 = vmatpush1.bf16.msra.mxu0 %v1658
        %1712 = vmatprep.subr.bf16.mxu0 %v1663
        %1713 = vmatpush1.bf16.msra.mxu0 %v1662
        %1714 = vmatprep.subr.bf16.mxu0 0
        %1715 = vmatpush1.bf16.msra.mxu0 0
        %1716 = vmatprep.subr.bf16.mxu0 0
        %1717 = vmatpush1.bf16.msra.mxu0 0
        %1718 = vmatprep.subr.bf16.mxu0 0
        %1719 = vmatpush1.bf16.msra.mxu0 0
        %1720 = vmatprep.subr.bf16.mxu0 0
        %1721 = vmatpush1.bf16.msra.mxu0 0
        %1722 = vmatprep.subr.bf16.mxu0 0
        %1723 = vmatpush1.bf16.msra.mxu0 0
        %1724 = vmatprep.subr.bf16.mxu0 0
        %1725 = vmatpush1.bf16.msra.mxu0 0
        %1726 = vmatprep.subr.bf16.mxu0 0
        %1727 = vmatpush1.bf16.msra.mxu0 0
        %1728 = vmatprep.subr.bf16.mxu0 0
        %1729 = vmatpush1.bf16.msra.mxu0 0
        %1730 = vmatprep.mubr.bf16.mxu0 0
        %1731 = vmatmul.mubr.bf16.gmra.mrb[0].mxu0 %v1483
        %v1732 = vpop.f32.mrb[0].mxu0
        %v1733 = vadd.f32 %v1521, %v1732
        %v1734 = vpop.f32.mrb[0].mxu0
        %v1735 = vadd.f32 %v1525, %v1734
        %v1736 = vpop.f32.mrb[0].mxu0
        %v1737 = vpop.f32.mrb[0].mxu0
        %1738 = vdwg.mxu0
        %1739 = vmatprep.subr.bf16.mxu0 %v1637
        %1740 = vmatpush1.bf16.msra.mxu0 %v1636
        %1741 = vmatprep.subr.bf16.mxu0 %v1641
        %1742 = vmatpush1.bf16.msra.mxu0 %v1640
        %1743 = vmatprep.subr.bf16.mxu0 %v1645
        %1744 = vmatpush1.bf16.msra.mxu0 %v1644
        %1745 = vmatprep.subr.bf16.mxu0 %v1649
        %1746 = vmatpush1.bf16.msra.mxu0 %v1648
        %1747 = vmatprep.subr.bf16.mxu0 %v1653
        %1748 = vmatpush1.bf16.msra.mxu0 %v1652
        %1749 = vmatprep.subr.bf16.mxu0 %v1657
        %1750 = vmatpush1.bf16.msra.mxu0 %v1656
        %1751 = vmatprep.subr.bf16.mxu0 %v1661
        %1752 = vmatpush1.bf16.msra.mxu0 %v1660
        %1753 = vmatprep.subr.bf16.mxu0 %v1665
        %1754 = vmatpush1.bf16.msra.mxu0 %v1664
        %1755 = vmatprep.subr.bf16.mxu0 0
        %1756 = vmatpush1.bf16.msra.mxu0 0
        %1757 = vmatprep.subr.bf16.mxu0 0
        %1758 = vmatpush1.bf16.msra.mxu0 0
        %1759 = vmatprep.subr.bf16.mxu0 0
        %1760 = vmatpush1.bf16.msra.mxu0 0
        %1761 = vmatprep.subr.bf16.mxu0 0
        %1762 = vmatpush1.bf16.msra.mxu0 0
        %1763 = vmatprep.subr.bf16.mxu0 0
        %1764 = vmatpush1.bf16.msra.mxu0 0
        %1765 = vmatprep.subr.bf16.mxu0 0
        %1766 = vmatpush1.bf16.msra.mxu0 0
        %1767 = vmatprep.subr.bf16.mxu0 0
        %1768 = vmatpush1.bf16.msra.mxu0 0
        %1769 = vmatprep.subr.bf16.mxu0 0
        %1770 = vmatpush1.bf16.msra.mxu0 0
        %1771 = vmatprep.mubr.bf16.mxu0 0
        %1772 = vmatmul.mubr.bf16.gmra.mrb[0].mxu0 %v1483
        %v1773 = vpop.f32.mrb[0].mxu0
        %v1774 = vadd.f32 %v1529, %v1773
        %v1775 = vpop.f32.mrb[0].mxu0
        %v1776 = vadd.f32 %v1533, %v1775
        %v1777 = vpop.f32.mrb[0].mxu0
        %v1778 = vpop.f32.mrb[0].mxu0
        %1779 = vdwg.mxu0
        %v1780 = vmul.f32 %v1733, %v1733
        %v1781 = vmul.f32 %v1735, %v1735
        %v1782 = vmul.f32 %v1774, %v1774
        %v1783 = vmul.f32 %v1776, %v1776
        %v1784 = vmul.f32 %v1733, %v1780
        %v1785 = vmul.f32 %v1735, %v1781
        %v1786 = vmul.f32 %v1774, %v1782
        %v1787 = vmul.f32 %v1776, %v1783
        %v1788 = vmul.f32 %v1784, 0.044715
        %v1789 = vmul.f32 %v1785, 0.044715
        %v1790 = vmul.f32 %v1786, 0.044715
        %v1791 = vmul.f32 %v1787, 0.044715
        %v1792 = vadd.f32 %v1733, %v1788
        %v1793 = vadd.f32 %v1735, %v1789
        %v1794 = vadd.f32 %v1774, %v1790
        %v1795 = vadd.f32 %v1776, %v1791
        %v1796 = vmul.f32 %v1792, 0.7978846
        %v1797 = vmul.f32 %v1793, 0.7978846
        %v1798 = vmul.f32 %v1794, 0.7978846
        %v1799 = vmul.f32 %v1795, 0.7978846
        %v1800 = vtanh.pop %v1796
        %v1801 = vtanh.pop %v1797
        %v1802 = vtanh.pop %v1798
        %v1803 = vtanh.pop %v1799
        %v1804 = vadd.f32 %v1800, 1.0
        %v1805 = vadd.f32 %v1801, 1.0
        %v1806 = vadd.f32 %v1802, 1.0
        %v1807 = vadd.f32 %v1803, 1.0
        %v1808 = vmul.f32 %v1804, 0.5
        %v1809 = vmul.f32 %v1805, 0.5
        %v1810 = vmul.f32 %v1806, 0.5
        %v1811 = vmul.f32 %v1807, 0.5
        %v1812 = vmul.f32 %v1733, %v1808
        %v1813 = vmul.f32 %v1735, %v1809
        %v1814 = vmul.f32 %v1774, %v1810
        %v1815 = vmul.f32 %v1776, %v1811
        %v1816 = vpack.c.bf16 %v1812, %v1812
        %v1817 = vpack.c.bf16 %v1813, %v1813
        %v1818 = vpack.c.bf16 %v1814, %v1814
        %v1819 = vpack.c.bf16 %v1815, %v1815
        %v1820 = vld [vmem:[#allocation11] sm:$0xf]
        %v1821 = vld [vmem:[#allocation11 + $0x4] sm:$0xf]
        %v1822 = vld [vmem:[#allocation11 + $0x8] sm:$0xf]
        %v1823 = vld [vmem:[#allocation11 + $0xc] sm:$0xf]
        %v1824 = vld [vmem:[#allocation11 + $0x10] sm:$0xf]
        %v1825 = vld [vmem:[#allocation11 + $0x14] sm:$0xf]
        %v1826 = vld [vmem:[#allocation11 + $0x18] sm:$0xf]
        %v1827 = vld [vmem:[#allocation11 + $0x1c] sm:$0xf]
        %v1828 = vld [vmem:[#allocation11 + $0x20] sm:$0xf]
        %v1829 = vld [vmem:[#allocation11 + $0x24] sm:$0xf]
        %v1830 = vld [vmem:[#allocation11 + $0x28] sm:$0xf]
        %v1831 = vld [vmem:[#allocation11 + $0x2c] sm:$0xf]
        %v1832 = vld [vmem:[#allocation11 + $0x30] sm:$0xf]
        %v1833 = vld [vmem:[#allocation11 + $0x34] sm:$0xf]
        %v1834 = vld [vmem:[#allocation11 + $0x38] sm:$0xf]
        %v1835 = vld [vmem:[#allocation11 + $0x3c] sm:$0xf]
        %v1836 = vld [vmem:[#allocation11 + $0x40] sm:$0xf]
        %v1837 = vld [vmem:[#allocation11 + $0x44] sm:$0xf]
        %v1838 = vld [vmem:[#allocation11 + $0x48] sm:$0xf]
        %v1839 = vld [vmem:[#allocation11 + $0x4c] sm:$0xf]
        %v1840 = vld [vmem:[#allocation11 + $0x50] sm:$0xf]
        %v1841 = vld [vmem:[#allocation11 + $0x54] sm:$0xf]
        %v1842 = vld [vmem:[#allocation11 + $0x58] sm:$0xf]
        %v1843 = vld [vmem:[#allocation11 + $0x5c] sm:$0xf]
        %v1844 = vld [vmem:[#allocation11 + $0x60] sm:$0xf]
        %v1845 = vld [vmem:[#allocation11 + $0x64] sm:$0xf]
        %v1846 = vld [vmem:[#allocation11 + $0x68] sm:$0xf]
        %v1847 = vld [vmem:[#allocation11 + $0x6c] sm:$0xf]
        %v1848 = vld [vmem:[#allocation11 + $0x70] sm:$0xf]
        %v1849 = vld [vmem:[#allocation11 + $0x74] sm:$0xf]
        %v1850 = vld [vmem:[#allocation11 + $0x78] sm:$0xf]
        %v1851 = vld [vmem:[#allocation11 + $0x7c] sm:$0xf]
        %v1852 = vld [vmem:[#allocation11 + $0x80] sm:$0xf]
        %v1853 = vld [vmem:[#allocation11 + $0x84] sm:$0xf]
        %v1854 = vld [vmem:[#allocation11 + $0x88] sm:$0xf]
        %v1855 = vld [vmem:[#allocation11 + $0x8c] sm:$0xf]
        %v1856 = vld [vmem:[#allocation11 + $0x90] sm:$0xf]
        %v1857 = vld [vmem:[#allocation11 + $0x94] sm:$0xf]
        %v1858 = vld [vmem:[#allocation11 + $0x98] sm:$0xf]
        %v1859 = vld [vmem:[#allocation11 + $0x9c] sm:$0xf]
        %v1860 = vld [vmem:[#allocation11 + $0xa0] sm:$0xf]
        %v1861 = vld [vmem:[#allocation11 + $0xa4] sm:$0xf]
        %v1862 = vld [vmem:[#allocation11 + $0xa8] sm:$0xf]
        %v1863 = vld [vmem:[#allocation11 + $0xac] sm:$0xf]
        %v1864 = vld [vmem:[#allocation11 + $0xb0] sm:$0xf]
        %v1865 = vld [vmem:[#allocation11 + $0xb4] sm:$0xf]
        %v1866 = vld [vmem:[#allocation11 + $0xb8] sm:$0xf]
        %v1867 = vld [vmem:[#allocation11 + $0xbc] sm:$0xf]
        %v1868 = vld [vmem:[#allocation11 + $0xc0] sm:$0xf]
        %v1869 = vld [vmem:[#allocation11 + $0xc4] sm:$0xf]
        %v1870 = vld [vmem:[#allocation11 + $0xc8] sm:$0xf]
        %v1871 = vld [vmem:[#allocation11 + $0xcc] sm:$0xf]
        %v1872 = vld [vmem:[#allocation11 + $0xd0] sm:$0xf]
        %v1873 = vld [vmem:[#allocation11 + $0xd4] sm:$0xf]
        %v1874 = vld [vmem:[#allocation11 + $0xd8] sm:$0xf]
        %v1875 = vld [vmem:[#allocation11 + $0xdc] sm:$0xf]
        %v1876 = vld [vmem:[#allocation11 + $0xe0] sm:$0xf]
        %v1877 = vld [vmem:[#allocation11 + $0xe4] sm:$0xf]
        %v1878 = vld [vmem:[#allocation11 + $0xe8] sm:$0xf]
        %v1879 = vld [vmem:[#allocation11 + $0xec] sm:$0xf]
        %v1880 = vld [vmem:[#allocation11 + $0xf0] sm:$0xf]
        %v1881 = vld [vmem:[#allocation11 + $0xf4] sm:$0xf]
        %v1882 = vld [vmem:[#allocation11 + $0xf8] sm:$0xf]
        %v1883 = vld [vmem:[#allocation11 + $0xfc] sm:$0xf]
        %v1884 = vld [vmem:[%s9 + $0x3] sm:$0x1]
        %v1885 = vlaneseq
        %v1886 = vshrl.u32 %v1885, 7
        %v1887 = vsub.s32 0, %v1886
        %v1888 = vrot.slane %v1884, %v1887
        %v1953 = vunpack.c.l.b16 %v1820
        %v1954 = vunpack.c.l.b16 %v1821
        %v1955 = vunpack.c.l.b16 %v1822
        %v1956 = vunpack.c.l.b16 %v1823
        %v1957 = vunpack.c.l.b16 %v1824
        %v1958 = vunpack.c.l.b16 %v1825
        %v1959 = vunpack.c.l.b16 %v1826
        %v1960 = vunpack.c.l.b16 %v1827
        %v1961 = vunpack.c.l.b16 %v1828
        %v1962 = vunpack.c.l.b16 %v1829
        %v1963 = vunpack.c.l.b16 %v1830
        %v1964 = vunpack.c.l.b16 %v1831
        %v1965 = vunpack.c.l.b16 %v1832
        %v1966 = vunpack.c.l.b16 %v1833
        %v1967 = vunpack.c.l.b16 %v1834
        %v1968 = vunpack.c.l.b16 %v1835
        %v1969 = vunpack.c.l.b16 %v1836
        %v1970 = vunpack.c.l.b16 %v1837
        %v1971 = vunpack.c.l.b16 %v1838
        %v1972 = vunpack.c.l.b16 %v1839
        %v1973 = vunpack.c.l.b16 %v1840
        %v1974 = vunpack.c.l.b16 %v1841
        %v1975 = vunpack.c.l.b16 %v1842
        %v1976 = vunpack.c.l.b16 %v1843
        %v1977 = vunpack.c.l.b16 %v1844
        %v1978 = vunpack.c.l.b16 %v1845
        %v1979 = vunpack.c.l.b16 %v1846
        %v1980 = vunpack.c.l.b16 %v1847
        %v1981 = vunpack.c.l.b16 %v1848
        %v1982 = vunpack.c.l.b16 %v1849
        %v1983 = vunpack.c.l.b16 %v1850
        %v1984 = vunpack.c.l.b16 %v1851
        %v1985 = vunpack.c.l.b16 %v1852
        %v1986 = vunpack.c.l.b16 %v1853
        %v1987 = vunpack.c.l.b16 %v1854
        %v1988 = vunpack.c.l.b16 %v1855
        %v1989 = vunpack.c.l.b16 %v1856
        %v1990 = vunpack.c.l.b16 %v1857
        %v1991 = vunpack.c.l.b16 %v1858
        %v1992 = vunpack.c.l.b16 %v1859
        %v1993 = vunpack.c.l.b16 %v1860
        %v1994 = vunpack.c.l.b16 %v1861
        %v1995 = vunpack.c.l.b16 %v1862
        %v1996 = vunpack.c.l.b16 %v1863
        %v1997 = vunpack.c.l.b16 %v1864
        %v1998 = vunpack.c.l.b16 %v1865
        %v1999 = vunpack.c.l.b16 %v1866
        %v2000 = vunpack.c.l.b16 %v1867
        %v2001 = vunpack.c.l.b16 %v1868
        %v2002 = vunpack.c.l.b16 %v1869
        %v2003 = vunpack.c.l.b16 %v1870
        %v2004 = vunpack.c.l.b16 %v1871
        %v2005 = vunpack.c.l.b16 %v1872
        %v2006 = vunpack.c.l.b16 %v1873
        %v2007 = vunpack.c.l.b16 %v1874
        %v2008 = vunpack.c.l.b16 %v1875
        %v2009 = vunpack.c.l.b16 %v1876
        %v2010 = vunpack.c.l.b16 %v1877
        %v2011 = vunpack.c.l.b16 %v1878
        %v2012 = vunpack.c.l.b16 %v1879
        %v2013 = vunpack.c.l.b16 %v1880
        %v2014 = vunpack.c.l.b16 %v1881
        %v2015 = vunpack.c.l.b16 %v1882
        %v2016 = vunpack.c.l.b16 %v1883
        %v2017 = vpack.c.b16 %v1954, %v1953
        %v2018 = vpack.c.b16 %v1956, %v1955
        %v2019 = vpack.c.b16 %v1958, %v1957
        %v2020 = vpack.c.b16 %v1960, %v1959
        %v2021 = vpack.c.b16 %v1962, %v1961
        %v2022 = vpack.c.b16 %v1964, %v1963
        %v2023 = vpack.c.b16 %v1966, %v1965
        %v2024 = vpack.c.b16 %v1968, %v1967
        %v2025 = vpack.c.b16 %v1970, %v1969
        %v2026 = vpack.c.b16 %v1972, %v1971
        %v2027 = vpack.c.b16 %v1974, %v1973
        %v2028 = vpack.c.b16 %v1976, %v1975
        %v2029 = vpack.c.b16 %v1978, %v1977
        %v2030 = vpack.c.b16 %v1980, %v1979
        %v2031 = vpack.c.b16 %v1982, %v1981
        %v2032 = vpack.c.b16 %v1984, %v1983
        %v2033 = vpack.c.b16 %v1986, %v1985
        %v2034 = vpack.c.b16 %v1988, %v1987
        %v2035 = vpack.c.b16 %v1990, %v1989
        %v2036 = vpack.c.b16 %v1992, %v1991
        %v2037 = vpack.c.b16 %v1994, %v1993
        %v2038 = vpack.c.b16 %v1996, %v1995
        %v2039 = vpack.c.b16 %v1998, %v1997
        %v2040 = vpack.c.b16 %v2000, %v1999
        %v2041 = vpack.c.b16 %v2002, %v2001
        %v2042 = vpack.c.b16 %v2004, %v2003
        %v2043 = vpack.c.b16 %v2006, %v2005
        %v2044 = vpack.c.b16 %v2008, %v2007
        %v2045 = vpack.c.b16 %v2010, %v2009
        %v2046 = vpack.c.b16 %v2012, %v2011
        %v2047 = vpack.c.b16 %v2014, %v2013
        %v2048 = vpack.c.b16 %v2016, %v2015
        %2081 = vmatprep.subr.bf16.mxu0 0
        %2082 = vmatpush1.bf16.msra.mxu0 %v2017
        %2083 = vmatprep.subr.bf16.mxu0 0
        %2084 = vmatpush1.bf16.msra.mxu0 %v2018
        %2085 = vmatprep.subr.bf16.mxu0 0
        %2086 = vmatpush1.bf16.msra.mxu0 %v2019
        %2087 = vmatprep.subr.bf16.mxu0 0
        %2088 = vmatpush1.bf16.msra.mxu0 %v2020
        %2089 = vmatprep.subr.bf16.mxu0 0
        %2090 = vmatpush1.bf16.msra.mxu0 %v2021
        %2091 = vmatprep.subr.bf16.mxu0 0
        %2092 = vmatpush1.bf16.msra.mxu0 %v2022
        %2093 = vmatprep.subr.bf16.mxu0 0
        %2094 = vmatpush1.bf16.msra.mxu0 %v2023
        %2095 = vmatprep.subr.bf16.mxu0 0
        %2096 = vmatpush1.bf16.msra.mxu0 %v2024
        %2097 = vmatprep.subr.bf16.mxu0 0
        %2098 = vmatpush1.bf16.msra.mxu0 %v2025
        %2099 = vmatprep.subr.bf16.mxu0 0
        %2100 = vmatpush1.bf16.msra.mxu0 %v2026
        %2101 = vmatprep.subr.bf16.mxu0 0
        %2102 = vmatpush1.bf16.msra.mxu0 %v2027
        %2103 = vmatprep.subr.bf16.mxu0 0
        %2104 = vmatpush1.bf16.msra.mxu0 %v2028
        %2105 = vmatprep.subr.bf16.mxu0 0
        %2106 = vmatpush1.bf16.msra.mxu0 %v2029
        %2107 = vmatprep.subr.bf16.mxu0 0
        %2108 = vmatpush1.bf16.msra.mxu0 %v2030
        %2109 = vmatprep.subr.bf16.mxu0 0
        %2110 = vmatpush1.bf16.msra.mxu0 %v2031
        %2111 = vmatprep.subr.bf16.mxu0 0
        %2112 = vmatpush1.bf16.msra.mxu0 %v2032
        %2113 = vmatprep.mubr.bf16.mxu0 %v1817
        %2114 = vmatmul.mubr.bf16.gmra.mrb[0].mxu0 %v1816
        %v2115 = vpop.f32.mrb[0].mxu0
        %v2116 = vadd.f32 %v1888, %v2115
        %v2117 = vpop.f32.mrb[0].mxu0
        %v2118 = vpop.f32.mrb[0].mxu0
        %v2119 = vpop.f32.mrb[0].mxu0
        %2120 = vdwg.mxu0
        %2121 = vmatprep.subr.bf16.mxu0 0
        %2122 = vmatpush1.bf16.msra.mxu0 %v2033
        %2123 = vmatprep.subr.bf16.mxu0 0
        %2124 = vmatpush1.bf16.msra.mxu0 %v2034
        %2125 = vmatprep.subr.bf16.mxu0 0
        %2126 = vmatpush1.bf16.msra.mxu0 %v2035
        %2127 = vmatprep.subr.bf16.mxu0 0
        %2128 = vmatpush1.bf16.msra.mxu0 %v2036
        %2129 = vmatprep.subr.bf16.mxu0 0
        %2130 = vmatpush1.bf16.msra.mxu0 %v2037
        %2131 = vmatprep.subr.bf16.mxu0 0
        %2132 = vmatpush1.bf16.msra.mxu0 %v2038
        %2133 = vmatprep.subr.bf16.mxu0 0
        %2134 = vmatpush1.bf16.msra.mxu0 %v2039
        %2135 = vmatprep.subr.bf16.mxu0 0
        %2136 = vmatpush1.bf16.msra.mxu0 %v2040
        %2137 = vmatprep.subr.bf16.mxu0 0
        %2138 = vmatpush1.bf16.msra.mxu0 %v2041
        %2139 = vmatprep.subr.bf16.mxu0 0
        %2140 = vmatpush1.bf16.msra.mxu0 %v2042
        %2141 = vmatprep.subr.bf16.mxu0 0
        %2142 = vmatpush1.bf16.msra.mxu0 %v2043
        %2143 = vmatprep.subr.bf16.mxu0 0
        %2144 = vmatpush1.bf16.msra.mxu0 %v2044
        %2145 = vmatprep.subr.bf16.mxu0 0
        %2146 = vmatpush1.bf16.msra.mxu0 %v2045
        %2147 = vmatprep.subr.bf16.mxu0 0
        %2148 = vmatpush1.bf16.msra.mxu0 %v2046
        %2149 = vmatprep.subr.bf16.mxu0 0
        %2150 = vmatpush1.bf16.msra.mxu0 %v2047
        %2151 = vmatprep.subr.bf16.mxu0 0
        %2152 = vmatpush1.bf16.msra.mxu0 %v2048
        %2153 = vmatprep.mubr.bf16.mxu0 %v1819
        %2154 = vmatmul.mubr.bf16.gmra.mrb[0].mxu0 %v1818
        %v2155 = vpop.f32.mrb[0].mxu0
        %v2156 = vadd.f32 %v2116, %v2155
        %v2157 = vpop.f32.mrb[0].mxu0
        %v2158 = vpop.f32.mrb[0].mxu0
        %v2159 = vpop.f32.mrb[0].mxu0
        %2160 = vdwg.mxu0
        %v2161 = vadd.f32 %v1482, %v2156
        %v2162 = vld [vmem:[%s9 + $0x4] sm:$0x1]
        %v2163 = vld [vmem:[%s9 + $0x5] sm:$0x1]
        %2164 = vadd.xlane.f32.xlu0 %v2161
        %v2165 = vpop.xlane.xlu0 %2164
        %v2166 = vmul.f32 %v2165, %v596
        %v2167 = vsub.f32 %v2161, %v2166
        %v2168 = vmul.f32 %v2167, %v2167
        %2169 = vadd.xlane.f32.xlu0 %v2168
        %v2170 = vpop.xlane.xlu0 %2169
        %v2171 = vmul.f32 %v2170, %v596
        %v2172 = vadd.f32 %v2171, 1e-12
        %v2173 = vrsqrt.pop %v2172
        %v2174 = vmul.f32 %v2167, %v2173
        %v2175 = vlaneseq
        %v2176 = vshrl.u32 %v2175, 7
        %v2177 = vsub.s32 0, %v2176
        %v2178 = vrot.slane %v2162, %v2177
        %v2179 = vmul.f32 %v2174, %v2178
        %v2180 = vlaneseq
        %v2181 = vshrl.u32 %v2180, 7
        %v2182 = vsub.s32 0, %v2181
        %v2183 = vrot.slane %v2163, %v2182
        %v2184 = vadd.f32 %v2179, %v2183
        %v2185 = vpack.c.bf16 %v2184, %v2184
        %s2186 = scalar_lea.vmem [#allocation8], 192
        %v2187 = vld [vmem:[%s2186] sm:$0xff]
        %v2188 = vld [vmem:[%s2186 + $0x8] sm:$0xf]
        %v2189 = vld [vmem:[%s2186 + $0xc] sm:$0xff]
        %v2190 = vld [vmem:[%s2186 + $0x14] sm:$0xf]
        %v2191 = vld [vmem:[%s2186 + $0x18] sm:$0xff]
        %v2192 = vld [vmem:[%s2186 + $0x20] sm:$0xf]
        %v2193 = vld [vmem:[%s2186 + $0x24] sm:$0xff]
        %v2194 = vld [vmem:[%s2186 + $0x2c] sm:$0xf]
        %v2195 = vld [vmem:[%s2186 + $0x30] sm:$0xff]
        %v2196 = vld [vmem:[%s2186 + $0x38] sm:$0xf]
        %v2197 = vld [vmem:[%s2186 + $0x3c] sm:$0xff]
        %v2198 = vld [vmem:[%s2186 + $0x44] sm:$0xf]
        %v2199 = vld [vmem:[%s2186 + $0x48] sm:$0xff]
        %v2200 = vld [vmem:[%s2186 + $0x50] sm:$0xf]
        %v2201 = vld [vmem:[%s2186 + $0x54] sm:$0xff]
        %v2202 = vld [vmem:[%s2186 + $0x5c] sm:$0xf]
        %v2203 = vld [vmem:[%s2186 + $0x60] sm:$0xff]
        %v2204 = vld [vmem:[%s2186 + $0x68] sm:$0xf]
        %v2205 = vld [vmem:[%s2186 + $0x6c] sm:$0xff]
        %v2206 = vld [vmem:[%s2186 + $0x74] sm:$0xf]
        %v2207 = vld [vmem:[%s2186 + $0x78] sm:$0xff]
        %v2208 = vld [vmem:[%s2186 + $0x80] sm:$0xf]
        %v2209 = vld [vmem:[%s2186 + $0x84] sm:$0xff]
        %v2210 = vld [vmem:[%s2186 + $0x8c] sm:$0xf]
        %v2211 = vld [vmem:[%s2186 + $0x90] sm:$0xff]
        %v2212 = vld [vmem:[%s2186 + $0x98] sm:$0xf]
        %v2213 = vld [vmem:[%s2186 + $0x9c] sm:$0xff]
        %v2214 = vld [vmem:[%s2186 + $0xa4] sm:$0xf]
        %v2215 = vld [vmem:[%s2186 + $0xa8] sm:$0xff]
        %v2216 = vld [vmem:[%s2186 + $0xb0] sm:$0xf]
        %v2217 = vld [vmem:[%s2186 + $0xb4] sm:$0xff]
        %v2218 = vld [vmem:[%s2186 + $0xbc] sm:$0xf]
        %s2219 = scalar_lea.vmem [#allocation13], 3
        %v2220 = vld [vmem:[%s2219] sm:$0x7]
        %v2222 = vlaneseq
        %v2223 = vshrl.u32 %v2222, 7
        %v2224 = vsub.s32 0, %v2223
        %v2225 = vrot.slane %v2220, %v2224
        %v2226 = vlaneseq
        %v2227 = vshrl.u32 %v2226, 7
        %v2228 = vsub.s32 1, %v2227
        %v2229 = vrot.slane %v2220, %v2228
        %v2230 = vlaneseq
        %v2231 = vshrl.u32 %v2230, 7
        %v2232 = vsub.s32 2, %v2231
        %v2233 = vrot.slane %v2220, %v2232
        %v2269 = vunpack.c.l.b16 %v2187
        %v2270 = vunpack.c.h.b16 %v2187
        %v2271 = vunpack.c.l.b16 %v2188
        %v2272 = vunpack.c.l.b16 %v2189
        %v2273 = vunpack.c.h.b16 %v2189
        %v2274 = vunpack.c.l.b16 %v2190
        %v2275 = vunpack.c.l.b16 %v2191
        %v2276 = vunpack.c.h.b16 %v2191
        %v2277 = vunpack.c.l.b16 %v2192
        %v2278 = vunpack.c.l.b16 %v2193
        %v2279 = vunpack.c.h.b16 %v2193
        %v2280 = vunpack.c.l.b16 %v2194
        %v2281 = vunpack.c.l.b16 %v2195
        %v2282 = vunpack.c.h.b16 %v2195
        %v2283 = vunpack.c.l.b16 %v2196
        %v2284 = vunpack.c.l.b16 %v2197
        %v2285 = vunpack.c.h.b16 %v2197
        %v2286 = vunpack.c.l.b16 %v2198
        %v2287 = vunpack.c.l.b16 %v2199
        %v2288 = vunpack.c.h.b16 %v2199
        %v2289 = vunpack.c.l.b16 %v2200
        %v2290 = vunpack.c.l.b16 %v2201
        %v2291 = vunpack.c.h.b16 %v2201
        %v2292 = vunpack.c.l.b16 %v2202
        %v2293 = vunpack.c.l.b16 %v2203
        %v2294 = vunpack.c.h.b16 %v2203
        %v2295 = vunpack.c.l.b16 %v2204
        %v2296 = vunpack.c.l.b16 %v2205
        %v2297 = vunpack.c.h.b16 %v2205
        %v2298 = vunpack.c.l.b16 %v2206
        %v2299 = vunpack.c.l.b16 %v2207
        %v2300 = vunpack.c.h.b16 %v2207
        %v2301 = vunpack.c.l.b16 %v2208
        %v2302 = vunpack.c.l.b16 %v2209
        %v2303 = vunpack.c.h.b16 %v2209
        %v2304 = vunpack.c.l.b16 %v2210
        %v2305 = vunpack.c.l.b16 %v2211
        %v2306 = vunpack.c.h.b16 %v2211
        %v2307 = vunpack.c.l.b16 %v2212
        %v2308 = vunpack.c.l.b16 %v2213
        %v2309 = vunpack.c.h.b16 %v2213
        %v2310 = vunpack.c.l.b16 %v2214
        %v2311 = vunpack.c.l.b16 %v2215
        %v2312 = vunpack.c.h.b16 %v2215
        %v2313 = vunpack.c.l.b16 %v2216
        %v2314 = vunpack.c.l.b16 %v2217
        %v2315 = vunpack.c.h.b16 %v2217
        %v2316 = vunpack.c.l.b16 %v2218
        %v2317 = vpack.c.b16 %v2272, %v2269
        %v2318 = vpack.c.b16 %v2273, %v2270
        %v2319 = vpack.c.b16 %v2274, %v2271
        %v2320 = vpack.c.b16 %v2278, %v2275
        %v2321 = vpack.c.b16 %v2279, %v2276
        %v2322 = vpack.c.b16 %v2280, %v2277
        %v2323 = vpack.c.b16 %v2284, %v2281
        %v2324 = vpack.c.b16 %v2285, %v2282
        %v2325 = vpack.c.b16 %v2286, %v2283
        %v2326 = vpack.c.b16 %v2290, %v2287
        %v2327 = vpack.c.b16 %v2291, %v2288
        %v2328 = vpack.c.b16 %v2292, %v2289
        %v2329 = vpack.c.b16 %v2296, %v2293
        %v2330 = vpack.c.b16 %v2297, %v2294
        %v2331 = vpack.c.b16 %v2298, %v2295
        %v2332 = vpack.c.b16 %v2302, %v2299
        %v2333 = vpack.c.b16 %v2303, %v2300
        %v2334 = vpack.c.b16 %v2304, %v2301
        %v2335 = vpack.c.b16 %v2308, %v2305
        %v2336 = vpack.c.b16 %v2309, %v2306
        %v2337 = vpack.c.b16 %v2310, %v2307
        %v2338 = vpack.c.b16 %v2314, %v2311
        %v2339 = vpack.c.b16 %v2315, %v2312
        %v2340 = vpack.c.b16 %v2316, %v2313
        %2365 = vmatprep.subr.bf16.mxu0 %v2318
        %2366 = vmatpush1.bf16.msra.mxu0 %v2317
        %2367 = vmatprep.subr.bf16.mxu0 %v2321
        %2368 = vmatpush1.bf16.msra.mxu0 %v2320
        %2369 = vmatprep.subr.bf16.mxu0 %v2324
        %2370 = vmatpush1.bf16.msra.mxu0 %v2323
        %2371 = vmatprep.subr.bf16.mxu0 %v2327
        %2372 = vmatpush1.bf16.msra.mxu0 %v2326
        %2373 = vmatprep.subr.bf16.mxu0 %v2330
        %2374 = vmatpush1.bf16.msra.mxu0 %v2329
        %2375 = vmatprep.subr.bf16.mxu0 %v2333
        %2376 = vmatpush1.bf16.msra.mxu0 %v2332
        %2377 = vmatprep.subr.bf16.mxu0 %v2336
        %2378 = vmatpush1.bf16.msra.mxu0 %v2335
        %2379 = vmatprep.subr.bf16.mxu0 %v2339
        %2380 = vmatpush1.bf16.msra.mxu0 %v2338
        %2381 = vmatprep.subr.bf16.mxu0 0
        %2382 = vmatpush1.bf16.msra.mxu0 0
        %2383 = vmatprep.subr.bf16.mxu0 0
        %2384 = vmatpush1.bf16.msra.mxu0 0
        %2385 = vmatprep.subr.bf16.mxu0 0
        %2386 = vmatpush1.bf16.msra.mxu0 0
        %2387 = vmatprep.subr.bf16.mxu0 0
        %2388 = vmatpush1.bf16.msra.mxu0 0
        %2389 = vmatprep.subr.bf16.mxu0 0
        %2390 = vmatpush1.bf16.msra.mxu0 0
        %2391 = vmatprep.subr.bf16.mxu0 0
        %2392 = vmatpush1.bf16.msra.mxu0 0
        %2393 = vmatprep.subr.bf16.mxu0 0
        %2394 = vmatpush1.bf16.msra.mxu0 0
        %2395 = vmatprep.subr.bf16.mxu0 0
        %2396 = vmatpush1.bf16.msra.mxu0 0
        %2397 = vmatprep.mubr.bf16.mxu0 0
        %2398 = vmatmul.mubr.bf16.gmra.mrb[0].mxu0 %v2185
        %v2399 = vpop.f32.mrb[0].mxu0
        %v2400 = vadd.f32 %v2225, %v2399
        %v2401 = vpop.f32.mrb[0].mxu0
        %v2402 = vadd.f32 %v2229, %v2401
        %v2403 = vpop.f32.mrb[0].mxu0
        %v2404 = vpop.f32.mrb[0].mxu0
        %2405 = vdwg.mxu0
        %2406 = vmatprep.subr.bf16.mxu0 0
        %2407 = vmatpush1.bf16.msra.mxu0 %v2319
        %2408 = vmatprep.subr.bf16.mxu0 0
        %2409 = vmatpush1.bf16.msra.mxu0 %v2322
        %2410 = vmatprep.subr.bf16.mxu0 0
        %2411 = vmatpush1.bf16.msra.mxu0 %v2325
        %2412 = vmatprep.subr.bf16.mxu0 0
        %2413 = vmatpush1.bf16.msra.mxu0 %v2328
        %2414 = vmatprep.subr.bf16.mxu0 0
        %2415 = vmatpush1.bf16.msra.mxu0 %v2331
        %2416 = vmatprep.subr.bf16.mxu0 0
        %2417 = vmatpush1.bf16.msra.mxu0 %v2334
        %2418 = vmatprep.subr.bf16.mxu0 0
        %2419 = vmatpush1.bf16.msra.mxu0 %v2337
        %2420 = vmatprep.subr.bf16.mxu0 0
        %2421 = vmatpush1.bf16.msra.mxu0 %v2340
        %2422 = vmatprep.subr.bf16.mxu0 0
        %2423 = vmatpush1.bf16.msra.mxu0 0
        %2424 = vmatprep.subr.bf16.mxu0 0
        %2425 = vmatpush1.bf16.msra.mxu0 0
        %2426 = vmatprep.subr.bf16.mxu0 0
        %2427 = vmatpush1.bf16.msra.mxu0 0
        %2428 = vmatprep.subr.bf16.mxu0 0
        %2429 = vmatpush1.bf16.msra.mxu0 0
        %2430 = vmatprep.subr.bf16.mxu0 0
        %2431 = vmatpush1.bf16.msra.mxu0 0
        %2432 = vmatprep.subr.bf16.mxu0 0
        %2433 = vmatpush1.bf16.msra.mxu0 0
        %2434 = vmatprep.subr.bf16.mxu0 0
        %2435 = vmatpush1.bf16.msra.mxu0 0
        %2436 = vmatprep.subr.bf16.mxu0 0
        %2437 = vmatpush1.bf16.msra.mxu0 0
        %2438 = vmatprep.mubr.bf16.mxu0 0
        %2439 = vmatmul.mubr.bf16.gmra.mrb[0].mxu0 %v2185
        %v2440 = vpop.f32.mrb[0].mxu0
        %v2441 = vadd.f32 %v2233, %v2440
        %v2442 = vpop.f32.mrb[0].mxu0
        %v2443 = vpop.f32.mrb[0].mxu0
        %v2444 = vpop.f32.mrb[0].mxu0
        %2445 = vdwg.mxu0
        %v2446 = vpack.c.bf16 %v2400, %v2400
        %v2447 = vpack.c.bf16 %v2402, %v2402
        %v2449 = vsel %vm877, %v2446, 0
        %v2452 = vsel %vm877, %v2447, 0
        %2454 = vmatprep.subr.bf16.mxu0 0
        %2455 = vmatpush1.bf16.xpose.msra.mxu0 %v2452
        %2456 = vmatprep.subr.bf16.mxu0 0
        %2457 = vmatpush1.bf16.xpose.msra.mxu0 0
        %2458 = vmatprep.subr.bf16.mxu0 0
        %2459 = vmatpush1.bf16.xpose.msra.mxu0 0
        %2460 = vmatprep.subr.bf16.mxu0 0
        %2461 = vmatpush1.bf16.xpose.msra.mxu0 0
        %2462 = vmatprep.subr.bf16.mxu0 0
        %2463 = vmatpush1.bf16.xpose.msra.mxu0 0
        %2464 = vmatprep.subr.bf16.mxu0 0
        %2465 = vmatpush1.bf16.xpose.msra.mxu0 0
        %2466 = vmatprep.subr.bf16.mxu0 0
        %2467 = vmatpush1.bf16.xpose.msra.mxu0 0
        %2468 = vmatprep.subr.bf16.mxu0 0
        %2469 = vmatpush1.bf16.xpose.msra.mxu0 0
        %2470 = vmatprep.subr.bf16.mxu0 0
        %2471 = vmatpush1.bf16.xpose.msra.mxu0 0
        %2472 = vmatprep.subr.bf16.mxu0 0
        %2473 = vmatpush1.bf16.xpose.msra.mxu0 0
        %2474 = vmatprep.subr.bf16.mxu0 0
        %2475 = vmatpush1.bf16.xpose.msra.mxu0 0
        %2476 = vmatprep.subr.bf16.mxu0 0
        %2477 = vmatpush1.bf16.xpose.msra.mxu0 0
        %2478 = vmatprep.subr.bf16.mxu0 0
        %2479 = vmatpush1.bf16.xpose.msra.mxu0 0
        %2480 = vmatprep.subr.bf16.mxu0 0
        %2481 = vmatpush1.bf16.xpose.msra.mxu0 0
        %2482 = vmatprep.subr.bf16.mxu0 0
        %2483 = vmatpush1.bf16.xpose.msra.mxu0 0
        %2484 = vmatprep.subr.bf16.mxu0 0
        %2485 = vmatpush1.bf16.xpose.msra.mxu0 0
        %2486 = vmatprep.mubr.bf16.mxu0 0
        %2487 = vmatmul.mubr.bf16.gmra.mrb[0].mxu0 %v2449
        %v2488 = vpop.f32.mrb[0].mxu0
        %v2489 = vadd.f32 0.0, %v2488
        %v2490 = vpop.f32.mrb[0].mxu0
        %v2491 = vpop.f32.mrb[0].mxu0
        %v2492 = vpop.f32.mrb[0].mxu0
        %2493 = vdwg.mxu0
        %v2494 = vmul.f32 %v2489, 0.17677669
        %v2495 = vadd.f32 %v2494, %v929
        %v2496 = vsel %vm932, %v2495, -inf
        %2497 = vmax.xlane.f32.xlu0 %v2496
        %v2498 = vpop.xlane.xlu0 %2497
        %v2499 = vsub.f32 %v2495, %v2498
        %v2500 = vmul.f32 %v2499, 1.442695
        %v2501 = vpow.pop %v2500
        %v2502 = vsel %vm932, %v2501, 0.0
        %2503 = vadd.xlane.f32.xlu0 %v2502
        %v2504 = vpop.xlane.xlu0 %2503
        %v2505 = vrcp.pop %v2504
        %v2506 = vmul.f32 %v2501, %v2505
        %v2507 = vpack.c.bf16 %v2506, %v2506
        %v2508 = vpack.c.bf16 %v2441, %v2441
        %v2510 = vsel %vm932, %v2507, 0
        %v2513 = vsel %vm949, %v2508, 0
        %2515 = vmatprep.subr.bf16.mxu0 0
        %2516 = vmatpush1.bf16.msra.mxu0 %v2513
        %2517 = vmatprep.subr.bf16.mxu0 0
        %2518 = vmatpush1.bf16.msra.mxu0 0
        %2519 = vmatprep.subr.bf16.mxu0 0
        %2520 = vmatpush1.bf16.msra.mxu0 0
        %2521 = vmatprep.subr.bf16.mxu0 0
        %2522 = vmatpush1.bf16.msra.mxu0 0
        %2523 = vmatprep.subr.bf16.mxu0 0
        %2524 = vmatpush1.bf16.msra.mxu0 0
        %2525 = vmatprep.subr.bf16.mxu0 0
        %2526 = vmatpush1.bf16.msra.mxu0 0
        %2527 = vmatprep.subr.bf16.mxu0 0
        %2528 = vmatpush1.bf16.msra.mxu0 0
        %2529 = vmatprep.subr.bf16.mxu0 0
        %2530 = vmatpush1.bf16.msra.mxu0 0
        %2531 = vmatprep.subr.bf16.mxu0 0
        %2532 = vmatpush1.bf16.msra.mxu0 0
        %2533 = vmatprep.subr.bf16.mxu0 0
        %2534 = vmatpush1.bf16.msra.mxu0 0
        %2535 = vmatprep.subr.bf16.mxu0 0
        %2536 = vmatpush1.bf16.msra.mxu0 0
        %2537 = vmatprep.subr.bf16.mxu0 0
        %2538 = vmatpush1.bf16.msra.mxu0 0
        %2539 = vmatprep.subr.bf16.mxu0 0
        %2540 = vmatpush1.bf16.msra.mxu0 0
        %2541 = vmatprep.subr.bf16.mxu0 0
        %2542 = vmatpush1.bf16.msra.mxu0 0
        %2543 = vmatprep.subr.bf16.mxu0 0
        %2544 = vmatpush1.bf16.msra.mxu0 0
        %2545 = vmatprep.subr.bf16.mxu0 0
        %2546 = vmatpush1.bf16.msra.mxu0 0
        %2547 = vmatprep.mubr.bf16.mxu0 0
        %2548 = vmatmul.mubr.bf16.gmra.mrb[0].mxu0 %v2510
        %v2549 = vpop.f32.mrb[0].mxu0
        %v2550 = vadd.f32 0.0, %v2549
        %v2551 = vpop.f32.mrb[0].mxu0
        %v2552 = vpop.f32.mrb[0].mxu0
        %v2553 = vpop.f32.mrb[0].mxu0
        %2554 = vdwg.mxu0
        %2556 = vrot.lane.b32.xlu0 %v2446, 96
        %v2557 = vpop.permute.xlu0 %2556
        %2559 = vrot.lane.b32.xlu0 %v2447, 96
        %v2560 = vpop.permute.xlu0 %2559
        %v2562 = vsel %vm877, %v2557, 0
        %v2565 = vsel %vm877, %v2560, 0
        %2567 = vmatprep.subr.bf16.mxu0 0
        %2568 = vmatpush1.bf16.xpose.msra.mxu0 %v2565
        %2569 = vmatprep.subr.bf16.mxu0 0
        %2570 = vmatpush1.bf16.xpose.msra.mxu0 0
        %2571 = vmatprep.subr.bf16.mxu0 0
        %2572 = vmatpush1.bf16.xpose.msra.mxu0 0
        %2573 = vmatprep.subr.bf16.mxu0 0
        %2574 = vmatpush1.bf16.xpose.msra.mxu0 0
        %2575 = vmatprep.subr.bf16.mxu0 0
        %2576 = vmatpush1.bf16.xpose.msra.mxu0 0
        %2577 = vmatprep.subr.bf16.mxu0 0
        %2578 = vmatpush1.bf16.xpose.msra.mxu0 0
        %2579 = vmatprep.subr.bf16.mxu0 0
        %2580 = vmatpush1.bf16.xpose.msra.mxu0 0
        %2581 = vmatprep.subr.bf16.mxu0 0
        %2582 = vmatpush1.bf16.xpose.msra.mxu0 0
        %2583 = vmatprep.subr.bf16.mxu0 0
        %2584 = vmatpush1.bf16.xpose.msra.mxu0 0
        %2585 = vmatprep.subr.bf16.mxu0 0
        %2586 = vmatpush1.bf16.xpose.msra.mxu0 0
        %2587 = vmatprep.subr.bf16.mxu0 0
        %2588 = vmatpush1.bf16.xpose.msra.mxu0 0
        %2589 = vmatprep.subr.bf16.mxu0 0
        %2590 = vmatpush1.bf16.xpose.msra.mxu0 0
        %2591 = vmatprep.subr.bf16.mxu0 0
        %2592 = vmatpush1.bf16.xpose.msra.mxu0 0
        %2593 = vmatprep.subr.bf16.mxu0 0
        %2594 = vmatpush1.bf16.xpose.msra.mxu0 0
        %2595 = vmatprep.subr.bf16.mxu0 0
        %2596 = vmatpush1.bf16.xpose.msra.mxu0 0
        %2597 = vmatprep.subr.bf16.mxu0 0
        %2598 = vmatpush1.bf16.xpose.msra.mxu0 0
        %2599 = vmatprep.mubr.bf16.mxu0 0
        %2600 = vmatmul.mubr.bf16.gmra.mrb[0].mxu0 %v2562
        %v2601 = vpop.f32.mrb[0].mxu0
        %v2602 = vadd.f32 0.0, %v2601
        %v2603 = vpop.f32.mrb[0].mxu0
        %v2604 = vpop.f32.mrb[0].mxu0
        %v2605 = vpop.f32.mrb[0].mxu0
        %2606 = vdwg.mxu0
        %v2607 = vmul.f32 %v2602, 0.17677669
        %v2608 = vadd.f32 %v2607, %v929
        %v2609 = vsel %vm932, %v2608, -inf
        %2610 = vmax.xlane.f32.xlu0 %v2609
        %v2611 = vpop.xlane.xlu0 %2610
        %v2612 = vsub.f32 %v2608, %v2611
        %v2613 = vmul.f32 %v2612, 1.442695
        %v2614 = vpow.pop %v2613
        %v2615 = vsel %vm932, %v2614, 0.0
        %2616 = vadd.xlane.f32.xlu0 %v2615
        %v2617 = vpop.xlane.xlu0 %2616
        %v2618 = vrcp.pop %v2617
        %v2619 = vmul.f32 %v2614, %v2618
        %v2620 = vpack.c.bf16 %v2619, %v2619
        %2622 = vrot.lane.b32.xlu0 %v2508, 96
        %v2623 = vpop.permute.xlu0 %2622
        %v2625 = vsel %vm932, %v2620, 0
        %v2628 = vsel %vm949, %v2623, 0
        %2630 = vmatprep.subr.bf16.mxu0 0
        %2631 = vmatpush1.bf16.msra.mxu0 %v2628
        %2632 = vmatprep.subr.bf16.mxu0 0
        %2633 = vmatpush1.bf16.msra.mxu0 0
        %2634 = vmatprep.subr.bf16.mxu0 0
        %2635 = vmatpush1.bf16.msra.mxu0 0
        %2636 = vmatprep.subr.bf16.mxu0 0
        %2637 = vmatpush1.bf16.msra.mxu0 0
        %2638 = vmatprep.subr.bf16.mxu0 0
        %2639 = vmatpush1.bf16.msra.mxu0 0
        %2640 = vmatprep.subr.bf16.mxu0 0
        %2641 = vmatpush1.bf16.msra.mxu0 0
        %2642 = vmatprep.subr.bf16.mxu0 0
        %2643 = vmatpush1.bf16.msra.mxu0 0
        %2644 = vmatprep.subr.bf16.mxu0 0
        %2645 = vmatpush1.bf16.msra.mxu0 0
        %2646 = vmatprep.subr.bf16.mxu0 0
        %2647 = vmatpush1.bf16.msra.mxu0 0
        %2648 = vmatprep.subr.bf16.mxu0 0
        %2649 = vmatpush1.bf16.msra.mxu0 0
        %2650 = vmatprep.subr.bf16.mxu0 0
        %2651 = vmatpush1.bf16.msra.mxu0 0
        %2652 = vmatprep.subr.bf16.mxu0 0
        %2653 = vmatpush1.bf16.msra.mxu0 0
        %2654 = vmatprep.subr.bf16.mxu0 0
        %2655 = vmatpush1.bf16.msra.mxu0 0
        %2656 = vmatprep.subr.bf16.mxu0 0
        %2657 = vmatpush1.bf16.msra.mxu0 0
        %2658 = vmatprep.subr.bf16.mxu0 0
        %2659 = vmatpush1.bf16.msra.mxu0 0
        %2660 = vmatprep.subr.bf16.mxu0 0
        %2661 = vmatpush1.bf16.msra.mxu0 0
        %2662 = vmatprep.mubr.bf16.mxu0 0
        %2663 = vmatmul.mubr.bf16.gmra.mrb[0].mxu0 %v2625
        %v2664 = vpop.f32.mrb[0].mxu0
        %v2665 = vadd.f32 0.0, %v2664
        %v2666 = vpop.f32.mrb[0].mxu0
        %v2667 = vpop.f32.mrb[0].mxu0
        %v2668 = vpop.f32.mrb[0].mxu0
        %2669 = vdwg.mxu0
        %2670 = vrot.lane.b32.xlu0 %v2446, 64
        %v2671 = vpop.permute.xlu0 %2670
        %2672 = vrot.lane.b32.xlu0 %v2447, 64
        %v2673 = vpop.permute.xlu0 %2672
        %v2675 = vsel %vm877, %v2671, 0
        %v2678 = vsel %vm877, %v2673, 0
        %2680 = vmatprep.subr.bf16.mxu0 0
        %2681 = vmatpush1.bf16.xpose.msra.mxu0 %v2678
        %2682 = vmatprep.subr.bf16.mxu0 0
        %2683 = vmatpush1.bf16.xpose.msra.mxu0 0
        %2684 = vmatprep.subr.bf16.mxu0 0
        %2685 = vmatpush1.bf16.xpose.msra.mxu0 0
        %2686 = vmatprep.subr.bf16.mxu0 0
        %2687 = vmatpush1.bf16.xpose.msra.mxu0 0
        %2688 = vmatprep.subr.bf16.mxu0 0
        %2689 = vmatpush1.bf16.xpose.msra.mxu0 0
        %2690 = vmatprep.subr.bf16.mxu0 0
        %2691 = vmatpush1.bf16.xpose.msra.mxu0 0
        %2692 = vmatprep.subr.bf16.mxu0 0
        %2693 = vmatpush1.bf16.xpose.msra.mxu0 0
        %2694 = vmatprep.subr.bf16.mxu0 0
        %2695 = vmatpush1.bf16.xpose.msra.mxu0 0
        %2696 = vmatprep.subr.bf16.mxu0 0
        %2697 = vmatpush1.bf16.xpose.msra.mxu0 0
        %2698 = vmatprep.subr.bf16.mxu0 0
        %2699 = vmatpush1.bf16.xpose.msra.mxu0 0
        %2700 = vmatprep.subr.bf16.mxu0 0
        %2701 = vmatpush1.bf16.xpose.msra.mxu0 0
        %2702 = vmatprep.subr.bf16.mxu0 0
        %2703 = vmatpush1.bf16.xpose.msra.mxu0 0
        %2704 = vmatprep.subr.bf16.mxu0 0
        %2705 = vmatpush1.bf16.xpose.msra.mxu0 0
        %2706 = vmatprep.subr.bf16.mxu0 0
        %2707 = vmatpush1.bf16.xpose.msra.mxu0 0
        %2708 = vmatprep.subr.bf16.mxu0 0
        %2709 = vmatpush1.bf16.xpose.msra.mxu0 0
        %2710 = vmatprep.subr.bf16.mxu0 0
        %2711 = vmatpush1.bf16.xpose.msra.mxu0 0
        %2712 = vmatprep.mubr.bf16.mxu0 0
        %2713 = vmatmul.mubr.bf16.gmra.mrb[0].mxu0 %v2675
        %v2714 = vpop.f32.mrb[0].mxu0
        %v2715 = vadd.f32 0.0, %v2714
        %v2716 = vpop.f32.mrb[0].mxu0
        %v2717 = vpop.f32.mrb[0].mxu0
        %v2718 = vpop.f32.mrb[0].mxu0
        %2719 = vdwg.mxu0
        %v2720 = vmul.f32 %v2715, 0.17677669
        %v2721 = vadd.f32 %v2720, %v929
        %v2722 = vsel %vm932, %v2721, -inf
        %2723 = vmax.xlane.f32.xlu0 %v2722
        %v2724 = vpop.xlane.xlu0 %2723
        %v2725 = vsub.f32 %v2721, %v2724
        %v2726 = vmul.f32 %v2725, 1.442695
        %v2727 = vpow.pop %v2726
        %v2728 = vsel %vm932, %v2727, 0.0
        %2729 = vadd.xlane.f32.xlu0 %v2728
        %v2730 = vpop.xlane.xlu0 %2729
        %v2731 = vrcp.pop %v2730
        %v2732 = vmul.f32 %v2727, %v2731
        %v2733 = vpack.c.bf16 %v2732, %v2732
        %2734 = vrot.lane.b32.xlu0 %v2508, 64
        %v2735 = vpop.permute.xlu0 %2734
        %v2737 = vsel %vm932, %v2733, 0
        %v2740 = vsel %vm949, %v2735, 0
        %2742 = vmatprep.subr.bf16.mxu0 0
        %2743 = vmatpush1.bf16.msra.mxu0 %v2740
        %2744 = vmatprep.subr.bf16.mxu0 0
        %2745 = vmatpush1.bf16.msra.mxu0 0
        %2746 = vmatprep.subr.bf16.mxu0 0
        %2747 = vmatpush1.bf16.msra.mxu0 0
        %2748 = vmatprep.subr.bf16.mxu0 0
        %2749 = vmatpush1.bf16.msra.mxu0 0
        %2750 = vmatprep.subr.bf16.mxu0 0
        %2751 = vmatpush1.bf16.msra.mxu0 0
        %2752 = vmatprep.subr.bf16.mxu0 0
        %2753 = vmatpush1.bf16.msra.mxu0 0
        %2754 = vmatprep.subr.bf16.mxu0 0
        %2755 = vmatpush1.bf16.msra.mxu0 0
        %2756 = vmatprep.subr.bf16.mxu0 0
        %2757 = vmatpush1.bf16.msra.mxu0 0
        %2758 = vmatprep.subr.bf16.mxu0 0
        %2759 = vmatpush1.bf16.msra.mxu0 0
        %2760 = vmatprep.subr.bf16.mxu0 0
        %2761 = vmatpush1.bf16.msra.mxu0 0
        %2762 = vmatprep.subr.bf16.mxu0 0
        %2763 = vmatpush1.bf16.msra.mxu0 0
        %2764 = vmatprep.subr.bf16.mxu0 0
        %2765 = vmatpush1.bf16.msra.mxu0 0
        %2766 = vmatprep.subr.bf16.mxu0 0
        %2767 = vmatpush1.bf16.msra.mxu0 0
        %2768 = vmatprep.subr.bf16.mxu0 0
        %2769 = vmatpush1.bf16.msra.mxu0 0
        %2770 = vmatprep.subr.bf16.mxu0 0
        %2771 = vmatpush1.bf16.msra.mxu0 0
        %2772 = vmatprep.subr.bf16.mxu0 0
        %2773 = vmatpush1.bf16.msra.mxu0 0
        %2774 = vmatprep.mubr.bf16.mxu0 0
        %2775 = vmatmul.mubr.bf16.gmra.mrb[0].mxu0 %v2737
        %v2776 = vpop.f32.mrb[0].mxu0
        %v2777 = vadd.f32 0.0, %v2776
        %v2778 = vpop.f32.mrb[0].mxu0
        %v2779 = vpop.f32.mrb[0].mxu0
        %v2780 = vpop.f32.mrb[0].mxu0
        %2781 = vdwg.mxu0
        %2782 = vrot.lane.b32.xlu0 %v2446, 32
        %v2783 = vpop.permute.xlu0 %2782
        %2784 = vrot.lane.b32.xlu0 %v2447, 32
        %v2785 = vpop.permute.xlu0 %2784
        %v2787 = vsel %vm877, %v2783, 0
        %v2790 = vsel %vm877, %v2785, 0
        %2792 = vmatprep.subr.bf16.mxu0 0
        %2793 = vmatpush1.bf16.xpose.msra.mxu0 %v2790
        %2794 = vmatprep.subr.bf16.mxu0 0
        %2795 = vmatpush1.bf16.xpose.msra.mxu0 0
        %2796 = vmatprep.subr.bf16.mxu0 0
        %2797 = vmatpush1.bf16.xpose.msra.mxu0 0
        %2798 = vmatprep.subr.bf16.mxu0 0
        %2799 = vmatpush1.bf16.xpose.msra.mxu0 0
        %2800 = vmatprep.subr.bf16.mxu0 0
        %2801 = vmatpush1.bf16.xpose.msra.mxu0 0
        %2802 = vmatprep.subr.bf16.mxu0 0
        %2803 = vmatpush1.bf16.xpose.msra.mxu0 0
        %2804 = vmatprep.subr.bf16.mxu0 0
        %2805 = vmatpush1.bf16.xpose.msra.mxu0 0
        %2806 = vmatprep.subr.bf16.mxu0 0
        %2807 = vmatpush1.bf16.xpose.msra.mxu0 0
        %2808 = vmatprep.subr.bf16.mxu0 0
        %2809 = vmatpush1.bf16.xpose.msra.mxu0 0
        %2810 = vmatprep.subr.bf16.mxu0 0
        %2811 = vmatpush1.bf16.xpose.msra.mxu0 0
        %2812 = vmatprep.subr.bf16.mxu0 0
        %2813 = vmatpush1.bf16.xpose.msra.mxu0 0
        %2814 = vmatprep.subr.bf16.mxu0 0
        %2815 = vmatpush1.bf16.xpose.msra.mxu0 0
        %2816 = vmatprep.subr.bf16.mxu0 0
        %2817 = vmatpush1.bf16.xpose.msra.mxu0 0
        %2818 = vmatprep.subr.bf16.mxu0 0
        %2819 = vmatpush1.bf16.xpose.msra.mxu0 0
        %2820 = vmatprep.subr.bf16.mxu0 0
        %2821 = vmatpush1.bf16.xpose.msra.mxu0 0
        %2822 = vmatprep.subr.bf16.mxu0 0
        %2823 = vmatpush1.bf16.xpose.msra.mxu0 0
        %2824 = vmatprep.mubr.bf16.mxu0 0
        %2825 = vmatmul.mubr.bf16.gmra.mrb[0].mxu0 %v2787
        %v2826 = vpop.f32.mrb[0].mxu0
        %v2827 = vadd.f32 0.0, %v2826
        %v2828 = vpop.f32.mrb[0].mxu0
        %v2829 = vpop.f32.mrb[0].mxu0
        %v2830 = vpop.f32.mrb[0].mxu0
        %2831 = vdwg.mxu0
        %v2832 = vmul.f32 %v2827, 0.17677669
        %v2833 = vadd.f32 %v2832, %v929
        %v2834 = vsel %vm932, %v2833, -inf
        %2835 = vmax.xlane.f32.xlu0 %v2834
        %v2836 = vpop.xlane.xlu0 %2835
        %v2837 = vsub.f32 %v2833, %v2836
        %v2838 = vmul.f32 %v2837, 1.442695
        %v2839 = vpow.pop %v2838
        %v2840 = vsel %vm932, %v2839, 0.0
        %2841 = vadd.xlane.f32.xlu0 %v2840
        %v2842 = vpop.xlane.xlu0 %2841
        %v2843 = vrcp.pop %v2842
        %v2844 = vmul.f32 %v2839, %v2843
        %v2845 = vpack.c.bf16 %v2844, %v2844
        %2846 = vrot.lane.b32.xlu0 %v2508, 32
        %v2847 = vpop.permute.xlu0 %2846
        %v2849 = vsel %vm932, %v2845, 0
        %v2852 = vsel %vm949, %v2847, 0
        %2854 = vmatprep.subr.bf16.mxu0 0
        %2855 = vmatpush1.bf16.msra.mxu0 %v2852
        %2856 = vmatprep.subr.bf16.mxu0 0
        %2857 = vmatpush1.bf16.msra.mxu0 0
        %2858 = vmatprep.subr.bf16.mxu0 0
        %2859 = vmatpush1.bf16.msra.mxu0 0
        %2860 = vmatprep.subr.bf16.mxu0 0
        %2861 = vmatpush1.bf16.msra.mxu0 0
        %2862 = vmatprep.subr.bf16.mxu0 0
        %2863 = vmatpush1.bf16.msra.mxu0 0
        %2864 = vmatprep.subr.bf16.mxu0 0
        %2865 = vmatpush1.bf16.msra.mxu0 0
        %2866 = vmatprep.subr.bf16.mxu0 0
        %2867 = vmatpush1.bf16.msra.mxu0 0
        %2868 = vmatprep.subr.bf16.mxu0 0
        %2869 = vmatpush1.bf16.msra.mxu0 0
        %2870 = vmatprep.subr.bf16.mxu0 0
        %2871 = vmatpush1.bf16.msra.mxu0 0
        %2872 = vmatprep.subr.bf16.mxu0 0
        %2873 = vmatpush1.bf16.msra.mxu0 0
        %2874 = vmatprep.subr.bf16.mxu0 0
        %2875 = vmatpush1.bf16.msra.mxu0 0
        %2876 = vmatprep.subr.bf16.mxu0 0
        %2877 = vmatpush1.bf16.msra.mxu0 0
        %2878 = vmatprep.subr.bf16.mxu0 0
        %2879 = vmatpush1.bf16.msra.mxu0 0
        %2880 = vmatprep.subr.bf16.mxu0 0
        %2881 = vmatpush1.bf16.msra.mxu0 0
        %2882 = vmatprep.subr.bf16.mxu0 0
        %2883 = vmatpush1.bf16.msra.mxu0 0
        %2884 = vmatprep.subr.bf16.mxu0 0
        %2885 = vmatpush1.bf16.msra.mxu0 0
        %2886 = vmatprep.mubr.bf16.mxu0 0
        %2887 = vmatmul.mubr.bf16.gmra.mrb[0].mxu0 %v2849
        %v2888 = vpop.f32.mrb[0].mxu0
        %v2889 = vadd.f32 0.0, %v2888
        %v2890 = vpop.f32.mrb[0].mxu0
        %v2891 = vpop.f32.mrb[0].mxu0
        %v2892 = vpop.f32.mrb[0].mxu0
        %2893 = vdwg.mxu0
        %2895 = vrot.lane.b32.xlu0 %v2665, 32
        %v2896 = vpop.permute.xlu0 %2895
        %2899 = vrot.lane.b32.xlu0 %v2777, 64
        %v2900 = vpop.permute.xlu0 %2899
        %2903 = vrot.lane.b32.xlu0 %v2889, 96
        %v2904 = vpop.permute.xlu0 %2903
        %v2906 = vsel %vm877, %v2550, %v2896
        %v2907 = vsel %vm1345, %v2906, %v2900
        %v2908 = vsel %vm1347, %v2907, %v2904
        %v2909 = vpack.c.bf16 %v2908, %v2908
        %s2910 = scalar_lea.vmem %s4, 64
        %v2911 = vld [vmem:[%s2910] sm:$0xf]
        %v2912 = vld [vmem:[%s2910 + $0x4] sm:$0xf]
        %v2913 = vld [vmem:[%s2910 + $0x8] sm:$0xf]
        %v2914 = vld [vmem:[%s2910 + $0xc] sm:$0xf]
        %v2915 = vld [vmem:[%s2910 + $0x10] sm:$0xf]
        %v2916 = vld [vmem:[%s2910 + $0x14] sm:$0xf]
        %v2917 = vld [vmem:[%s2910 + $0x18] sm:$0xf]
        %v2918 = vld [vmem:[%s2910 + $0x1c] sm:$0xf]
        %v2919 = vld [vmem:[%s2910 + $0x20] sm:$0xf]
        %v2920 = vld [vmem:[%s2910 + $0x24] sm:$0xf]
        %v2921 = vld [vmem:[%s2910 + $0x28] sm:$0xf]
        %v2922 = vld [vmem:[%s2910 + $0x2c] sm:$0xf]
        %v2923 = vld [vmem:[%s2910 + $0x30] sm:$0xf]
        %v2924 = vld [vmem:[%s2910 + $0x34] sm:$0xf]
        %v2925 = vld [vmem:[%s2910 + $0x38] sm:$0xf]
        %v2926 = vld [vmem:[%s2910 + $0x3c] sm:$0xf]
        %s2927 = scalar_lea.vmem %s9, 8
        %v2928 = vld [vmem:[%s2927] sm:$0x1]
        %v2929 = vlaneseq
        %v2930 = vshrl.u32 %v2929, 7
        %v2931 = vsub.s32 0, %v2930
        %v2932 = vrot.slane %v2928, %v2931
        %v2949 = vunpack.c.l.b16 %v2911
        %v2950 = vunpack.c.l.b16 %v2912
        %v2951 = vunpack.c.l.b16 %v2913
        %v2952 = vunpack.c.l.b16 %v2914
        %v2953 = vunpack.c.l.b16 %v2915
        %v2954 = vunpack.c.l.b16 %v2916
        %v2955 = vunpack.c.l.b16 %v2917
        %v2956 = vunpack.c.l.b16 %v2918
        %v2957 = vunpack.c.l.b16 %v2919
        %v2958 = vunpack.c.l.b16 %v2920
        %v2959 = vunpack.c.l.b16 %v2921
        %v2960 = vunpack.c.l.b16 %v2922
        %v2961 = vunpack.c.l.b16 %v2923
        %v2962 = vunpack.c.l.b16 %v2924
        %v2963 = vunpack.c.l.b16 %v2925
        %v2964 = vunpack.c.l.b16 %v2926
        %v2965 = vpack.c.b16 %v2950, %v2949
        %v2966 = vpack.c.b16 %v2952, %v2951
        %v2967 = vpack.c.b16 %v2954, %v2953
        %v2968 = vpack.c.b16 %v2956, %v2955
        %v2969 = vpack.c.b16 %v2958, %v2957
        %v2970 = vpack.c.b16 %v2960, %v2959
        %v2971 = vpack.c.b16 %v2962, %v2961
        %v2972 = vpack.c.b16 %v2964, %v2963
        %2981 = vmatprep.subr.bf16.mxu0 0
        %2982 = vmatpush1.bf16.msra.mxu0 %v2965
        %2983 = vmatprep.subr.bf16.mxu0 0
        %2984 = vmatpush1.bf16.msra.mxu0 %v2966
        %2985 = vmatprep.subr.bf16.mxu0 0
        %2986 = vmatpush1.bf16.msra.mxu0 %v2967
        %2987 = vmatprep.subr.bf16.mxu0 0
        %2988 = vmatpush1.bf16.msra.mxu0 %v2968
        %2989 = vmatprep.subr.bf16.mxu0 0
        %2990 = vmatpush1.bf16.msra.mxu0 %v2969
        %2991 = vmatprep.subr.bf16.mxu0 0
        %2992 = vmatpush1.bf16.msra.mxu0 %v2970
        %2993 = vmatprep.subr.bf16.mxu0 0
        %2994 = vmatpush1.bf16.msra.mxu0 %v2971
        %2995 = vmatprep.subr.bf16.mxu0 0
        %2996 = vmatpush1.bf16.msra.mxu0 %v2972
        %2997 = vmatprep.subr.bf16.mxu0 0
        %2998 = vmatpush1.bf16.msra.mxu0 0
        %2999 = vmatprep.subr.bf16.mxu0 0
        %3000 = vmatpush1.bf16.msra.mxu0 0
        %3001 = vmatprep.subr.bf16.mxu0 0
        %3002 = vmatpush1.bf16.msra.mxu0 0
        %3003 = vmatprep.subr.bf16.mxu0 0
        %3004 = vmatpush1.bf16.msra.mxu0 0
        %3005 = vmatprep.subr.bf16.mxu0 0
        %3006 = vmatpush1.bf16.msra.mxu0 0
        %3007 = vmatprep.subr.bf16.mxu0 0
        %3008 = vmatpush1.bf16.msra.mxu0 0
        %3009 = vmatprep.subr.bf16.mxu0 0
        %3010 = vmatpush1.bf16.msra.mxu0 0
        %3011 = vmatprep.subr.bf16.mxu0 0
        %3012 = vmatpush1.bf16.msra.mxu0 0
        %3013 = vmatprep.mubr.bf16.mxu0 0
        %3014 = vmatmul.mubr.bf16.gmra.mrb[0].mxu0 %v2909
        %v3015 = vpop.f32.mrb[0].mxu0
        %v3016 = vadd.f32 %v2932, %v3015
        %v3017 = vpop.f32.mrb[0].mxu0
        %v3018 = vpop.f32.mrb[0].mxu0
        %v3019 = vpop.f32.mrb[0].mxu0
        %3020 = vdwg.mxu0
        %v3021 = vadd.f32 %v2184, %v3016
        %v3022 = vld [vmem:[%s2927 + $0x1] sm:$0x1]
        %v3023 = vld [vmem:[%s2927 + $0x2] sm:$0x1]
        %3024 = vadd.xlane.f32.xlu0 %v3021
        %v3025 = vpop.xlane.xlu0 %3024
        %v3026 = vmul.f32 %v3025, %v596
        %v3027 = vsub.f32 %v3021, %v3026
        %v3028 = vmul.f32 %v3027, %v3027
        %3029 = vadd.xlane.f32.xlu0 %v3028
        %v3030 = vpop.xlane.xlu0 %3029
        %v3031 = vmul.f32 %v3030, %v596
        %v3032 = vadd.f32 %v3031, 1e-12
        %v3033 = vrsqrt.pop %v3032
        %v3034 = vmul.f32 %v3027, %v3033
        %v3035 = vlaneseq
        %v3036 = vshrl.u32 %v3035, 7
        %v3037 = vsub.s32 0, %v3036
        %v3038 = vrot.slane %v3022, %v3037
        %v3039 = vmul.f32 %v3034, %v3038
        %v3040 = vlaneseq
        %v3041 = vshrl.u32 %v3040, 7
        %v3042 = vsub.s32 0, %v3041
        %v3043 = vrot.slane %v3023, %v3042
        %v3044 = vadd.f32 %v3039, %v3043
        %v3045 = vpack.c.bf16 %v3044, %v3044
        %s3046 = scalar_lea.vmem [#allocation10], 256
        %v3047 = vld [vmem:[%s3046] sm:$0xff]
        %v3048 = vld [vmem:[%s3046 + $0x8] sm:$0xff]
        %v3049 = vld [vmem:[%s3046 + $0x10] sm:$0xff]
        %v3050 = vld [vmem:[%s3046 + $0x18] sm:$0xff]
        %v3051 = vld [vmem:[%s3046 + $0x20] sm:$0xff]
        %v3052 = vld [vmem:[%s3046 + $0x28] sm:$0xff]
        %v3053 = vld [vmem:[%s3046 + $0x30] sm:$0xff]
        %v3054 = vld [vmem:[%s3046 + $0x38] sm:$0xff]
        %v3055 = vld [vmem:[%s3046 + $0x40] sm:$0xff]
        %v3056 = vld [vmem:[%s3046 + $0x48] sm:$0xff]
        %v3057 = vld [vmem:[%s3046 + $0x50] sm:$0xff]
        %v3058 = vld [vmem:[%s3046 + $0x58] sm:$0xff]
        %v3059 = vld [vmem:[%s3046 + $0x60] sm:$0xff]
        %v3060 = vld [vmem:[%s3046 + $0x68] sm:$0xff]
        %v3061 = vld [vmem:[%s3046 + $0x70] sm:$0xff]
        %v3062 = vld [vmem:[%s3046 + $0x78] sm:$0xff]
        %v3063 = vld [vmem:[%s3046 + $0x80] sm:$0xff]
        %v3064 = vld [vmem:[%s3046 + $0x88] sm:$0xff]
        %v3065 = vld [vmem:[%s3046 + $0x90] sm:$0xff]
        %v3066 = vld [vmem:[%s3046 + $0x98] sm:$0xff]
        %v3067 = vld [vmem:[%s3046 + $0xa0] sm:$0xff]
        %v3068 = vld [vmem:[%s3046 + $0xa8] sm:$0xff]
        %v3069 = vld [vmem:[%s3046 + $0xb0] sm:$0xff]
        %v3070 = vld [vmem:[%s3046 + $0xb8] sm:$0xff]
        %v3071 = vld [vmem:[%s3046 + $0xc0] sm:$0xff]
        %v3072 = vld [vmem:[%s3046 + $0xc8] sm:$0xff]
        %v3073 = vld [vmem:[%s3046 + $0xd0] sm:$0xff]
        %v3074 = vld [vmem:[%s3046 + $0xd8] sm:$0xff]
        %v3075 = vld [vmem:[%s3046 + $0xe0] sm:$0xff]
        %v3076 = vld [vmem:[%s3046 + $0xe8] sm:$0xff]
        %v3077 = vld [vmem:[%s3046 + $0xf0] sm:$0xff]
        %v3078 = vld [vmem:[%s3046 + $0xf8] sm:$0xff]
        %s3079 = scalar_lea.vmem [#allocation14], 4
        %v3080 = vld [vmem:[%s3079] sm:$0xf]
        %v3082 = vlaneseq
        %v3083 = vshrl.u32 %v3082, 7
        %v3084 = vsub.s32 0, %v3083
        %v3085 = vrot.slane %v3080, %v3084
        %v3086 = vlaneseq
        %v3087 = vshrl.u32 %v3086, 7
        %v3088 = vsub.s32 1, %v3087
        %v3089 = vrot.slane %v3080, %v3088
        %v3090 = vlaneseq
        %v3091 = vshrl.u32 %v3090, 7
        %v3092 = vsub.s32 2, %v3091
        %v3093 = vrot.slane %v3080, %v3092
        %v3094 = vlaneseq
        %v3095 = vshrl.u32 %v3094, 7
        %v3096 = vsub.s32 3, %v3095
        %v3097 = vrot.slane %v3080, %v3096
        %v3134 = vunpack.c.l.b16 %v3047
        %v3135 = vunpack.c.h.b16 %v3047
        %v3136 = vunpack.c.l.b16 %v3048
        %v3137 = vunpack.c.h.b16 %v3048
        %v3138 = vunpack.c.l.b16 %v3049
        %v3139 = vunpack.c.h.b16 %v3049
        %v3140 = vunpack.c.l.b16 %v3050
        %v3141 = vunpack.c.h.b16 %v3050
        %v3142 = vunpack.c.l.b16 %v3051
        %v3143 = vunpack.c.h.b16 %v3051
        %v3144 = vunpack.c.l.b16 %v3052
        %v3145 = vunpack.c.h.b16 %v3052
        %v3146 = vunpack.c.l.b16 %v3053
        %v3147 = vunpack.c.h.b16 %v3053
        %v3148 = vunpack.c.l.b16 %v3054
        %v3149 = vunpack.c.h.b16 %v3054
        %v3150 = vunpack.c.l.b16 %v3055
        %v3151 = vunpack.c.h.b16 %v3055
        %v3152 = vunpack.c.l.b16 %v3056
        %v3153 = vunpack.c.h.b16 %v3056
        %v3154 = vunpack.c.l.b16 %v3057
        %v3155 = vunpack.c.h.b16 %v3057
        %v3156 = vunpack.c.l.b16 %v3058
        %v3157 = vunpack.c.h.b16 %v3058
        %v3158 = vunpack.c.l.b16 %v3059
        %v3159 = vunpack.c.h.b16 %v3059
        %v3160 = vunpack.c.l.b16 %v3060
        %v3161 = vunpack.c.h.b16 %v3060
        %v3162 = vunpack.c.l.b16 %v3061
        %v3163 = vunpack.c.h.b16 %v3061
        %v3164 = vunpack.c.l.b16 %v3062
        %v3165 = vunpack.c.h.b16 %v3062
        %v3166 = vunpack.c.l.b16 %v3063
        %v3167 = vunpack.c.h.b16 %v3063
        %v3168 = vunpack.c.l.b16 %v3064
        %v3169 = vunpack.c.h.b16 %v3064
        %v3170 = vunpack.c.l.b16 %v3065
        %v3171 = vunpack.c.h.b16 %v3065
        %v3172 = vunpack.c.l.b16 %v3066
        %v3173 = vunpack.c.h.b16 %v3066
        %v3174 = vunpack.c.l.b16 %v3067
        %v3175 = vunpack.c.h.b16 %v3067
        %v3176 = vunpack.c.l.b16 %v3068
        %v3177 = vunpack.c.h.b16 %v3068
        %v3178 = vunpack.c.l.b16 %v3069
        %v3179 = vunpack.c.h.b16 %v3069
        %v3180 = vunpack.c.l.b16 %v3070
        %v3181 = vunpack.c.h.b16 %v3070
        %v3182 = vunpack.c.l.b16 %v3071
        %v3183 = vunpack.c.h.b16 %v3071
        %v3184 = vunpack.c.l.b16 %v3072
        %v3185 = vunpack.c.h.b16 %v3072
        %v3186 = vunpack.c.l.b16 %v3073
        %v3187 = vunpack.c.h.b16 %v3073
        %v3188 = vunpack.c.l.b16 %v3074
        %v3189 = vunpack.c.h.b16 %v3074
        %v3190 = vunpack.c.l.b16 %v3075
        %v3191 = vunpack.c.h.b16 %v3075
        %v3192 = vunpack.c.l.b16 %v3076
        %v3193 = vunpack.c.h.b16 %v3076
        %v3194 = vunpack.c.l.b16 %v3077
        %v3195 = vunpack.c.h.b16 %v3077
        %v3196 = vunpack.c.l.b16 %v3078
        %v3197 = vunpack.c.h.b16 %v3078
        %v3198 = vpack.c.b16 %v3138, %v3134
        %v3199 = vpack.c.b16 %v3139, %v3135
        %v3200 = vpack.c.b16 %v3140, %v3136
        %v3201 = vpack.c.b16 %v3141, %v3137
        %v3202 = vpack.c.b16 %v3146, %v3142
        %v3203 = vpack.c.b16 %v3147, %v3143
        %v3204 = vpack.c.b16 %v3148, %v3144
        %v3205 = vpack.c.b16 %v3149, %v3145
        %v3206 = vpack.c.b16 %v3154, %v3150
        %v3207 = vpack.c.b16 %v3155, %v3151
        %v3208 = vpack.c.b16 %v3156, %v3152
        %v3209 = vpack.c.b16 %v3157, %v3153
        %v3210 = vpack.c.b16 %v3162, %v3158
        %v3211 = vpack.c.b16 %v3163, %v3159
        %v3212 = vpack.c.b16 %v3164, %v3160
        %v3213 = vpack.c.b16 %v3165, %v3161
        %v3214 = vpack.c.b16 %v3170, %v3166
        %v3215 = vpack.c.b16 %v3171, %v3167
        %v3216 = vpack.c.b16 %v3172, %v3168
        %v3217 = vpack.c.b16 %v3173, %v3169
        %v3218 = vpack.c.b16 %v3178, %v3174
        %v3219 = vpack.c.b16 %v3179, %v3175
        %v3220 = vpack.c.b16 %v3180, %v3176
        %v3221 = vpack.c.b16 %v3181, %v3177
        %v3222 = vpack.c.b16 %v3186, %v3182
        %v3223 = vpack.c.b16 %v3187, %v3183
        %v3224 = vpack.c.b16 %v3188, %v3184
        %v3225 = vpack.c.b16 %v3189, %v3185
        %v3226 = vpack.c.b16 %v3194, %v3190
        %v3227 = vpack.c.b16 %v3195, %v3191
        %v3228 = vpack.c.b16 %v3196, %v3192
        %v3229 = vpack.c.b16 %v3197, %v3193
        %3262 = vmatprep.subr.bf16.mxu0 %v3199
        %3263 = vmatpush1.bf16.msra.mxu0 %v3198
        %3264 = vmatprep.subr.bf16.mxu0 %v3203
        %3265 = vmatpush1.bf16.msra.mxu0 %v3202
        %3266 = vmatprep.subr.bf16.mxu0 %v3207
        %3267 = vmatpush1.bf16.msra.mxu0 %v3206
        %3268 = vmatprep.subr.bf16.mxu0 %v3211
        %3269 = vmatpush1.bf16.msra.mxu0 %v3210
        %3270 = vmatprep.subr.bf16.mxu0 %v3215
        %3271 = vmatpush1.bf16.msra.mxu0 %v3214
        %3272 = vmatprep.subr.bf16.mxu0 %v3219
        %3273 = vmatpush1.bf16.msra.mxu0 %v3218
        %3274 = vmatprep.subr.bf16.mxu0 %v3223
        %3275 = vmatpush1.bf16.msra.mxu0 %v3222
        %3276 = vmatprep.subr.bf16.mxu0 %v3227
        %3277 = vmatpush1.bf16.msra.mxu0 %v3226
        %3278 = vmatprep.subr.bf16.mxu0 0
        %3279 = vmatpush1.bf16.msra.mxu0 0
        %3280 = vmatprep.subr.bf16.mxu0 0
        %3281 = vmatpush1.bf16.msra.mxu0 0
        %3282 = vmatprep.subr.bf16.mxu0 0
        %3283 = vmatpush1.bf16.msra.mxu0 0
        %3284 = vmatprep.subr.bf16.mxu0 0
        %3285 = vmatpush1.bf16.msra.mxu0 0
        %3286 = vmatprep.subr.bf16.mxu0 0
        %3287 = vmatpush1.bf16.msra.mxu0 0
        %3288 = vmatprep.subr.bf16.mxu0 0
        %3289 = vmatpush1.bf16.msra.mxu0 0
        %3290 = vmatprep.subr.bf16.mxu0 0
        %3291 = vmatpush1.bf16.msra.mxu0 0
        %3292 = vmatprep.subr.bf16.mxu0 0
        %3293 = vmatpush1.bf16.msra.mxu0 0
        %3294 = vmatprep.mubr.bf16.mxu0 0
        %3295 = vmatmul.mubr.bf16.gmra.mrb[0].mxu0 %v3045
        %v3296 = vpop.f32.mrb[0].mxu0
        %v3297 = vadd.f32 %v3085, %v3296
        %v3298 = vpop.f32.mrb[0].mxu0
        %v3299 = vadd.f32 %v3089, %v3298
        %v3300 = vpop.f32.mrb[0].mxu0
        %v3301 = vpop.f32.mrb[0].mxu0
        %3302 = vdwg.mxu0
        %3303 = vmatprep.subr.bf16.mxu0 %v3201
        %3304 = vmatpush1.bf16.msra.mxu0 %v3200
        %3305 = vmatprep.subr.bf16.mxu0 %v3205
        %3306 = vmatpush1.bf16.msra.mxu0 %v3204
        %3307 = vmatprep.subr.bf16.mxu0 %v3209
        %3308 = vmatpush1.bf16.msra.mxu0 %v3208
        %3309 = vmatprep.subr.bf16.mxu0 %v3213
        %3310 = vmatpush1.bf16.msra.mxu0 %v3212
        %3311 = vmatprep.subr.bf16.mxu0 %v3217
        %3312 = vmatpush1.bf16.msra.mxu0 %v3216
        %3313 = vmatprep.subr.bf16.mxu0 %v3221
        %3314 = vmatpush1.bf16.msra.mxu0 %v3220
        %3315 = vmatprep.subr.bf16.mxu0 %v3225
        %3316 = vmatpush1.bf16.msra.mxu0 %v3224
        %3317 = vmatprep.subr.bf16.mxu0 %v3229
        %3318 = vmatpush1.bf16.msra.mxu0 %v3228
        %3319 = vmatprep.subr.bf16.mxu0 0
        %3320 = vmatpush1.bf16.msra.mxu0 0
        %3321 = vmatprep.subr.bf16.mxu0 0
        %3322 = vmatpush1.bf16.msra.mxu0 0
        %3323 = vmatprep.subr.bf16.mxu0 0
        %3324 = vmatpush1.bf16.msra.mxu0 0
        %3325 = vmatprep.subr.bf16.mxu0 0
        %3326 = vmatpush1.bf16.msra.mxu0 0
        %3327 = vmatprep.subr.bf16.mxu0 0
        %3328 = vmatpush1.bf16.msra.mxu0 0
        %3329 = vmatprep.subr.bf16.mxu0 0
        %3330 = vmatpush1.bf16.msra.mxu0 0
        %3331 = vmatprep.subr.bf16.mxu0 0
        %3332 = vmatpush1.bf16.msra.mxu0 0
        %3333 = vmatprep.subr.bf16.mxu0 0
        %3334 = vmatpush1.bf16.msra.mxu0 0
        %3335 = vmatprep.mubr.bf16.mxu0 0
        %3336 = vmatmul.mubr.bf16.gmra.mrb[0].mxu0 %v3045
        %v3337 = vpop.f32.mrb[0].mxu0
        %v3338 = vadd.f32 %v3093, %v3337
        %v3339 = vpop.f32.mrb[0].mxu0
        %v3340 = vadd.f32 %v3097, %v3339
        %v3341 = vpop.f32.mrb[0].mxu0
        %v3342 = vpop.f32.mrb[0].mxu0
        %3343 = vdwg.mxu0
        %v3344 = vmul.f32 %v3297, %v3297
        %v3345 = vmul.f32 %v3299, %v3299
        %v3346 = vmul.f32 %v3338, %v3338
        %v3347 = vmul.f32 %v3340, %v3340
        %v3348 = vmul.f32 %v3297, %v3344
        %v3349 = vmul.f32 %v3299, %v3345
        %v3350 = vmul.f32 %v3338, %v3346
        %v3351 = vmul.f32 %v3340, %v3347
        %v3352 = vmul.f32 %v3348, 0.044715
        %v3353 = vmul.f32 %v3349, 0.044715
        %v3354 = vmul.f32 %v3350, 0.044715
        %v3355 = vmul.f32 %v3351, 0.044715
        %v3356 = vadd.f32 %v3297, %v3352
        %v3357 = vadd.f32 %v3299, %v3353
        %v3358 = vadd.f32 %v3338, %v3354
        %v3359 = vadd.f32 %v3340, %v3355
        %v3360 = vmul.f32 %v3356, 0.7978846
        %v3361 = vmul.f32 %v3357, 0.7978846
        %v3362 = vmul.f32 %v3358, 0.7978846
        %v3363 = vmul.f32 %v3359, 0.7978846
        %v3364 = vtanh.pop %v3360
        %v3365 = vtanh.pop %v3361
        %v3366 = vtanh.pop %v3362
        %v3367 = vtanh.pop %v3363
        %v3368 = vadd.f32 %v3364, 1.0
        %v3369 = vadd.f32 %v3365, 1.0
        %v3370 = vadd.f32 %v3366, 1.0
        %v3371 = vadd.f32 %v3367, 1.0
        %v3372 = vmul.f32 %v3368, 0.5
        %v3373 = vmul.f32 %v3369, 0.5
        %v3374 = vmul.f32 %v3370, 0.5
        %v3375 = vmul.f32 %v3371, 0.5
        %v3376 = vmul.f32 %v3297, %v3372
        %v3377 = vmul.f32 %v3299, %v3373
        %v3378 = vmul.f32 %v3338, %v3374
        %v3379 = vmul.f32 %v3340, %v3375
        %v3380 = vpack.c.bf16 %v3376, %v3376
        %v3381 = vpack.c.bf16 %v3377, %v3377
        %v3382 = vpack.c.bf16 %v3378, %v3378
        %v3383 = vpack.c.bf16 %v3379, %v3379
        %s3384 = scalar_lea.vmem [#allocation11], 256
        %v3385 = vld [vmem:[%s3384] sm:$0xf]
        %v3386 = vld [vmem:[%s3384 + $0x4] sm:$0xf]
        %v3387 = vld [vmem:[%s3384 + $0x8] sm:$0xf]
        %v3388 = vld [vmem:[%s3384 + $0xc] sm:$0xf]
        %v3389 = vld [vmem:[%s3384 + $0x10] sm:$0xf]
        %v3390 = vld [vmem:[%s3384 + $0x14] sm:$0xf]
        %v3391 = vld [vmem:[%s3384 + $0x18] sm:$0xf]
        %v3392 = vld [vmem:[%s3384 + $0x1c] sm:$0xf]
        %v3393 = vld [vmem:[%s3384 + $0x20] sm:$0xf]
        %v3394 = vld [vmem:[%s3384 + $0x24] sm:$0xf]
        %v3395 = vld [vmem:[%s3384 + $0x28] sm:$0xf]
        %v3396 = vld [vmem:[%s3384 + $0x2c] sm:$0xf]
        %v3397 = vld [vmem:[%s3384 + $0x30] sm:$0xf]
        %v3398 = vld [vmem:[%s3384 + $0x34] sm:$0xf]
        %v3399 = vld [vmem:[%s3384 + $0x38] sm:$0xf]
        %v3400 = vld [vmem:[%s3384 + $0x3c] sm:$0xf]
        %v3401 = vld [vmem:[%s3384 + $0x40] sm:$0xf]
        %v3402 = vld [vmem:[%s3384 + $0x44] sm:$0xf]
        %v3403 = vld [vmem:[%s3384 + $0x48] sm:$0xf]
        %v3404 = vld [vmem:[%s3384 + $0x4c] sm:$0xf]
        %v3405 = vld [vmem:[%s3384 + $0x50] sm:$0xf]
        %v3406 = vld [vmem:[%s3384 + $0x54] sm:$0xf]
        %v3407 = vld [vmem:[%s3384 + $0x58] sm:$0xf]
        %v3408 = vld [vmem:[%s3384 + $0x5c] sm:$0xf]
        %v3409 = vld [vmem:[%s3384 + $0x60] sm:$0xf]
        %v3410 = vld [vmem:[%s3384 + $0x64] sm:$0xf]
        %v3411 = vld [vmem:[%s3384 + $0x68] sm:$0xf]
        %v3412 = vld [vmem:[%s3384 + $0x6c] sm:$0xf]
        %v3413 = vld [vmem:[%s3384 + $0x70] sm:$0xf]
        %v3414 = vld [vmem:[%s3384 + $0x74] sm:$0xf]
        %v3415 = vld [vmem:[%s3384 + $0x78] sm:$0xf]
        %v3416 = vld [vmem:[%s3384 + $0x7c] sm:$0xf]
        %v3417 = vld [vmem:[%s3384 + $0x80] sm:$0xf]
        %v3418 = vld [vmem:[%s3384 + $0x84] sm:$0xf]
        %v3419 = vld [vmem:[%s3384 + $0x88] sm:$0xf]
        %v3420 = vld [vmem:[%s3384 + $0x8c] sm:$0xf]
        %v3421 = vld [vmem:[%s3384 + $0x90] sm:$0xf]
        %v3422 = vld [vmem:[%s3384 + $0x94] sm:$0xf]
        %v3423 = vld [vmem:[%s3384 + $0x98] sm:$0xf]
        %v3424 = vld [vmem:[%s3384 + $0x9c] sm:$0xf]
        %v3425 = vld [vmem:[%s3384 + $0xa0] sm:$0xf]
        %v3426 = vld [vmem:[%s3384 + $0xa4] sm:$0xf]
        %v3427 = vld [vmem:[%s3384 + $0xa8] sm:$0xf]
        %v3428 = vld [vmem:[%s3384 + $0xac] sm:$0xf]
        %v3429 = vld [vmem:[%s3384 + $0xb0] sm:$0xf]
        %v3430 = vld [vmem:[%s3384 + $0xb4] sm:$0xf]
        %v3431 = vld [vmem:[%s3384 + $0xb8] sm:$0xf]
        %v3432 = vld [vmem:[%s3384 + $0xbc] sm:$0xf]
        %v3433 = vld [vmem:[%s3384 + $0xc0] sm:$0xf]
        %v3434 = vld [vmem:[%s3384 + $0xc4] sm:$0xf]
        %v3435 = vld [vmem:[%s3384 + $0xc8] sm:$0xf]
        %v3436 = vld [vmem:[%s3384 + $0xcc] sm:$0xf]
        %v3437 = vld [vmem:[%s3384 + $0xd0] sm:$0xf]
        %v3438 = vld [vmem:[%s3384 + $0xd4] sm:$0xf]
        %v3439 = vld [vmem:[%s3384 + $0xd8] sm:$0xf]
        %v3440 = vld [vmem:[%s3384 + $0xdc] sm:$0xf]
        %v3441 = vld [vmem:[%s3384 + $0xe0] sm:$0xf]
        %v3442 = vld [vmem:[%s3384 + $0xe4] sm:$0xf]
        %v3443 = vld [vmem:[%s3384 + $0xe8] sm:$0xf]
        %v3444 = vld [vmem:[%s3384 + $0xec] sm:$0xf]
        %v3445 = vld [vmem:[%s3384 + $0xf0] sm:$0xf]
        %v3446 = vld [vmem:[%s3384 + $0xf4] sm:$0xf]
        %v3447 = vld [vmem:[%s3384 + $0xf8] sm:$0xf]
        %v3448 = vld [vmem:[%s3384 + $0xfc] sm:$0xf]
        %v3449 = vld [vmem:[%s2927 + $0x3] sm:$0x1]
        %v3450 = vlaneseq
        %v3451 = vshrl.u32 %v3450, 7
        %v3452 = vsub.s32 0, %v3451
        %v3453 = vrot.slane %v3449, %v3452
        %v3518 = vunpack.c.l.b16 %v3385
        %v3519 = vunpack.c.l.b16 %v3386
        %v3520 = vunpack.c.l.b16 %v3387
        %v3521 = vunpack.c.l.b16 %v3388
        %v3522 = vunpack.c.l.b16 %v3389
        %v3523 = vunpack.c.l.b16 %v3390
        %v3524 = vunpack.c.l.b16 %v3391
        %v3525 = vunpack.c.l.b16 %v3392
        %v3526 = vunpack.c.l.b16 %v3393
        %v3527 = vunpack.c.l.b16 %v3394
        %v3528 = vunpack.c.l.b16 %v3395
        %v3529 = vunpack.c.l.b16 %v3396
        %v3530 = vunpack.c.l.b16 %v3397
        %v3531 = vunpack.c.l.b16 %v3398
        %v3532 = vunpack.c.l.b16 %v3399
        %v3533 = vunpack.c.l.b16 %v3400
        %v3534 = vunpack.c.l.b16 %v3401
        %v3535 = vunpack.c.l.b16 %v3402
        %v3536 = vunpack.c.l.b16 %v3403
        %v3537 = vunpack.c.l.b16 %v3404
        %v3538 = vunpack.c.l.b16 %v3405
        %v3539 = vunpack.c.l.b16 %v3406
        %v3540 = vunpack.c.l.b16 %v3407
        %v3541 = vunpack.c.l.b16 %v3408
        %v3542 = vunpack.c.l.b16 %v3409
        %v3543 = vunpack.c.l.b16 %v3410
        %v3544 = vunpack.c.l.b16 %v3411
        %v3545 = vunpack.c.l.b16 %v3412
        %v3546 = vunpack.c.l.b16 %v3413
        %v3547 = vunpack.c.l.b16 %v3414
        %v3548 = vunpack.c.l.b16 %v3415
        %v3549 = vunpack.c.l.b16 %v3416
        %v3550 = vunpack.c.l.b16 %v3417
        %v3551 = vunpack.c.l.b16 %v3418
        %v3552 = vunpack.c.l.b16 %v3419
        %v3553 = vunpack.c.l.b16 %v3420
        %v3554 = vunpack.c.l.b16 %v3421
        %v3555 = vunpack.c.l.b16 %v3422
        %v3556 = vunpack.c.l.b16 %v3423
        %v3557 = vunpack.c.l.b16 %v3424
        %v3558 = vunpack.c.l.b16 %v3425
        %v3559 = vunpack.c.l.b16 %v3426
        %v3560 = vunpack.c.l.b16 %v3427
        %v3561 = vunpack.c.l.b16 %v3428
        %v3562 = vunpack.c.l.b16 %v3429
        %v3563 = vunpack.c.l.b16 %v3430
        %v3564 = vunpack.c.l.b16 %v3431
        %v3565 = vunpack.c.l.b16 %v3432
        %v3566 = vunpack.c.l.b16 %v3433
        %v3567 = vunpack.c.l.b16 %v3434
        %v3568 = vunpack.c.l.b16 %v3435
        %v3569 = vunpack.c.l.b16 %v3436
        %v3570 = vunpack.c.l.b16 %v3437
        %v3571 = vunpack.c.l.b16 %v3438
        %v3572 = vunpack.c.l.b16 %v3439
        %v3573 = vunpack.c.l.b16 %v3440
        %v3574 = vunpack.c.l.b16 %v3441
        %v3575 = vunpack.c.l.b16 %v3442
        %v3576 = vunpack.c.l.b16 %v3443
        %v3577 = vunpack.c.l.b16 %v3444
        %v3578 = vunpack.c.l.b16 %v3445
        %v3579 = vunpack.c.l.b16 %v3446
        %v3580 = vunpack.c.l.b16 %v3447
        %v3581 = vunpack.c.l.b16 %v3448
        %v3582 = vpack.c.b16 %v3519, %v3518
        %v3583 = vpack.c.b16 %v3521, %v3520
        %v3584 = vpack.c.b16 %v3523, %v3522
        %v3585 = vpack.c.b16 %v3525, %v3524
        %v3586 = vpack.c.b16 %v3527, %v3526
        %v3587 = vpack.c.b16 %v3529, %v3528
        %v3588 = vpack.c.b16 %v3531, %v3530
        %v3589 = vpack.c.b16 %v3533, %v3532
        %v3590 = vpack.c.b16 %v3535, %v3534
        %v3591 = vpack.c.b16 %v3537, %v3536
        %v3592 = vpack.c.b16 %v3539, %v3538
        %v3593 = vpack.c.b16 %v3541, %v3540
        %v3594 = vpack.c.b16 %v3543, %v3542
        %v3595 = vpack.c.b16 %v3545, %v3544
        %v3596 = vpack.c.b16 %v3547, %v3546
        %v3597 = vpack.c.b16 %v3549, %v3548
        %v3598 = vpack.c.b16 %v3551, %v3550
        %v3599 = vpack.c.b16 %v3553, %v3552
        %v3600 = vpack.c.b16 %v3555, %v3554
        %v3601 = vpack.c.b16 %v3557, %v3556
        %v3602 = vpack.c.b16 %v3559, %v3558
        %v3603 = vpack.c.b16 %v3561, %v3560
        %v3604 = vpack.c.b16 %v3563, %v3562
        %v3605 = vpack.c.b16 %v3565, %v3564
        %v3606 = vpack.c.b16 %v3567, %v3566
        %v3607 = vpack.c.b16 %v3569, %v3568
        %v3608 = vpack.c.b16 %v3571, %v3570
        %v3609 = vpack.c.b16 %v3573, %v3572
        %v3610 = vpack.c.b16 %v3575, %v3574
        %v3611 = vpack.c.b16 %v3577, %v3576
        %v3612 = vpack.c.b16 %v3579, %v3578
        %v3613 = vpack.c.b16 %v3581, %v3580
        %3646 = vmatprep.subr.bf16.mxu0 0
        %3647 = vmatpush1.bf16.msra.mxu0 %v3582
        %3648 = vmatprep.subr.bf16.mxu0 0
        %3649 = vmatpush1.bf16.msra.mxu0 %v3583
        %3650 = vmatprep.subr.bf16.mxu0 0
        %3651 = vmatpush1.bf16.msra.mxu0 %v3584
        %3652 = vmatprep.subr.bf16.mxu0 0
        %3653 = vmatpush1.bf16.msra.mxu0 %v3585
        %3654 = vmatprep.subr.bf16.mxu0 0
        %3655 = vmatpush1.bf16.msra.mxu0 %v3586
        %3656 = vmatprep.subr.bf16.mxu0 0
        %3657 = vmatpush1.bf16.msra.mxu0 %v3587
        %3658 = vmatprep.subr.bf16.mxu0 0
        %3659 = vmatpush1.bf16.msra.mxu0 %v3588
        %3660 = vmatprep.subr.bf16.mxu0 0
        %3661 = vmatpush1.bf16.msra.mxu0 %v3589
        %3662 = vmatprep.subr.bf16.mxu0 0
        %3663 = vmatpush1.bf16.msra.mxu0 %v3590
        %3664 = vmatprep.subr.bf16.mxu0 0
        %3665 = vmatpush1.bf16.msra.mxu0 %v3591
        %3666 = vmatprep.subr.bf16.mxu0 0
        %3667 = vmatpush1.bf16.msra.mxu0 %v3592
        %3668 = vmatprep.subr.bf16.mxu0 0
        %3669 = vmatpush1.bf16.msra.mxu0 %v3593
        %3670 = vmatprep.subr.bf16.mxu0 0
        %3671 = vmatpush1.bf16.msra.mxu0 %v3594
        %3672 = vmatprep.subr.bf16.mxu0 0
        %3673 = vmatpush1.bf16.msra.mxu0 %v3595
        %3674 = vmatprep.subr.bf16.mxu0 0
        %3675 = vmatpush1.bf16.msra.mxu0 %v3596
        %3676 = vmatprep.subr.bf16.mxu0 0
        %3677 = vmatpush1.bf16.msra.mxu0 %v3597
        %3678 = vmatprep.mubr.bf16.mxu0 %v3381
        %3679 = vmatmul.mubr.bf16.gmra.mrb[0].mxu0 %v3380
        %v3680 = vpop.f32.mrb[0].mxu0
        %v3681 = vadd.f32 %v3453, %v3680
        %v3682 = vpop.f32.mrb[0].mxu0
        %v3683 = vpop.f32.mrb[0].mxu0
        %v3684 = vpop.f32.mrb[0].mxu0
        %3685 = vdwg.mxu0
        %3686 = vmatprep.subr.bf16.mxu0 0
        %3687 = vmatpush1.bf16.msra.mxu0 %v3598
        %3688 = vmatprep.subr.bf16.mxu0 0
        %3689 = vmatpush1.bf16.msra.mxu0 %v3599
        %3690 = vmatprep.subr.bf16.mxu0 0
        %3691 = vmatpush1.bf16.msra.mxu0 %v3600
        %3692 = vmatprep.subr.bf16.mxu0 0
        %3693 = vmatpush1.bf16.msra.mxu0 %v3601
        %3694 = vmatprep.subr.bf16.mxu0 0
        %3695 = vmatpush1.bf16.msra.mxu0 %v3602
        %3696 = vmatprep.subr.bf16.mxu0 0
        %3697 = vmatpush1.bf16.msra.mxu0 %v3603
        %3698 = vmatprep.subr.bf16.mxu0 0
        %3699 = vmatpush1.bf16.msra.mxu0 %v3604
        %3700 = vmatprep.subr.bf16.mxu0 0
        %3701 = vmatpush1.bf16.msra.mxu0 %v3605
        %3702 = vmatprep.subr.bf16.mxu0 0
        %3703 = vmatpush1.bf16.msra.mxu0 %v3606
        %3704 = vmatprep.subr.bf16.mxu0 0
        %3705 = vmatpush1.bf16.msra.mxu0 %v3607
        %3706 = vmatprep.subr.bf16.mxu0 0
        %3707 = vmatpush1.bf16.msra.mxu0 %v3608
        %3708 = vmatprep.subr.bf16.mxu0 0
        %3709 = vmatpush1.bf16.msra.mxu0 %v3609
        %3710 = vmatprep.subr.bf16.mxu0 0
        %3711 = vmatpush1.bf16.msra.mxu0 %v3610
        %3712 = vmatprep.subr.bf16.mxu0 0
        %3713 = vmatpush1.bf16.msra.mxu0 %v3611
        %3714 = vmatprep.subr.bf16.mxu0 0
        %3715 = vmatpush1.bf16.msra.mxu0 %v3612
        %3716 = vmatprep.subr.bf16.mxu0 0
        %3717 = vmatpush1.bf16.msra.mxu0 %v3613
        %3718 = vmatprep.mubr.bf16.mxu0 %v3383
        %3719 = vmatmul.mubr.bf16.gmra.mrb[0].mxu0 %v3382
        %v3720 = vpop.f32.mrb[0].mxu0
        %v3721 = vadd.f32 %v3681, %v3720
        %v3722 = vpop.f32.mrb[0].mxu0
        %v3723 = vpop.f32.mrb[0].mxu0
        %v3724 = vpop.f32.mrb[0].mxu0
        %3725 = vdwg.mxu0
        %v3726 = vadd.f32 %v3044, %v3721
        %v3727 = vld [vmem:[%s2927 + $0x4] sm:$0x1]
        %v3728 = vld [vmem:[%s2927 + $0x5] sm:$0x1]
        %3729 = vadd.xlane.f32.xlu0 %v3726
        %v3730 = vpop.xlane.xlu0 %3729
        %v3731 = vmul.f32 %v3730, %v596
        %v3732 = vsub.f32 %v3726, %v3731
        %v3733 = vmul.f32 %v3732, %v3732
        %3734 = vadd.xlane.f32.xlu0 %v3733
        %v3735 = vpop.xlane.xlu0 %3734
        %v3736 = vmul.f32 %v3735, %v596
        %v3737 = vadd.f32 %v3736, 1e-12
        %v3738 = vrsqrt.pop %v3737
        %v3739 = vmul.f32 %v3732, %v3738
        %v3740 = vlaneseq
        %v3741 = vshrl.u32 %v3740, 7
        %v3742 = vsub.s32 0, %v3741
        %v3743 = vrot.slane %v3727, %v3742
        %v3744 = vmul.f32 %v3739, %v3743
        %v3745 = vlaneseq
        %v3746 = vshrl.u32 %v3745, 7
        %v3747 = vsub.s32 0, %v3746
        %v3748 = vrot.slane %v3728, %v3747
        %v3749 = vadd.f32 %v3744, %v3748
        %v3750 = vpack.c.bf16 %v3749, %v3749
        %v3751 = vld [vmem:[%s10] sm:$0xf]
        %v3752 = vld [vmem:[%s10 + $0x4] sm:$0xf]
        %v3753 = vld [vmem:[%s10 + $0x8] sm:$0xf]
        %v3754 = vld [vmem:[%s10 + $0xc] sm:$0xf]
        %v3755 = vld [vmem:[%s10 + $0x10] sm:$0xf]
        %v3756 = vld [vmem:[%s10 + $0x14] sm:$0xf]
        %v3757 = vld [vmem:[%s10 + $0x18] sm:$0xf]
        %v3758 = vld [vmem:[%s10 + $0x1c] sm:$0xf]
        %v3759 = vld [vmem:[%s10 + $0x20] sm:$0xf]
        %v3760 = vld [vmem:[%s10 + $0x24] sm:$0xf]
        %v3761 = vld [vmem:[%s10 + $0x28] sm:$0xf]
        %v3762 = vld [vmem:[%s10 + $0x2c] sm:$0xf]
        %v3763 = vld [vmem:[%s10 + $0x30] sm:$0xf]
        %v3764 = vld [vmem:[%s10 + $0x34] sm:$0xf]
        %v3765 = vld [vmem:[%s10 + $0x38] sm:$0xf]
        %v3766 = vld [vmem:[%s10 + $0x3c] sm:$0xf]
        %v3767 = vld [vmem:[%s12] sm:$0x1]
        %v3784 = vunpack.c.l.b16 %v3751
        %v3785 = vunpack.c.l.b16 %v3752
        %v3786 = vunpack.c.l.b16 %v3753
        %v3787 = vunpack.c.l.b16 %v3754
        %v3788 = vunpack.c.l.b16 %v3755
        %v3789 = vunpack.c.l.b16 %v3756
        %v3790 = vunpack.c.l.b16 %v3757
        %v3791 = vunpack.c.l.b16 %v3758
        %v3792 = vunpack.c.l.b16 %v3759
        %v3793 = vunpack.c.l.b16 %v3760
        %v3794 = vunpack.c.l.b16 %v3761
        %v3795 = vunpack.c.l.b16 %v3762
        %v3796 = vunpack.c.l.b16 %v3763
        %v3797 = vunpack.c.l.b16 %v3764
        %v3798 = vunpack.c.l.b16 %v3765
        %v3799 = vunpack.c.l.b16 %v3766
        %v3800 = vpack.c.b16 %v3785, %v3784
        %v3801 = vpack.c.b16 %v3787, %v3786
        %v3802 = vpack.c.b16 %v3789, %v3788
        %v3803 = vpack.c.b16 %v3791, %v3790
        %v3804 = vpack.c.b16 %v3793, %v3792
        %v3805 = vpack.c.b16 %v3795, %v3794
        %v3806 = vpack.c.b16 %v3797, %v3796
        %v3807 = vpack.c.b16 %v3799, %v3798
        %3816 = vmatprep.subr.bf16.mxu0 0
        %3817 = vmatpush1.bf16.msra.mxu0 %v3800
        %3818 = vmatprep.subr.bf16.mxu0 0
        %3819 = vmatpush1.bf16.msra.mxu0 %v3801
        %3820 = vmatprep.subr.bf16.mxu0 0
        %3821 = vmatpush1.bf16.msra.mxu0 %v3802
        %3822 = vmatprep.subr.bf16.mxu0 0
        %3823 = vmatpush1.bf16.msra.mxu0 %v3803
        %3824 = vmatprep.subr.bf16.mxu0 0
        %3825 = vmatpush1.bf16.msra.mxu0 %v3804
        %3826 = vmatprep.subr.bf16.mxu0 0
        %3827 = vmatpush1.bf16.msra.mxu0 %v3805
        %3828 = vmatprep.subr.bf16.mxu0 0
        %3829 = vmatpush1.bf16.msra.mxu0 %v3806
        %3830 = vmatprep.subr.bf16.mxu0 0
        %3831 = vmatpush1.bf16.msra.mxu0 %v3807
        %3832 = vmatprep.subr.bf16.mxu0 0
        %3833 = vmatpush1.bf16.msra.mxu0 0
        %3834 = vmatprep.subr.bf16.mxu0 0
        %3835 = vmatpush1.bf16.msra.mxu0 0
        %3836 = vmatprep.subr.bf16.mxu0 0
        %3837 = vmatpush1.bf16.msra.mxu0 0
        %3838 = vmatprep.subr.bf16.mxu0 0
        %3839 = vmatpush1.bf16.msra.mxu0 0
        %3840 = vmatprep.subr.bf16.mxu0 0
        %3841 = vmatpush1.bf16.msra.mxu0 0
        %3842 = vmatprep.subr.bf16.mxu0 0
        %3843 = vmatpush1.bf16.msra.mxu0 0
        %3844 = vmatprep.subr.bf16.mxu0 0
        %3845 = vmatpush1.bf16.msra.mxu0 0
        %3846 = vmatprep.subr.bf16.mxu0 0
        %3847 = vmatpush1.bf16.msra.mxu0 0
        %3848 = vmatprep.mubr.bf16.mxu0 0
        %3849 = vmatmul.mubr.bf16.gmra.mrb[0].mxu0 %v3750
        %v3850 = vpop.f32.mrb[0].mxu0
        %v3851 = vadd.f32 %v3767, %v3850
        %v3852 = vpop.f32.mrb[0].mxu0
        %v3853 = vpop.f32.mrb[0].mxu0
        %v3854 = vpop.f32.mrb[0].mxu0
        %3855 = vdwg.mxu0
        %v3856 = vmax.f32 %v3851, 0.0
        %v3857 = vpack.c.bf16 %v3856, %v3856
        %v3858 = vld [vmem:[#allocation16] sm:$0xf]
        %v3859 = vld [vmem:[#allocation16 + $0x4] sm:$0xf]
        %v3860 = vld [vmem:[#allocation16 + $0x8] sm:$0xf]
        %v3861 = vld [vmem:[#allocation16 + $0xc] sm:$0xf]
        %v3862 = vld [vmem:[#allocation16 + $0x10] sm:$0xf]
        %v3863 = vld [vmem:[#allocation16 + $0x14] sm:$0xf]
        %v3864 = vld [vmem:[#allocation16 + $0x18] sm:$0xf]
        %v3865 = vld [vmem:[#allocation16 + $0x1c] sm:$0xf]
        %v3866 = vld [vmem:[%s12 + $0x1] sm:$0x1]
        %v3875 = vunpack.c.l.b16 %v3858
        %v3876 = vunpack.c.l.b16 %v3859
        %v3877 = vunpack.c.l.b16 %v3860
        %v3878 = vunpack.c.l.b16 %v3861
        %v3879 = vunpack.c.l.b16 %v3862
        %v3880 = vunpack.c.l.b16 %v3863
        %v3881 = vunpack.c.l.b16 %v3864
        %v3882 = vunpack.c.l.b16 %v3865
        %v3883 = vpack.c.b16 %v3876, %v3875
        %v3884 = vpack.c.b16 %v3878, %v3877
        %v3885 = vpack.c.b16 %v3880, %v3879
        %v3886 = vpack.c.b16 %v3882, %v3881
        %v3892 = vsel %vm1345, %v3857, 0
        %3894 = vmatprep.subr.bf16.mxu0 0
        %3895 = vmatpush1.bf16.msra.mxu0 %v3883
        %3896 = vmatprep.subr.bf16.mxu0 0
        %3897 = vmatpush1.bf16.msra.mxu0 %v3884
        %3898 = vmatprep.subr.bf16.mxu0 0
        %3899 = vmatpush1.bf16.msra.mxu0 %v3885
        %3900 = vmatprep.subr.bf16.mxu0 0
        %3901 = vmatpush1.bf16.msra.mxu0 %v3886
        %3902 = vmatprep.subr.bf16.mxu0 0
        %3903 = vmatpush1.bf16.msra.mxu0 0
        %3904 = vmatprep.subr.bf16.mxu0 0
        %3905 = vmatpush1.bf16.msra.mxu0 0
        %3906 = vmatprep.subr.bf16.mxu0 0
        %3907 = vmatpush1.bf16.msra.mxu0 0
        %3908 = vmatprep.subr.bf16.mxu0 0
        %3909 = vmatpush1.bf16.msra.mxu0 0
        %3910 = vmatprep.subr.bf16.mxu0 0
        %3911 = vmatpush1.bf16.msra.mxu0 0
        %3912 = vmatprep.subr.bf16.mxu0 0
        %3913 = vmatpush1.bf16.msra.mxu0 0
        %3914 = vmatprep.subr.bf16.mxu0 0
        %3915 = vmatpush1.bf16.msra.mxu0 0
        %3916 = vmatprep.subr.bf16.mxu0 0
        %3917 = vmatpush1.bf16.msra.mxu0 0
        %3918 = vmatprep.subr.bf16.mxu0 0
        %3919 = vmatpush1.bf16.msra.mxu0 0
        %3920 = vmatprep.subr.bf16.mxu0 0
        %3921 = vmatpush1.bf16.msra.mxu0 0
        %3922 = vmatprep.subr.bf16.mxu0 0
        %3923 = vmatpush1.bf16.msra.mxu0 0
        %3924 = vmatprep.subr.bf16.mxu0 0
        %3925 = vmatpush1.bf16.msra.mxu0 0
        %3926 = vmatprep.mubr.bf16.mxu0 0
        %3927 = vmatmul.mubr.bf16.gmra.mrb[0].mxu0 %v3892
        %v3928 = vpop.f32.mrb[0].mxu0
        %v3929 = vadd.f32 %v3866, %v3928
        %v3930 = vpop.f32.mrb[0].mxu0
        %v3931 = vpop.f32.mrb[0].mxu0
        %v3932 = vpop.f32.mrb[0].mxu0
        %3933 = vdwg.mxu0
        %v3934 = vlaneseq
        %v3935 = vshrl.u32 %v3934, 7
        %v3936 = vsub.s32 0, %v3935
        %v3937 = vrot.slane %v3929, %v3936
        %3938 = vst [vmem:[%s588] sm:$0xff] %v3937
        %s3939 = sand.u32 %s327, 1
        %s3940 = scalar_lea.sflag [#allocation4], %s3939
        %s3941 = sand.u32 %s327, 1
        %s3942 = smul.addr %s3941, 8
        %s3943 = scalar_lea.vmem [#allocation17], %s3942
        // Predicated region
        $region109: #{tpu_custom_call.1} parent=71 // pred_check
          %p3944 = pneg %p337
        $region110: #{tpu_custom_call.1} parent=71 // pred_check_branch
          %3946 = sbr.rel (%p3944) target = $region112
        $region111: #{tpu_custom_call.1} parent=71 // pred_region
          %s3948 = ssub.s32 128, 128
          %3949 = vsyncadd %s3940, %s3948
          %s3950 = smul.addr %s36, 128
          %s3951 = scalar_lea.hbm %s13, %s3950
          %s3953 = sshll.u32 %s3943, 4
          %s3954 = int_to_ptr.vmem [resolvable:$true] %s3953
          %3956 = dma.vmem_to_hbm [thread:$0]  %s3954, 128, %s3951, %s3940
        $region112: #{tpu_custom_call.1} parent=71 // pred_fallthru
          _
      $region72: #{tpu_custom_call.1} parent=5 // pred_fallthru
        _
      %p3957 = scmp.le.s32.totalorder 2, %s31
      // Predicated region
      $region113: #{tpu_custom_call.1} parent=5 // pred_check
        %p3958 = pneg %p3957
      $region114: #{tpu_custom_call.1} parent=5 // pred_check_branch
        %3960 = sbr.rel (%p3958) target = $region116
      $region115: #{tpu_custom_call.1} parent=5 // pred_region
        %s3961 = ssub.s32 %s31, 2
        // Predicated region
        $region117: #{tpu_custom_call.1} parent=115 // pred_check
          %p3962 = pneg %p343
        $region118: #{tpu_custom_call.1} parent=115 // pred_check_branch
          %3964 = sbr.rel (%p3962) target = $region120
        $region119: #{tpu_custom_call.1} parent=115 // pred_region
          %s3965 = sand.u32 %s328, 1
          %s3966 = scalar_lea.sflag [#allocation4], %s3965
          %s3967 = sand.u32 %s328, 1
          %s3968 = smul.addr %s3967, 8
          %s3969 = scalar_lea.vmem [#allocation17], %s3968
          %3970 = dma.done %s3966, 128
        $region120: #{tpu_custom_call.1} parent=115 // pred_fallthru
          _
      $region116: #{tpu_custom_call.1} parent=5 // pred_fallthru
        _
    $region6: #{tpu_custom_call.1} parent=1 // loop_footer
      %s35 = sadd.s32 1, %s31
    $region7: #{tpu_custom_call.1} parent=1 // loop_footer_branch
      %30 = sbr.rel target = $region3
    $region8: #{tpu_custom_call.1} parent=1 // loop_exit
      _
    %3971 = vsyncpa [#allocation3], 1
    %s3972 = scalar_lea.sflag [#allocation3], 1
    %3973 = vsyncpa %s3972, 1
    %3974 = vsyncpa [#allocation6], 1
    %s3975 = scalar_lea.sflag [#allocation6], 1
    %3976 = vsyncpa %s3975, 1
    %3977 = vsyncpa [#allocation9], 1
    %3978 = vsyncpa [#allocation12], 1
    %3979 = vsyncpa [#allocation15], 1
    %3980 = vsyncpa [#allocation4], 1
    %s3981 = scalar_lea.sflag [#allocation4], 1
    %3982 = vsyncpa %s3981, 1

</llo_original>
